<compile_context>
chip_gen: v7x
topology: tpu7x:2x2x1
jax: 0.10.0
libtpu: 0.0.40
codegen_flags: <defaults>
</compile_context>

<pallas_src>
import functools

import jax
import jax.numpy as jnp
from jax import lax
from jax.experimental import pallas as pl
from jax.experimental.pallas import tpu as pltpu


# ---------------------------------------------------------------------------
# LeNet geometry (32x32 single-channel input, 5x5 convs, 2x2 max-pools)
# ---------------------------------------------------------------------------
IMG = 32                 # input height / width
KS = 5                   # conv kernel size
C1 = 6                   # conv1 output channels
C2 = 16                  # conv2 output channels
G1 = 14                  # pooled conv1 grid  ((32-4)/2)
G2 = 5                   # pooled conv2 grid  ((14-4)/2)
K1P = 32                 # conv1 contraction (25) padded to a sublane multiple
C1P = 8                  # conv1 channels padded (lane width of the h1 scratch)
COP = 128                # lane-dense padded channel / hidden width
ROWS1 = 256              # per-image h1 rows: 196 valid + pad (>= 196 + max shift 60)
ROWS2 = 144              # conv2 rows computed (last valid flat row is 9*14+9 = 135)
K2 = KS * KS * C1P       # conv2 contraction width (200)
NFEAT = G2 * G2 * C2     # fc1 input features (400)


def _round_up(x, m):
    return (x + m - 1) // m * m


def _cdiv(a, b):
    return -(-a // b)


# ---------------------------------------------------------------------------
# Pallas kernels
# ---------------------------------------------------------------------------
def _conv_stack_kernel(p_ref, w1_ref, b1_ref, w2_ref, b2_ref, o_ref, h1_s, a2_s):
    """Whole conv trunk for ONE image: conv1+pool -> conv2+pool, VMEM resident.

    p_ref : (4*ROWS1, K1P) conv1 patch rows for the 4 pool corners, stacked.
    w1/b1 : (K1P, COP) / (1, COP)  padded conv1 weights (cols = out channel).
    w2/b2 : (K2, COP)  / (1, COP)  padded conv2 weights (rows = (ky, kx, ci)).
    o_ref : (1, 25, 16)            pooled conv2 activations, compact layout.
    h1_s  : (ROWS1, C1P) f32 scratch, pooled conv1 map, rows = p*14 + q.
    a2_s  : (ROWS2, COP) f32 scratch, conv2 map, rows = i*14 + j.
    """
    # conv1: one matmul over all 4 corners, then max over corners + bias + ReLU.
    d = jnp.dot(p_ref[...], w1_ref[...], preferred_element_type=jnp.float32)
    m = jnp.maximum(jnp.maximum(d[0:ROWS1, :], d[ROWS1:2 * ROWS1, :]),
                    jnp.maximum(d[2 * ROWS1:3 * ROWS1, :], d[3 * ROWS1:4 * ROWS1, :]))
    h1_s[...] = jnp.maximum(m + b1_ref[...], 0.0)[:, :C1P]

    # conv2 im2col: 25 shifted windows of the VMEM-resident pooled conv1 map.
    # Valid conv2 rows (i, j <= 9) only ever read valid h1 rows (p, q <= 13).
    pieces = [h1_s[ky * G1 + kx: ky * G1 + kx + ROWS2, :]
              for ky in range(KS) for kx in range(KS)]
    patch = jnp.concatenate(pieces, axis=1)                        # (ROWS2, K2)
    a2 = jnp.dot(patch.astype(w2_ref.dtype), w2_ref[...],
                 preferred_element_type=jnp.float32)
    a2_s[...] = jnp.maximum(a2 + b2_ref[...], 0.0)

    # 2x2 max-pool of the 10x10 conv2 map (rows are flat i*14 + j), compact store.
    for p in range(G2):
        base = 2 * p * G1
        c00 = a2_s[pl.ds(base, G2, stride=2), :]
        c01 = a2_s[pl.ds(base + 1, G2, stride=2), :]
        c10 = a2_s[pl.ds(base + G1, G2, stride=2), :]
        c11 = a2_s[pl.ds(base + G1 + 1, G2, stride=2), :]
        m2 = jnp.maximum(jnp.maximum(c00, c01), jnp.maximum(c10, c11))
        o_ref[0, p * G2:(p + 1) * G2, :] = m2[:, :C2].astype(o_ref.dtype)


def _fc_fused_kernel(x_ref, w1_ref, b1_ref, w2_ref, b2_ref, w3_ref, b3_ref, o_ref):
    """fc1 -> relu -> fc2 -> relu -> fc3 in one kernel, all weights in VMEM."""
    cdt = w1_ref.dtype
    h = jnp.dot(x_ref[...], w1_ref[...], preferred_element_type=jnp.float32)
    h = jnp.maximum(h + b1_ref[...], 0.0).astype(cdt)
    h = jnp.dot(h, w2_ref[...], preferred_element_type=jnp.float32)
    h = jnp.maximum(h + b2_ref[...], 0.0).astype(cdt)
    h = jnp.dot(h, w3_ref[...], preferred_element_type=jnp.float32)
    o_ref[...] = (h + b3_ref[...]).astype(o_ref.dtype)


# ---------------------------------------------------------------------------
# Wrappers
# ---------------------------------------------------------------------------
def _conv1_corner_patches(x_nchw, dtype):
    """Pre-stacked conv1 patch rows for the 4 pool corners: one array, one DMA.

    Row order: image-major, then corner (dy, dx), then pooled position p*14+q
    (padded to 256 per corner); columns: (ky, kx), zero-padded to K1P.
    """
    n, cin, h, w = x_nchw.shape
    assert (cin, h, w) == (1, IMG, IMG), x_nchw.shape
    xs = x_nchw[:, 0]                                               # (N, 32, 32)
    corners = []
    for dy in (0, 1):
        for dx in (0, 1):
            cols = []
            for ky in range(KS):
                for kx in range(KS):
                    sl = lax.slice(xs, (0, dy + ky, dx + kx),
                                   (n, dy + ky + 2 * (G1 - 1) + 1,
                                    dx + kx + 2 * (G1 - 1) + 1), (1, 2, 2))
                    cols.append(sl.reshape(n, G1 * G1, 1))
            c = jnp.concatenate(cols, axis=2)                       # (N, 196, 25)
            c = jnp.pad(c, ((0, 0), (0, ROWS1 - G1 * G1), (0, K1P - KS * KS)))
            corners.append(c)
    pats = jnp.stack(corners, axis=1)                               # (N, 4, 256, 32)
    return pats.reshape(n * 4 * ROWS1, K1P).astype(dtype)


def conv_stack(patches, w1p, b1p, w2p, b2p, n_images, out_dtype):
    """Fused conv1+pool -> conv2+pool, one grid step per image."""
    return pl.pallas_call(
        _conv_stack_kernel,
        out_shape=jax.ShapeDtypeStruct((n_images, G2 * G2, C2), out_dtype),
        grid=(n_images,),
        in_specs=[pl.BlockSpec((4 * ROWS1, K1P), lambda i: (i, 0)),
                  pl.BlockSpec((K1P, COP), lambda i: (0, 0)),
                  pl.BlockSpec((1, COP), lambda i: (0, 0)),
                  pl.BlockSpec((K2, COP), lambda i: (0, 0)),
                  pl.BlockSpec((1, COP), lambda i: (0, 0))],
        out_specs=pl.BlockSpec((1, G2 * G2, C2), lambda i: (i, 0, 0)),
        scratch_shapes=[pltpu.VMEM((ROWS1, C1P), jnp.float32),
                        pltpu.VMEM((ROWS2, COP), jnp.float32)],
        compiler_params=pltpu.CompilerParams(
            dimension_semantics=("parallel",)),
    )(patches, w1p, b1p, w2p, b2p)


def fc_fused(x_flat, w1, b1, w2, b2, w3, b3, *, tile_b=256):
    """fc3(relu(fc2(relu(fc1(x))))) in a single pallas_call, weights resident."""
    nb, k1 = x_flat.shape
    # Keep >= 2 grid steps (v7x has 2 TensorCores; also keeps double-buffering on),
    # row tiles in multiples of 16 (bf16-safe), and a handful of steps at large batch.
    tile = min(tile_b, max(16, _round_up(_cdiv(nb, 2), 16)))
    nb_pad = max(_round_up(nb, tile), 2 * tile)
    x_p = jnp.pad(x_flat, ((0, nb_pad - nb), (0, 0)))
    out = pl.pallas_call(
        _fc_fused_kernel,
        out_shape=jax.ShapeDtypeStruct((nb_pad, COP), jnp.float32),
        grid=(nb_pad // tile,),
        in_specs=[pl.BlockSpec((tile, k1), lambda i: (i, 0)),
                  pl.BlockSpec((k1, COP), lambda i: (0, 0)),
                  pl.BlockSpec((1, COP), lambda i: (0, 0)),
                  pl.BlockSpec((COP, COP), lambda i: (0, 0)),
                  pl.BlockSpec((1, COP), lambda i: (0, 0)),
                  pl.BlockSpec((COP, COP), lambda i: (0, 0)),
                  pl.BlockSpec((1, COP), lambda i: (0, 0))],
        out_specs=pl.BlockSpec((tile, COP), lambda i: (i, 0)),
        compiler_params=pltpu.CompilerParams(
            dimension_semantics=("parallel",)),
    )(x_p, w1, b1, w2, b2, w3, b3)
    return out[:nb]


def prepare_params(params, *, use_bf16=False):
    """One-time: build every padded / permuted weight matrix the kernels consume."""
    wdt = jnp.bfloat16 if use_bf16 else jnp.float32
    f32 = jnp.float32

    # conv1: (6,1,5,5) -> (25, 6) with rows ordered (ky, kx), padded to (K1P, COP).
    w1 = params["conv1_w"].reshape(C1, KS * KS).T
    w1 = jnp.pad(w1, ((0, K1P - KS * KS), (0, COP - C1))).astype(wdt)
    b1 = jnp.pad(params["conv1_b"].reshape(1, C1), ((0, 0), (0, COP - C1))).astype(f32)

    # conv2: (16,6,5,5) -> rows (ky, kx, ci padded to 8) -> (K2, COP).
    w2 = jnp.transpose(params["conv2_w"], (2, 3, 1, 0))             # (ky,kx,ci,co)
    w2 = jnp.pad(w2, ((0, 0), (0, 0), (0, C1P - C1), (0, 0))).reshape(K2, C2)
    w2 = jnp.pad(w2, ((0, 0), (0, COP - C2))).astype(wdt)
    b2 = jnp.pad(params["conv2_b"].reshape(1, C2), ((0, 0), (0, COP - C2))).astype(f32)

    # fc1: permute PyTorch's (c, p, q) flatten order to this kernel's (p, q, c) order.
    h1 = params["fc1_w"].shape[0]
    f1 = params["fc1_w"].reshape(h1, C2, G2, G2).transpose(2, 3, 1, 0).reshape(NFEAT, h1)
    f1 = jnp.pad(f1, ((0, 0), (0, COP - h1))).astype(wdt)
    fb1 = jnp.pad(params["fc1_b"].reshape(1, h1), ((0, 0), (0, COP - h1))).astype(f32)

    h2 = params["fc2_w"].shape[0]
    f2 = jnp.pad(params["fc2_w"].T, ((0, COP - h1), (0, COP - h2))).astype(wdt)
    fb2 = jnp.pad(params["fc2_b"].reshape(1, h2), ((0, 0), (0, COP - h2))).astype(f32)

    nc = params["fc3_w"].shape[0]
    f3 = jnp.pad(params["fc3_w"].T, ((0, COP - h2), (0, COP - nc))).astype(wdt)
    fb3 = jnp.pad(params["fc3_b"].reshape(1, nc), ((0, 0), (0, COP - nc))).astype(f32)

    return {"w1": w1, "b1": b1, "w2": w2, "b2": b2,
            "f1": f1, "fb1": fb1, "f2": f2, "fb2": fb2, "f3": f3, "fb3": fb3}


def cnn_forward(prepared, x_nchw, *, num_classes=4):
    """Forward pass matching the PyTorch CNN module (NCHW input)."""
    n = x_nchw.shape[0]
    cdt = prepared["w1"].dtype
    patches = _conv1_corner_patches(x_nchw, cdt)
    pooled = conv_stack(patches, prepared["w1"], prepared["b1"],
                        prepared["w2"], prepared["b2"], n, cdt)
    x_flat = pooled.reshape(n, NFEAT)            # row-major compatible -> free
    logits = fc_fused(x_flat, prepared["f1"], prepared["fb1"],
                      prepared["f2"], prepared["fb2"],
                      prepared["f3"], prepared["fb3"])
    return logits[:, :num_classes]


# ---------------------------------------------------------------------------
# Pure-JAX reference + params (PyTorch layouts: NCHW / OIHW / (out, in))
# ---------------------------------------------------------------------------
def cnn_reference(params, x):
    def conv(x, w, b):
        y = lax.conv_general_dilated(
            x, w, (1, 1), "VALID", dimension_numbers=("NCHW", "OIHW", "NCHW"))
        return jax.nn.relu(y + b.reshape(1, -1, 1, 1))

    def pool(x):
        return lax.reduce_window(x, -jnp.inf, lax.max,
                                 (1, 1, 2, 2), (1, 1, 2, 2), "VALID")

    x = pool(conv(x, params["conv1_w"], params["conv1_b"]))
    x = pool(conv(x, params["conv2_w"], params["conv2_b"]))
    x = x.reshape(x.shape[0], -1)
    x = jax.nn.relu(x @ params["fc1_w"].T + params["fc1_b"])
    x = jax.nn.relu(x @ params["fc2_w"].T + params["fc2_b"])
    return x @ params["fc3_w"].T + params["fc3_b"]


def init_params(key, num_classes=4, fc1_in=C2 * G2 * G2):
    ks = jax.random.split(key, 10)
    n = lambda k, s: (jax.random.normal(k, s, jnp.float32) * 0.1)
    return {
        "conv1_w": n(ks[0], (C1, 1, KS, KS)),   "conv1_b": n(ks[1], (C1,)),
        "conv2_w": n(ks[2], (C2, C1, KS, KS)),  "conv2_b": n(ks[3], (C2,)),
        "fc1_w":   n(ks[4], (120, fc1_in)),     "fc1_b":   n(ks[5], (120,)),
        "fc2_w":   n(ks[6], (84, 120)),         "fc2_b":   n(ks[7], (84,)),
        "fc3_w":   n(ks[8], (num_classes, 84)), "fc3_b":   n(ks[9], (num_classes,)),
    }


if __name__ == "__main__":
    key = jax.random.PRNGKey(0)
    k_params, k_x = jax.random.split(key)

    # 32x32 single-channel input -> classic LeNet geometry: conv1 28x28 -> pool
    # 14x14 -> conv2 10x10 -> pool 5x5 -> fc1 input 16*5*5 = 400.  Batch = 2.
    x = jax.random.normal(k_x, (2, 1, IMG, IMG), jnp.float32)
    params = init_params(k_params)
    ref = jax.block_until_ready(cnn_reference(params, x))

    fwd = jax.jit(functools.partial(cnn_forward, num_classes=4))

    # f32 path: strict check against the pure-JAX reference.
    prepared = prepare_params(params, use_bf16=False)
    out = jax.block_until_ready(fwd(prepared, x))
    assert out.shape == (2, 4), out.shape
    assert jnp.allclose(out, ref, rtol=1e-4, atol=1e-4), "f32 Pallas output mismatch"

    # bf16 operand-streaming path (v6e/v7x bandwidth win), f32 accumulation.
    prepared_bf16 = prepare_params(params, use_bf16=True)
    out_bf16 = jax.block_until_ready(fwd(prepared_bf16, x))
    assert out_bf16.shape == (2, 4), out_bf16.shape
    assert jnp.allclose(out_bf16, ref, rtol=5e-2, atol=5e-2), "bf16 Pallas output mismatch"

    print("KERNEL_OK")
</pallas_src>

<mosaic_0001>
module attributes {stable_mosaic.version = 11 : i64} {
  func.func @_conv_stack_kernel(%arg0: i32, %arg1: memref<1024x32xf32, #tpu.memory_space<vmem>>, %arg2: memref<32x128xf32, #tpu.memory_space<vmem>>, %arg3: memref<1x128xf32, #tpu.memory_space<vmem>>, %arg4: memref<200x128xf32, #tpu.memory_space<vmem>>, %arg5: memref<1x128xf32, #tpu.memory_space<vmem>>, %arg6: memref<1x25x16xf32, #tpu.memory_space<vmem>>, %arg7: memref<256x8xf32, #tpu.memory_space<vmem>>, %arg8: memref<144x128xf32, #tpu.memory_space<vmem>>) attributes {dimension_semantics = [#tpu.dimension_semantics<parallel>], iteration_bounds = array<i64: 2>, scalar_prefetch = 0 : i64, scratch_operands = 2 : i64, tpu.core_type = #tpu.core_type<tc>, window_params = [{transform_indices = @transform_0, window_bounds = array<i64: 1024, 32>}, {pipeline_mode = #tpu.pipeline_mode<synchronous>, transform_indices = @transform_1, window_bounds = array<i64: 32, 128>}, {pipeline_mode = #tpu.pipeline_mode<synchronous>, transform_indices = @transform_2, window_bounds = array<i64: 1, 128>}, {pipeline_mode = #tpu.pipeline_mode<synchronous>, transform_indices = @transform_3, window_bounds = array<i64: 200, 128>}, {pipeline_mode = #tpu.pipeline_mode<synchronous>, transform_indices = @transform_4, window_bounds = array<i64: 1, 128>}, {transform_indices = @transform_5, window_bounds = array<i64: 1, 25, 16>}]} {
    %c0 = arith.constant 0 : index
    %c0_0 = arith.constant 0 : index
    %0 = vector.load %arg1[%c0, %c0_0] : memref<1024x32xf32, #tpu.memory_space<vmem>>, vector<1024x32xf32>
    %c0_1 = arith.constant 0 : index
    %c0_2 = arith.constant 0 : index
    %1 = vector.load %arg2[%c0_1, %c0_2] : memref<32x128xf32, #tpu.memory_space<vmem>>, vector<32x128xf32>
    %cst = arith.constant dense<0.000000e+00> : vector<1024x128xf32>
    %2 = tpu.matmul %0, %1, %cst {dimension_numbers = #tpu.dot_dimension_numbers<[1], [0], [0], [1], [0, 0, 1, 1], [], []>} : vector<1024x32xf32>, vector<32x128xf32>, vector<1024x128xf32> -> vector<1024x128xf32>
    %3 = vector.extract_strided_slice %2 {offsets = [0, 0], sizes = [256, 128], strides = [1, 1]} : vector<1024x128xf32> to vector<256x128xf32>
    %4 = vector.extract_strided_slice %2 {offsets = [256, 0], sizes = [256, 128], strides = [1, 1]} : vector<1024x128xf32> to vector<256x128xf32>
    %5 = arith.maximumf %3, %4 : vector<256x128xf32>
    %6 = vector.extract_strided_slice %2 {offsets = [512, 0], sizes = [256, 128], strides = [1, 1]} : vector<1024x128xf32> to vector<256x128xf32>
    %7 = vector.extract_strided_slice %2 {offsets = [768, 0], sizes = [256, 128], strides = [1, 1]} : vector<1024x128xf32> to vector<256x128xf32>
    %8 = arith.maximumf %6, %7 : vector<256x128xf32>
    %9 = arith.maximumf %5, %8 : vector<256x128xf32>
    %c0_3 = arith.constant 0 : index
    %c0_4 = arith.constant 0 : index
    %10 = vector.load %arg3[%c0_3, %c0_4] : memref<1x128xf32, #tpu.memory_space<vmem>>, vector<1x128xf32>
    %11 = vector.broadcast %10 : vector<1x128xf32> to vector<256x128xf32>
    %12 = arith.addf %9, %11 : vector<256x128xf32>
    %cst_5 = arith.constant 0.000000e+00 : f32
    %13 = vector.broadcast %cst_5 : f32 to vector<256x128xf32>
    %14 = arith.maximumf %12, %13 : vector<256x128xf32>
    %15 = vector.extract_strided_slice %14 {offsets = [0, 0], sizes = [256, 8], strides = [1, 1]} : vector<256x128xf32> to vector<256x8xf32>
    %c0_6 = arith.constant 0 : index
    %c0_7 = arith.constant 0 : index
    %16 = vector.load %arg7[%c0_6, %c0_7] : memref<256x8xf32, #tpu.memory_space<vmem>>, vector<256x8xf32>
    tpu.vector_store %arg7[%c0_6, %c0_7], %15 {strides = array<i32>} : memref<256x8xf32, #tpu.memory_space<vmem>>, vector<256x8xf32>,
    %c0_8 = arith.constant 0 : index
    %c0_9 = arith.constant 0 : index
    %17 = vector.load %arg7[%c0_8, %c0_9] : memref<256x8xf32, #tpu.memory_space<vmem>>, vector<144x8xf32>
    %c1 = arith.constant 1 : index
    %c0_10 = arith.constant 0 : index
    %18 = vector.load %arg7[%c1, %c0_10] : memref<256x8xf32, #tpu.memory_space<vmem>>, vector<144x8xf32>
    %c2 = arith.constant 2 : index
    %c0_11 = arith.constant 0 : index
    %19 = vector.load %arg7[%c2, %c0_11] : memref<256x8xf32, #tpu.memory_space<vmem>>, vector<144x8xf32>
    %c3 = arith.constant 3 : index
    %c0_12 = arith.constant 0 : index
    %20 = vector.load %arg7[%c3, %c0_12] : memref<256x8xf32, #tpu.memory_space<vmem>>, vector<144x8xf32>
    %c4 = arith.constant 4 : index
    %c0_13 = arith.constant 0 : index
    %21 = vector.load %arg7[%c4, %c0_13] : memref<256x8xf32, #tpu.memory_space<vmem>>, vector<144x8xf32>
    %c14 = arith.constant 14 : index
    %c0_14 = arith.constant 0 : index
    %22 = vector.load %arg7[%c14, %c0_14] : memref<256x8xf32, #tpu.memory_space<vmem>>, vector<144x8xf32>
    %c15 = arith.constant 15 : index
    %c0_15 = arith.constant 0 : index
    %23 = vector.load %arg7[%c15, %c0_15] : memref<256x8xf32, #tpu.memory_space<vmem>>, vector<144x8xf32>
    %c16 = arith.constant 16 : index
    %c0_16 = arith.constant 0 : index
    %24 = vector.load %arg7[%c16, %c0_16] : memref<256x8xf32, #tpu.memory_space<vmem>>, vector<144x8xf32>
    %c17 = arith.constant 17 : index
    %c0_17 = arith.constant 0 : index
    %25 = vector.load %arg7[%c17, %c0_17] : memref<256x8xf32, #tpu.memory_space<vmem>>, vector<144x8xf32>
    %c18 = arith.constant 18 : index
    %c0_18 = arith.constant 0 : index
    %26 = vector.load %arg7[%c18, %c0_18] : memref<256x8xf32, #tpu.memory_space<vmem>>, vector<144x8xf32>
    %c28 = arith.constant 28 : index
    %c0_19 = arith.constant 0 : index
    %27 = vector.load %arg7[%c28, %c0_19] : memref<256x8xf32, #tpu.memory_space<vmem>>, vector<144x8xf32>
    %c29 = arith.constant 29 : index
    %c0_20 = arith.constant 0 : index
    %28 = vector.load %arg7[%c29, %c0_20] : memref<256x8xf32, #tpu.memory_space<vmem>>, vector<144x8xf32>
    %c30 = arith.constant 30 : index
    %c0_21 = arith.constant 0 : index
    %29 = vector.load %arg7[%c30, %c0_21] : memref<256x8xf32, #tpu.memory_space<vmem>>, vector<144x8xf32>
    %c31 = arith.constant 31 : index
    %c0_22 = arith.constant 0 : index
    %30 = vector.load %arg7[%c31, %c0_22] : memref<256x8xf32, #tpu.memory_space<vmem>>, vector<144x8xf32>
    %c32 = arith.constant 32 : index
    %c0_23 = arith.constant 0 : index
    %31 = vector.load %arg7[%c32, %c0_23] : memref<256x8xf32, #tpu.memory_space<vmem>>, vector<144x8xf32>
    %c42 = arith.constant 42 : index
    %c0_24 = arith.constant 0 : index
    %32 = vector.load %arg7[%c42, %c0_24] : memref<256x8xf32, #tpu.memory_space<vmem>>, vector<144x8xf32>
    %c43 = arith.constant 43 : index
    %c0_25 = arith.constant 0 : index
    %33 = vector.load %arg7[%c43, %c0_25] : memref<256x8xf32, #tpu.memory_space<vmem>>, vector<144x8xf32>
    %c44 = arith.constant 44 : index
    %c0_26 = arith.constant 0 : index
    %34 = vector.load %arg7[%c44, %c0_26] : memref<256x8xf32, #tpu.memory_space<vmem>>, vector<144x8xf32>
    %c45 = arith.constant 45 : index
    %c0_27 = arith.constant 0 : index
    %35 = vector.load %arg7[%c45, %c0_27] : memref<256x8xf32, #tpu.memory_space<vmem>>, vector<144x8xf32>
    %c46 = arith.constant 46 : index
    %c0_28 = arith.constant 0 : index
    %36 = vector.load %arg7[%c46, %c0_28] : memref<256x8xf32, #tpu.memory_space<vmem>>, vector<144x8xf32>
    %c56 = arith.constant 56 : index
    %c0_29 = arith.constant 0 : index
    %37 = vector.load %arg7[%c56, %c0_29] : memref<256x8xf32, #tpu.memory_space<vmem>>, vector<144x8xf32>
    %c57 = arith.constant 57 : index
    %c0_30 = arith.constant 0 : index
    %38 = vector.load %arg7[%c57, %c0_30] : memref<256x8xf32, #tpu.memory_space<vmem>>, vector<144x8xf32>
    %c58 = arith.constant 58 : index
    %c0_31 = arith.constant 0 : index
    %39 = vector.load %arg7[%c58, %c0_31] : memref<256x8xf32, #tpu.memory_space<vmem>>, vector<144x8xf32>
    %c59 = arith.constant 59 : index
    %c0_32 = arith.constant 0 : index
    %40 = vector.load %arg7[%c59, %c0_32] : memref<256x8xf32, #tpu.memory_space<vmem>>, vector<144x8xf32>
    %c60 = arith.constant 60 : index
    %c0_33 = arith.constant 0 : index
    %41 = vector.load %arg7[%c60, %c0_33] : memref<256x8xf32, #tpu.memory_space<vmem>>, vector<144x8xf32>
    %42 = tpu.concatenate %17, %18, %19, %20, %21, %22, %23, %24, %25, %26, %27, %28, %29, %30, %31, %32 in 1 : vector<144x8xf32>, vector<144x8xf32>, vector<144x8xf32>, vector<144x8xf32>, vector<144x8xf32>, vector<144x8xf32>, vector<144x8xf32>, vector<144x8xf32>, vector<144x8xf32>, vector<144x8xf32>, vector<144x8xf32>, vector<144x8xf32>, vector<144x8xf32>, vector<144x8xf32>, vector<144x8xf32>, vector<144x8xf32> -> vector<144x128xf32>
    %43 = tpu.concatenate %33, %34, %35, %36, %37, %38, %39, %40, %41 in 1 : vector<144x8xf32>, vector<144x8xf32>, vector<144x8xf32>, vector<144x8xf32>, vector<144x8xf32>, vector<144x8xf32>, vector<144x8xf32>, vector<144x8xf32>, vector<144x8xf32> -> vector<144x72xf32>
    %44 = tpu.concatenate %42, %43 in 1 : vector<144x128xf32>, vector<144x72xf32> -> vector<144x200xf32>
    %c0_34 = arith.constant 0 : index
    %c0_35 = arith.constant 0 : index
    %45 = vector.load %arg4[%c0_34, %c0_35] : memref<200x128xf32, #tpu.memory_space<vmem>>, vector<200x128xf32>
    %cst_36 = arith.constant dense<0.000000e+00> : vector<144x128xf32>
    %46 = tpu.matmul %44, %45, %cst_36 {dimension_numbers = #tpu.dot_dimension_numbers<[1], [0], [0], [1], [0, 0, 1, 1], [], []>} : vector<144x200xf32>, vector<200x128xf32>, vector<144x128xf32> -> vector<144x128xf32>
    %c0_37 = arith.constant 0 : index
    %c0_38 = arith.constant 0 : index
    %47 = vector.load %arg5[%c0_37, %c0_38] : memref<1x128xf32, #tpu.memory_space<vmem>>, vector<1x128xf32>
    %48 = vector.broadcast %47 : vector<1x128xf32> to vector<144x128xf32>
    %49 = arith.addf %46, %48 : vector<144x128xf32>
    %cst_39 = arith.constant 0.000000e+00 : f32
    %50 = vector.broadcast %cst_39 : f32 to vector<144x128xf32>
    %51 = arith.maximumf %49, %50 : vector<144x128xf32>
    %c0_40 = arith.constant 0 : index
    %c0_41 = arith.constant 0 : index
    %52 = vector.load %arg8[%c0_40, %c0_41] : memref<144x128xf32, #tpu.memory_space<vmem>>, vector<144x128xf32>
    tpu.vector_store %arg8[%c0_40, %c0_41], %51 {strides = array<i32>} : memref<144x128xf32, #tpu.memory_space<vmem>>, vector<144x128xf32>,
    %c0_42 = arith.constant 0 : index
    %c0_43 = arith.constant 0 : index
    %53 = tpu.strided_load %arg8[%c0_42, %c0_43] {strides = array<i32: 2, 1>} : memref<144x128xf32, #tpu.memory_space<vmem>>, vector<5x128xf32>
    %c1_44 = arith.constant 1 : index
    %c0_45 = arith.constant 0 : index
    %54 = tpu.strided_load %arg8[%c1_44, %c0_45] {strides = array<i32: 2, 1>} : memref<144x128xf32, #tpu.memory_space<vmem>>, vector<5x128xf32>
    %c14_46 = arith.constant 14 : index
    %c0_47 = arith.constant 0 : index
    %55 = tpu.strided_load %arg8[%c14_46, %c0_47] {strides = array<i32: 2, 1>} : memref<144x128xf32, #tpu.memory_space<vmem>>, vector<5x128xf32>
    %c15_48 = arith.constant 15 : index
    %c0_49 = arith.constant 0 : index
    %56 = tpu.strided_load %arg8[%c15_48, %c0_49] {strides = array<i32: 2, 1>} : memref<144x128xf32, #tpu.memory_space<vmem>>, vector<5x128xf32>
    %57 = arith.maximumf %53, %54 : vector<5x128xf32>
    %58 = arith.maximumf %55, %56 : vector<5x128xf32>
    %59 = arith.maximumf %57, %58 : vector<5x128xf32>
    %60 = vector.extract_strided_slice %59 {offsets = [0, 0], sizes = [5, 16], strides = [1, 1]} : vector<5x128xf32> to vector<5x16xf32>
    %c0_50 = arith.constant 0 : index
    %c0_51 = arith.constant 0 : index
    %c0_52 = arith.constant 0 : index
    %61 = vector.load %arg6[%c0_50, %c0_51, %c0_52] : memref<1x25x16xf32, #tpu.memory_space<vmem>>, vector<1x5x16xf32>
    %62 = vector.shape_cast %61 : vector<1x5x16xf32> to vector<5x16xf32>
    %63 = vector.shape_cast %60 : vector<5x16xf32> to vector<1x5x16xf32>
    tpu.vector_store %arg6[%c0_50, %c0_51, %c0_52], %63 {strides = array<i32>} : memref<1x25x16xf32, #tpu.memory_space<vmem>>, vector<1x5x16xf32>,
    %c28_53 = arith.constant 28 : index
    %c0_54 = arith.constant 0 : index
    %64 = tpu.strided_load %arg8[%c28_53, %c0_54] {strides = array<i32: 2, 1>} : memref<144x128xf32, #tpu.memory_space<vmem>>, vector<5x128xf32>
    %c29_55 = arith.constant 29 : index
    %c0_56 = arith.constant 0 : index
    %65 = tpu.strided_load %arg8[%c29_55, %c0_56] {strides = array<i32: 2, 1>} : memref<144x128xf32, #tpu.memory_space<vmem>>, vector<5x128xf32>
    %c42_57 = arith.constant 42 : index
    %c0_58 = arith.constant 0 : index
    %66 = tpu.strided_load %arg8[%c42_57, %c0_58] {strides = array<i32: 2, 1>} : memref<144x128xf32, #tpu.memory_space<vmem>>, vector<5x128xf32>
    %c43_59 = arith.constant 43 : index
    %c0_60 = arith.constant 0 : index
    %67 = tpu.strided_load %arg8[%c43_59, %c0_60] {strides = array<i32: 2, 1>} : memref<144x128xf32, #tpu.memory_space<vmem>>, vector<5x128xf32>
    %68 = arith.maximumf %64, %65 : vector<5x128xf32>
    %69 = arith.maximumf %66, %67 : vector<5x128xf32>
    %70 = arith.maximumf %68, %69 : vector<5x128xf32>
    %71 = vector.extract_strided_slice %70 {offsets = [0, 0], sizes = [5, 16], strides = [1, 1]} : vector<5x128xf32> to vector<5x16xf32>
    %c0_61 = arith.constant 0 : index
    %c5 = arith.constant 5 : index
    %c0_62 = arith.constant 0 : index
    %72 = vector.load %arg6[%c0_61, %c5, %c0_62] : memref<1x25x16xf32, #tpu.memory_space<vmem>>, vector<1x5x16xf32>
    %73 = vector.shape_cast %72 : vector<1x5x16xf32> to vector<5x16xf32>
    %74 = vector.shape_cast %71 : vector<5x16xf32> to vector<1x5x16xf32>
    tpu.vector_store %arg6[%c0_61, %c5, %c0_62], %74 {strides = array<i32>} : memref<1x25x16xf32, #tpu.memory_space<vmem>>, vector<1x5x16xf32>,
    %c56_63 = arith.constant 56 : index
    %c0_64 = arith.constant 0 : index
    %75 = tpu.strided_load %arg8[%c56_63, %c0_64] {strides = array<i32: 2, 1>} : memref<144x128xf32, #tpu.memory_space<vmem>>, vector<5x128xf32>
    %c57_65 = arith.constant 57 : index
    %c0_66 = arith.constant 0 : index
    %76 = tpu.strided_load %arg8[%c57_65, %c0_66] {strides = array<i32: 2, 1>} : memref<144x128xf32, #tpu.memory_space<vmem>>, vector<5x128xf32>
    %c70 = arith.constant 70 : index
    %c0_67 = arith.constant 0 : index
    %77 = tpu.strided_load %arg8[%c70, %c0_67] {strides = array<i32: 2, 1>} : memref<144x128xf32, #tpu.memory_space<vmem>>, vector<5x128xf32>
    %c71 = arith.constant 71 : index
    %c0_68 = arith.constant 0 : index
    %78 = tpu.strided_load %arg8[%c71, %c0_68] {strides = array<i32: 2, 1>} : memref<144x128xf32, #tpu.memory_space<vmem>>, vector<5x128xf32>
    %79 = arith.maximumf %75, %76 : vector<5x128xf32>
    %80 = arith.maximumf %77, %78 : vector<5x128xf32>
    %81 = arith.maximumf %79, %80 : vector<5x128xf32>
    %82 = vector.extract_strided_slice %81 {offsets = [0, 0], sizes = [5, 16], strides = [1, 1]} : vector<5x128xf32> to vector<5x16xf32>
    %c0_69 = arith.constant 0 : index
    %c10 = arith.constant 10 : index
    %c0_70 = arith.constant 0 : index
    %83 = vector.load %arg6[%c0_69, %c10, %c0_70] : memref<1x25x16xf32, #tpu.memory_space<vmem>>, vector<1x5x16xf32>
    %84 = vector.shape_cast %83 : vector<1x5x16xf32> to vector<5x16xf32>
    %85 = vector.shape_cast %82 : vector<5x16xf32> to vector<1x5x16xf32>
    tpu.vector_store %arg6[%c0_69, %c10, %c0_70], %85 {strides = array<i32>} : memref<1x25x16xf32, #tpu.memory_space<vmem>>, vector<1x5x16xf32>,
    %c84 = arith.constant 84 : index
    %c0_71 = arith.constant 0 : index
    %86 = tpu.strided_load %arg8[%c84, %c0_71] {strides = array<i32: 2, 1>} : memref<144x128xf32, #tpu.memory_space<vmem>>, vector<5x128xf32>
    %c85 = arith.constant 85 : index
    %c0_72 = arith.constant 0 : index
    %87 = tpu.strided_load %arg8[%c85, %c0_72] {strides = array<i32: 2, 1>} : memref<144x128xf32, #tpu.memory_space<vmem>>, vector<5x128xf32>
    %c98 = arith.constant 98 : index
    %c0_73 = arith.constant 0 : index
    %88 = tpu.strided_load %arg8[%c98, %c0_73] {strides = array<i32: 2, 1>} : memref<144x128xf32, #tpu.memory_space<vmem>>, vector<5x128xf32>
    %c99 = arith.constant 99 : index
    %c0_74 = arith.constant 0 : index
    %89 = tpu.strided_load %arg8[%c99, %c0_74] {strides = array<i32: 2, 1>} : memref<144x128xf32, #tpu.memory_space<vmem>>, vector<5x128xf32>
    %90 = arith.maximumf %86, %87 : vector<5x128xf32>
    %91 = arith.maximumf %88, %89 : vector<5x128xf32>
    %92 = arith.maximumf %90, %91 : vector<5x128xf32>
    %93 = vector.extract_strided_slice %92 {offsets = [0, 0], sizes = [5, 16], strides = [1, 1]} : vector<5x128xf32> to vector<5x16xf32>
    %c0_75 = arith.constant 0 : index
    %c15_76 = arith.constant 15 : index
    %c0_77 = arith.constant 0 : index
    %94 = vector.load %arg6[%c0_75, %c15_76, %c0_77] : memref<1x25x16xf32, #tpu.memory_space<vmem>>, vector<1x5x16xf32>
    %95 = vector.shape_cast %94 : vector<1x5x16xf32> to vector<5x16xf32>
    %96 = vector.shape_cast %93 : vector<5x16xf32> to vector<1x5x16xf32>
    tpu.vector_store %arg6[%c0_75, %c15_76, %c0_77], %96 {strides = array<i32>} : memref<1x25x16xf32, #tpu.memory_space<vmem>>, vector<1x5x16xf32>,
    %c112 = arith.constant 112 : index
    %c0_78 = arith.constant 0 : index
    %97 = tpu.strided_load %arg8[%c112, %c0_78] {strides = array<i32: 2, 1>} : memref<144x128xf32, #tpu.memory_space<vmem>>, vector<5x128xf32>
    %c113 = arith.constant 113 : index
    %c0_79 = arith.constant 0 : index
    %98 = tpu.strided_load %arg8[%c113, %c0_79] {strides = array<i32: 2, 1>} : memref<144x128xf32, #tpu.memory_space<vmem>>, vector<5x128xf32>
    %c126 = arith.constant 126 : index
    %c0_80 = arith.constant 0 : index
    %99 = tpu.strided_load %arg8[%c126, %c0_80] {strides = array<i32: 2, 1>} : memref<144x128xf32, #tpu.memory_space<vmem>>, vector<5x128xf32>
    %c127 = arith.constant 127 : index
    %c0_81 = arith.constant 0 : index
    %100 = tpu.strided_load %arg8[%c127, %c0_81] {strides = array<i32: 2, 1>} : memref<144x128xf32, #tpu.memory_space<vmem>>, vector<5x128xf32>
    %101 = arith.maximumf %97, %98 : vector<5x128xf32>
    %102 = arith.maximumf %99, %100 : vector<5x128xf32>
    %103 = arith.maximumf %101, %102 : vector<5x128xf32>
    %104 = vector.extract_strided_slice %103 {offsets = [0, 0], sizes = [5, 16], strides = [1, 1]} : vector<5x128xf32> to vector<5x16xf32>
    %c0_82 = arith.constant 0 : index
    %c20 = arith.constant 20 : index
    %c0_83 = arith.constant 0 : index
    %105 = vector.load %arg6[%c0_82, %c20, %c0_83] : memref<1x25x16xf32, #tpu.memory_space<vmem>>, vector<1x5x16xf32>
    %106 = vector.shape_cast %105 : vector<1x5x16xf32> to vector<5x16xf32>
    %107 = vector.shape_cast %104 : vector<5x16xf32> to vector<1x5x16xf32>
    tpu.vector_store %arg6[%c0_82, %c20, %c0_83], %107 {strides = array<i32>} : memref<1x25x16xf32, #tpu.memory_space<vmem>>, vector<1x5x16xf32>,
    return
  }
  func.func @transform_0(%arg0: i32) -> (i32, i32) {
    %c0_i32 = arith.constant 0 : i32
    %c0_i32_0 = arith.constant 0 : i32
    return %arg0, %c0_i32 : i32, i32
  }
  func.func @transform_1(%arg0: i32) -> (i32, i32) {
    %c0_i32 = arith.constant 0 : i32
    %c0_i32_0 = arith.constant 0 : i32
    %c0_i32_1 = arith.constant 0 : i32
    return %c0_i32, %c0_i32_0 : i32, i32
  }
  func.func @transform_2(%arg0: i32) -> (i32, i32) {
    %c0_i32 = arith.constant 0 : i32
    %c0_i32_0 = arith.constant 0 : i32
    %c0_i32_1 = arith.constant 0 : i32
    return %c0_i32, %c0_i32_0 : i32, i32
  }
  func.func @transform_3(%arg0: i32) -> (i32, i32) {
    %c0_i32 = arith.constant 0 : i32
    %c0_i32_0 = arith.constant 0 : i32
    %c0_i32_1 = arith.constant 0 : i32
    return %c0_i32, %c0_i32_0 : i32, i32
  }
  func.func @transform_4(%arg0: i32) -> (i32, i32) {
    %c0_i32 = arith.constant 0 : i32
    %c0_i32_0 = arith.constant 0 : i32
    %c0_i32_1 = arith.constant 0 : i32
    return %c0_i32, %c0_i32_0 : i32, i32
  }
  func.func @transform_5(%arg0: i32) -> (i32, i32, i32) {
    %c0_i32 = arith.constant 0 : i32
    %c0_i32_0 = arith.constant 0 : i32
    %c0_i32_1 = arith.constant 0 : i32
    return %arg0, %c0_i32, %c0_i32_0 : i32, i32, i32
  }
}

module attributes {stable_mosaic.version = 11 : i64} {
  func.func @_fc_fused_kernel(%arg0: i32, %arg1: memref<16x400xf32, #tpu.memory_space<vmem>>, %arg2: memref<400x128xf32, #tpu.memory_space<vmem>>, %arg3: memref<1x128xf32, #tpu.memory_space<vmem>>, %arg4: memref<128x128xf32, #tpu.memory_space<vmem>>, %arg5: memref<1x128xf32, #tpu.memory_space<vmem>>, %arg6: memref<128x128xf32, #tpu.memory_space<vmem>>, %arg7: memref<1x128xf32, #tpu.memory_space<vmem>>, %arg8: memref<16x128xf32, #tpu.memory_space<vmem>>) attributes {dimension_semantics = [#tpu.dimension_semantics<parallel>], iteration_bounds = array<i64: 2>, scalar_prefetch = 0 : i64, scratch_operands = 0 : i64, tpu.core_type = #tpu.core_type<tc>, window_params = [{transform_indices = @transform_0, window_bounds = array<i64: 16, 400>}, {pipeline_mode = #tpu.pipeline_mode<synchronous>, transform_indices = @transform_1, window_bounds = array<i64: 400, 128>}, {pipeline_mode = #tpu.pipeline_mode<synchronous>, transform_indices = @transform_2, window_bounds = array<i64: 1, 128>}, {pipeline_mode = #tpu.pipeline_mode<synchronous>, transform_indices = @transform_3, window_bounds = array<i64: 128, 128>}, {pipeline_mode = #tpu.pipeline_mode<synchronous>, transform_indices = @transform_4, window_bounds = array<i64: 1, 128>}, {pipeline_mode = #tpu.pipeline_mode<synchronous>, transform_indices = @transform_5, window_bounds = array<i64: 128, 128>}, {pipeline_mode = #tpu.pipeline_mode<synchronous>, transform_indices = @transform_6, window_bounds = array<i64: 1, 128>}, {transform_indices = @transform_7, window_bounds = array<i64: 16, 128>}]} {
    %c0 = arith.constant 0 : index
    %c0_0 = arith.constant 0 : index
    %0 = vector.load %arg1[%c0, %c0_0] : memref<16x400xf32, #tpu.memory_space<vmem>>, vector<16x400xf32>
    %c0_1 = arith.constant 0 : index
    %c0_2 = arith.constant 0 : index
    %1 = vector.load %arg2[%c0_1, %c0_2] : memref<400x128xf32, #tpu.memory_space<vmem>>, vector<400x128xf32>
    %cst = arith.constant dense<0.000000e+00> : vector<16x128xf32>
    %2 = tpu.matmul %0, %1, %cst {dimension_numbers = #tpu.dot_dimension_numbers<[1], [0], [0], [1], [0, 0, 1, 1], [], []>} : vector<16x400xf32>, vector<400x128xf32>, vector<16x128xf32> -> vector<16x128xf32>
    %c0_3 = arith.constant 0 : index
    %c0_4 = arith.constant 0 : index
    %3 = vector.load %arg3[%c0_3, %c0_4] : memref<1x128xf32, #tpu.memory_space<vmem>>, vector<1x128xf32>
    %4 = vector.broadcast %3 : vector<1x128xf32> to vector<16x128xf32>
    %5 = arith.addf %2, %4 : vector<16x128xf32>
    %cst_5 = arith.constant 0.000000e+00 : f32
    %6 = vector.broadcast %cst_5 : f32 to vector<16x128xf32>
    %7 = arith.maximumf %5, %6 : vector<16x128xf32>
    %c0_6 = arith.constant 0 : index
    %c0_7 = arith.constant 0 : index
    %8 = vector.load %arg4[%c0_6, %c0_7] : memref<128x128xf32, #tpu.memory_space<vmem>>, vector<128x128xf32>
    %cst_8 = arith.constant dense<0.000000e+00> : vector<16x128xf32>
    %9 = tpu.matmul %7, %8, %cst_8 {dimension_numbers = #tpu.dot_dimension_numbers<[1], [0], [0], [1], [0, 0, 1, 1], [], []>} : vector<16x128xf32>, vector<128x128xf32>, vector<16x128xf32> -> vector<16x128xf32>
    %c0_9 = arith.constant 0 : index
    %c0_10 = arith.constant 0 : index
    %10 = vector.load %arg5[%c0_9, %c0_10] : memref<1x128xf32, #tpu.memory_space<vmem>>, vector<1x128xf32>
    %11 = vector.broadcast %10 : vector<1x128xf32> to vector<16x128xf32>
    %12 = arith.addf %9, %11 : vector<16x128xf32>
    %cst_11 = arith.constant 0.000000e+00 : f32
    %13 = vector.broadcast %cst_11 : f32 to vector<16x128xf32>
    %14 = arith.maximumf %12, %13 : vector<16x128xf32>
    %c0_12 = arith.constant 0 : index
    %c0_13 = arith.constant 0 : index
    %15 = vector.load %arg6[%c0_12, %c0_13] : memref<128x128xf32, #tpu.memory_space<vmem>>, vector<128x128xf32>
    %cst_14 = arith.constant dense<0.000000e+00> : vector<16x128xf32>
    %16 = tpu.matmul %14, %15, %cst_14 {dimension_numbers = #tpu.dot_dimension_numbers<[1], [0], [0], [1], [0, 0, 1, 1], [], []>} : vector<16x128xf32>, vector<128x128xf32>, vector<16x128xf32> -> vector<16x128xf32>
    %c0_15 = arith.constant 0 : index
    %c0_16 = arith.constant 0 : index
    %17 = vector.load %arg7[%c0_15, %c0_16] : memref<1x128xf32, #tpu.memory_space<vmem>>, vector<1x128xf32>
    %18 = vector.broadcast %17 : vector<1x128xf32> to vector<16x128xf32>
    %19 = arith.addf %16, %18 : vector<16x128xf32>
    %c0_17 = arith.constant 0 : index
    %c0_18 = arith.constant 0 : index
    %20 = vector.load %arg8[%c0_17, %c0_18] : memref<16x128xf32, #tpu.memory_space<vmem>>, vector<16x128xf32>
    tpu.vector_store %arg8[%c0_17, %c0_18], %19 {strides = array<i32>} : memref<16x128xf32, #tpu.memory_space<vmem>>, vector<16x128xf32>,
    return
  }
  func.func @transform_0(%arg0: i32) -> (i32, i32) {
    %c0_i32 = arith.constant 0 : i32
    %c0_i32_0 = arith.constant 0 : i32
    return %arg0, %c0_i32 : i32, i32
  }
  func.func @transform_1(%arg0: i32) -> (i32, i32) {
    %c0_i32 = arith.constant 0 : i32
    %c0_i32_0 = arith.constant 0 : i32
    %c0_i32_1 = arith.constant 0 : i32
    return %c0_i32, %c0_i32_0 : i32, i32
  }
  func.func @transform_2(%arg0: i32) -> (i32, i32) {
    %c0_i32 = arith.constant 0 : i32
    %c0_i32_0 = arith.constant 0 : i32
    %c0_i32_1 = arith.constant 0 : i32
    return %c0_i32, %c0_i32_0 : i32, i32
  }
  func.func @transform_3(%arg0: i32) -> (i32, i32) {
    %c0_i32 = arith.constant 0 : i32
    %c0_i32_0 = arith.constant 0 : i32
    %c0_i32_1 = arith.constant 0 : i32
    return %c0_i32, %c0_i32_0 : i32, i32
  }
  func.func @transform_4(%arg0: i32) -> (i32, i32) {
    %c0_i32 = arith.constant 0 : i32
    %c0_i32_0 = arith.constant 0 : i32
    %c0_i32_1 = arith.constant 0 : i32
    return %c0_i32, %c0_i32_0 : i32, i32
  }
  func.func @transform_5(%arg0: i32) -> (i32, i32) {
    %c0_i32 = arith.constant 0 : i32
    %c0_i32_0 = arith.constant 0 : i32
    %c0_i32_1 = arith.constant 0 : i32
    return %c0_i32, %c0_i32_0 : i32, i32
  }
  func.func @transform_6(%arg0: i32) -> (i32, i32) {
    %c0_i32 = arith.constant 0 : i32
    %c0_i32_0 = arith.constant 0 : i32
    %c0_i32_1 = arith.constant 0 : i32
    return %c0_i32, %c0_i32_0 : i32, i32
  }
  func.func @transform_7(%arg0: i32) -> (i32, i32) {
    %c0_i32 = arith.constant 0 : i32
    %c0_i32_0 = arith.constant 0 : i32
    return %arg0, %c0_i32 : i32, i32
  }
}

</mosaic_0001>

<llo_original>
// kernel: cnn_forward.3
$region0: #{cnn_forward.3}
  #allocation0 [shape = 'u32[]', space=smem, size = 0x4, offset = 0x4, fixed_abs, tag = 'smem constant byte address 0x4 - core index']
  #allocation1 [shape = 'u32[144,128]{1,0:T(1,128)}', space=vmem, size = 0x12000, scoped, tag = 'internal scratch']
  %s0 = inlined_call_operand.vmem [shape: f32[32,400], index: 0, kind: input, shape index: {}]
  %s1 = inlined_call_operand.vmem [shape: f32[400,128], index: 1, kind: input, shape index: {}]
  %s2 = inlined_call_operand.vmem [shape: f32[1,128], index: 2, kind: input, shape index: {}]
  %s3 = inlined_call_operand.vmem [shape: f32[128,128], index: 3, kind: input, shape index: {}]
  %s4 = inlined_call_operand.vmem [shape: f32[1,128], index: 4, kind: input, shape index: {}]
  %s5 = inlined_call_operand.vmem [shape: f32[128,128], index: 5, kind: input, shape index: {}]
  %s6 = inlined_call_operand.vmem [shape: f32[1,128], index: 6, kind: input, shape index: {}]
  %s7 = inlined_call_operand.vmem [shape: f32[32,128], index: 7, kind: output, shape index: {}]
  %s8 = sld [smem:[#allocation0]]
  $region61: #{cnn_forward.3} parent=0
    _
  %s10 = ssub.s32 1, %s8
  %s11 = scalar_select 0, %s10, %s8
  loop: start=0, step=1, limit=4
  $region2: #{cnn_forward.3} parent=0 // loop_pre_header
    _
  $region3: #{cnn_forward.3} parent=0 // loop_header
    %s13 = sphi 0, %s17
    %p14 = scmp.ge.s32.totalorder %s13, 4
    %s23 = sphi 0, %s25
    %s26 = sphi 0, %s23
    %s27 = sphi 0, %s26
    %s43 = sphi 0, %s27
    %s47 = sphi 0, %s47
    %s49 = sphi 0, %s47
    %s50 = sphi 0, %s49
    %s64 = sphi 0, %s50
    %s68 = sphi 0, %s68
    %s70 = sphi 0, %s68
    %s71 = sphi 0, %s70
    %s85 = sphi 0, %s71
    %s89 = sphi 0, %s89
    %s91 = sphi 0, %s89
    %s92 = sphi 0, %s91
    %s106 = sphi 0, %s92
    %s110 = sphi 0, %s110
    %s112 = sphi 0, %s110
    %s113 = sphi 0, %s112
    %s127 = sphi 0, %s113
    %s131 = sphi 0, %s131
    %s133 = sphi 0, %s131
    %s134 = sphi 0, %s133
    %s148 = sphi 0, %s134
    %s152 = sphi 0, %s152
    %s154 = sphi 0, %s152
    %s155 = sphi 0, %s154
    %s169 = sphi 0, %s155
    %s175 = sphi 0, %s177
    %s178 = sphi 0, %s175
    %s179 = sphi 0, %s178
    %s195 = sphi 0, %s179
  $region4: #{cnn_forward.3} parent=0 // loop_header_branch
    %16 = sbr.rel (%p14) target = $region8
  $region5: #{cnn_forward.3} parent=0 // loop_body
    %s18 = ssub.s32 %s13, 1
    %s19 = ssub.s32 %s13, 2
    %s20 = sadd.s32 %s13, 1
    %s21 = ssub.s32 %s13, %s20
    %p22 = scmp.eq.s32.totalorder %s21, 0
    %s24 = sadd.s32 %s23, 1
    %s25 = scalar_select %p22, %s23, %s24
    %p28 = pneg %p22
    %p29 = scmp.eq.s32.totalorder %s13, 1
    %p30 = por %p28, %p29
    %p31 = scmp.ne.s32.totalorder %s23, %s26
    %p32 = scmp.eq.s32.totalorder %s13, 0
    %p33 = por %p31, %p32
    %p34 = scmp.ne.s32.totalorder %s23, %s26
    %p35 = scmp.eq.s32.totalorder %s18, 1
    %p36 = por %p34, %p35
    %p37 = scmp.ne.s32.totalorder %s26, %s27
    %p38 = scmp.eq.s32.totalorder %s18, 0
    %p39 = por %p37, %p38
    %p40 = scmp.ne.s32.totalorder %s26, %s27
    %p41 = scmp.eq.s32.totalorder %s19, 1
    %p42 = por %p40, %p41
    %p44 = scmp.ne.s32.totalorder %s27, %s43
    %p45 = scmp.eq.s32.totalorder %s19, 0
    %p46 = por %p44, %p45
    %s48 = sadd.s32 %s47, 1
    %p51 = scmp.eq.s32.totalorder %s13, 1
    %p52 = scmp.ne.s32.totalorder %s47, %s49
    %p53 = scmp.eq.s32.totalorder %s13, 0
    %p54 = por %p52, %p53
    %p55 = scmp.ne.s32.totalorder %s47, %s49
    %p56 = scmp.eq.s32.totalorder %s18, 1
    %p57 = por %p55, %p56
    %p58 = scmp.ne.s32.totalorder %s49, %s50
    %p59 = scmp.eq.s32.totalorder %s18, 0
    %p60 = por %p58, %p59
    %p61 = scmp.ne.s32.totalorder %s49, %s50
    %p62 = scmp.eq.s32.totalorder %s19, 1
    %p63 = por %p61, %p62
    %p65 = scmp.ne.s32.totalorder %s50, %s64
    %p66 = scmp.eq.s32.totalorder %s19, 0
    %p67 = por %p65, %p66
    %s69 = sadd.s32 %s68, 1
    %p72 = scmp.eq.s32.totalorder %s13, 1
    %p73 = scmp.ne.s32.totalorder %s68, %s70
    %p74 = scmp.eq.s32.totalorder %s13, 0
    %p75 = por %p73, %p74
    %p76 = scmp.ne.s32.totalorder %s68, %s70
    %p77 = scmp.eq.s32.totalorder %s18, 1
    %p78 = por %p76, %p77
    %p79 = scmp.ne.s32.totalorder %s70, %s71
    %p80 = scmp.eq.s32.totalorder %s18, 0
    %p81 = por %p79, %p80
    %p82 = scmp.ne.s32.totalorder %s70, %s71
    %p83 = scmp.eq.s32.totalorder %s19, 1
    %p84 = por %p82, %p83
    %p86 = scmp.ne.s32.totalorder %s71, %s85
    %p87 = scmp.eq.s32.totalorder %s19, 0
    %p88 = por %p86, %p87
    %s90 = sadd.s32 %s89, 1
    %p93 = scmp.eq.s32.totalorder %s13, 1
    %p94 = scmp.ne.s32.totalorder %s89, %s91
    %p95 = scmp.eq.s32.totalorder %s13, 0
    %p96 = por %p94, %p95
    %p97 = scmp.ne.s32.totalorder %s89, %s91
    %p98 = scmp.eq.s32.totalorder %s18, 1
    %p99 = por %p97, %p98
    %p100 = scmp.ne.s32.totalorder %s91, %s92
    %p101 = scmp.eq.s32.totalorder %s18, 0
    %p102 = por %p100, %p101
    %p103 = scmp.ne.s32.totalorder %s91, %s92
    %p104 = scmp.eq.s32.totalorder %s19, 1
    %p105 = por %p103, %p104
    %p107 = scmp.ne.s32.totalorder %s92, %s106
    %p108 = scmp.eq.s32.totalorder %s19, 0
    %p109 = por %p107, %p108
    %s111 = sadd.s32 %s110, 1
    %p114 = scmp.eq.s32.totalorder %s13, 1
    %p115 = scmp.ne.s32.totalorder %s110, %s112
    %p116 = scmp.eq.s32.totalorder %s13, 0
    %p117 = por %p115, %p116
    %p118 = scmp.ne.s32.totalorder %s110, %s112
    %p119 = scmp.eq.s32.totalorder %s18, 1
    %p120 = por %p118, %p119
    %p121 = scmp.ne.s32.totalorder %s112, %s113
    %p122 = scmp.eq.s32.totalorder %s18, 0
    %p123 = por %p121, %p122
    %p124 = scmp.ne.s32.totalorder %s112, %s113
    %p125 = scmp.eq.s32.totalorder %s19, 1
    %p126 = por %p124, %p125
    %p128 = scmp.ne.s32.totalorder %s113, %s127
    %p129 = scmp.eq.s32.totalorder %s19, 0
    %p130 = por %p128, %p129
    %s132 = sadd.s32 %s131, 1
    %p135 = scmp.eq.s32.totalorder %s13, 1
    %p136 = scmp.ne.s32.totalorder %s131, %s133
    %p137 = scmp.eq.s32.totalorder %s13, 0
    %p138 = por %p136, %p137
    %p139 = scmp.ne.s32.totalorder %s131, %s133
    %p140 = scmp.eq.s32.totalorder %s18, 1
    %p141 = por %p139, %p140
    %p142 = scmp.ne.s32.totalorder %s133, %s134
    %p143 = scmp.eq.s32.totalorder %s18, 0
    %p144 = por %p142, %p143
    %p145 = scmp.ne.s32.totalorder %s133, %s134
    %p146 = scmp.eq.s32.totalorder %s19, 1
    %p147 = por %p145, %p146
    %p149 = scmp.ne.s32.totalorder %s134, %s148
    %p150 = scmp.eq.s32.totalorder %s19, 0
    %p151 = por %p149, %p150
    %s153 = sadd.s32 %s152, 1
    %p156 = scmp.eq.s32.totalorder %s13, 1
    %p157 = scmp.ne.s32.totalorder %s152, %s154
    %p158 = scmp.eq.s32.totalorder %s13, 0
    %p159 = por %p157, %p158
    %p160 = scmp.ne.s32.totalorder %s152, %s154
    %p161 = scmp.eq.s32.totalorder %s18, 1
    %p162 = por %p160, %p161
    %p163 = scmp.ne.s32.totalorder %s154, %s155
    %p164 = scmp.eq.s32.totalorder %s18, 0
    %p165 = por %p163, %p164
    %p166 = scmp.ne.s32.totalorder %s154, %s155
    %p167 = scmp.eq.s32.totalorder %s19, 1
    %p168 = por %p166, %p167
    %p170 = scmp.ne.s32.totalorder %s155, %s169
    %p171 = scmp.eq.s32.totalorder %s19, 0
    %p172 = por %p170, %p171
    %s173 = ssub.s32 %s13, %s20
    %p174 = scmp.eq.s32.totalorder %s173, 0
    %s176 = sadd.s32 %s175, 1
    %s177 = scalar_select %p174, %s175, %s176
    %p180 = pneg %p174
    %p181 = scmp.eq.s32.totalorder %s13, 1
    %p182 = por %p180, %p181
    %p183 = scmp.ne.s32.totalorder %s175, %s178
    %p184 = scmp.eq.s32.totalorder %s13, 0
    %p185 = por %p183, %p184
    %p186 = scmp.ne.s32.totalorder %s175, %s178
    %p187 = scmp.eq.s32.totalorder %s18, 1
    %p188 = por %p186, %p187
    %p189 = scmp.ne.s32.totalorder %s178, %s179
    %p190 = scmp.eq.s32.totalorder %s18, 0
    %p191 = por %p189, %p190
    %p192 = scmp.ne.s32.totalorder %s178, %s179
    %p193 = scmp.eq.s32.totalorder %s19, 1
    %p194 = por %p192, %p193
    %p196 = scmp.ne.s32.totalorder %s179, %s195
    %p197 = scmp.eq.s32.totalorder %s19, 0
    %p198 = por %p196, %p197
    %p199 = scmp.le.s32.totalorder 1, %s13
    %p200 = scmp.lt.s32.totalorder %s13, 3
    %p201 = pnand %p199, %p200
    %p202 = pneg %p201
    // Predicated region
    $region9: #{cnn_forward.3} parent=5 // pred_check
      _
    $region10: #{cnn_forward.3} parent=5 // pred_check_branch
      %204 = sbr.rel (%p201) target = $region12
    $region11: #{cnn_forward.3} parent=5 // pred_region
      %s205 = ssub.s32 %s13, 1
      // Predicated region
      $region13: #{cnn_forward.3} parent=11 // pred_check
        %p206 = pneg %p60
      $region14: #{cnn_forward.3} parent=11 // pred_check_branch
        %208 = sbr.rel (%p206) target = $region16
      $region15: #{cnn_forward.3} parent=11 // pred_region
        _
      $region16: #{cnn_forward.3} parent=11 // pred_fallthru
        _
      // Predicated region
      $region17: #{cnn_forward.3} parent=11 // pred_check
        %p209 = pneg %p81
      $region18: #{cnn_forward.3} parent=11 // pred_check_branch
        %211 = sbr.rel (%p209) target = $region20
      $region19: #{cnn_forward.3} parent=11 // pred_region
        _
      $region20: #{cnn_forward.3} parent=11 // pred_fallthru
        _
      // Predicated region
      $region21: #{cnn_forward.3} parent=11 // pred_check
        %p212 = pneg %p102
      $region22: #{cnn_forward.3} parent=11 // pred_check_branch
        %214 = sbr.rel (%p212) target = $region24
      $region23: #{cnn_forward.3} parent=11 // pred_region
        _
      $region24: #{cnn_forward.3} parent=11 // pred_fallthru
        _
      // Predicated region
      $region25: #{cnn_forward.3} parent=11 // pred_check
        %p215 = pneg %p123
      $region26: #{cnn_forward.3} parent=11 // pred_check_branch
        %217 = sbr.rel (%p215) target = $region28
      $region27: #{cnn_forward.3} parent=11 // pred_region
        _
      $region28: #{cnn_forward.3} parent=11 // pred_fallthru
        _
      // Predicated region
      $region29: #{cnn_forward.3} parent=11 // pred_check
        %p218 = pneg %p144
      $region30: #{cnn_forward.3} parent=11 // pred_check_branch
        %220 = sbr.rel (%p218) target = $region32
      $region31: #{cnn_forward.3} parent=11 // pred_region
        _
      $region32: #{cnn_forward.3} parent=11 // pred_fallthru
        _
      // Predicated region
      $region33: #{cnn_forward.3} parent=11 // pred_check
        %p221 = pneg %p165
      $region34: #{cnn_forward.3} parent=11 // pred_check_branch
        %223 = sbr.rel (%p221) target = $region36
      $region35: #{cnn_forward.3} parent=11 // pred_region
        _
      $region36: #{cnn_forward.3} parent=11 // pred_fallthru
        _
    $region12: #{cnn_forward.3} parent=5 // pred_fallthru
      _
    %p224 = scmp.lt.s32.totalorder %s13, 2
    // Predicated region
    $region37: #{cnn_forward.3} parent=5 // pred_check
      %p225 = pneg %p224
    $region38: #{cnn_forward.3} parent=5 // pred_check_branch
      %227 = sbr.rel (%p225) target = $region40
    $region39: #{cnn_forward.3} parent=5 // pred_region
      // Predicated region
      $region41: #{cnn_forward.3} parent=39 // pred_check
        %p228 = pneg %p33
      $region42: #{cnn_forward.3} parent=39 // pred_check_branch
        %230 = sbr.rel (%p228) target = $region44
      $region43: #{cnn_forward.3} parent=39 // pred_region
        %s231 = smul.u32 2, %s13
        %p232 = scmp.lt.s32.totalorder %s231, 3
        %s233 = scalar_select %p232, %s231, 3
        %s234 = smul.addr %s233, 4
        %s235 = smul.addr %s234, 8
        %s236 = scalar_lea.vmem %s0, %s235
        %s237 = smul.u32 2, %s13
      $region44: #{cnn_forward.3} parent=39 // pred_fallthru
        _
    $region40: #{cnn_forward.3} parent=5 // pred_fallthru
      _
    %p238 = scmp.le.s32.totalorder 1, %s13
    %p239 = scmp.lt.s32.totalorder %s13, 3
    %p240 = pnand %p238, %p239
    %p241 = pneg %p240
    // Predicated region
    $region45: #{cnn_forward.3} parent=5 // pred_check
      _
    $region46: #{cnn_forward.3} parent=5 // pred_check_branch
      %243 = sbr.rel (%p240) target = $region48
    $region47: #{cnn_forward.3} parent=5 // pred_region
      %s244 = ssub.s32 %s13, 1
      %s245 = smul.u32 2, %s18
      %p246 = scmp.lt.s32.totalorder %s245, 3
      %s247 = scalar_select %p246, %s245, 3
      %s248 = smul.addr %s247, 4
      %s249 = smul.addr %s248, 8
      %s250 = scalar_lea.vmem %s0, %s249
      %p251 = pneg %p39
      %p252 = pneg %p36
      %p253 = pneg %p60
      %p254 = pneg %p57
      %p255 = pneg %p81
      %p256 = pneg %p78
      %p257 = pneg %p102
      %p258 = pneg %p99
      %p259 = pneg %p123
      %p260 = pneg %p120
      %p261 = pneg %p144
      %p262 = pneg %p141
      %p263 = pneg %p165
      %p264 = pneg %p162
      %p265 = pneg %p191
      %p266 = pneg %p188
      %s267 = smul.u32 2, %s18
      %p268 = scmp.lt.s32.totalorder %s267, 3
      %s269 = scalar_select %p268, %s267, 3
      %s270 = smul.addr %s269, 8
      %s271 = scalar_lea.vmem %s7, %s270
      %s272 = smul.u32 2, %s18
      %p273 = scmp.lt.s32.totalorder %s272, 3
      %s274 = scalar_select %p273, %s272, 3
      %s275 = smul.addr %s274, 4
      %s276 = smul.addr %s275, 8
      %s277 = scalar_lea.vmem %s0, %s276
      %s278 = smul.u32 2, %s18
      %s279 = smul.u32 2, %s18
      %p280 = scmp.lt.s32.totalorder %s279, 3
      %s281 = scalar_select %p280, %s279, 3
      %s282 = smul.addr %s281, 8
      %s283 = scalar_lea.vmem %s7, %s282
      %s284 = smul.u32 2, %s18
      %v285 = vld [vmem:[%s277] sm:$0xff]
      %v286 = vld [vmem:[%s277 + $0x8] sm:$0xff]
      %v287 = vld [vmem:[%s277 + $0x10] sm:$0xff]
      %v288 = vld [vmem:[%s277 + $0x18] sm:$0xff]
      %v289 = vld [vmem:[%s277 + $0x20] sm:$0xff]
      %v290 = vld [vmem:[%s277 + $0x28] sm:$0xff]
      %v291 = vld [vmem:[%s277 + $0x30] sm:$0xff]
      %v292 = vld [vmem:[%s277 + $0x38] sm:$0xff]
      %v293 = vld [vmem:[%s1] sm:$0xff]
      %v294 = vld [vmem:[%s1 + $0x8] sm:$0xff]
      %v295 = vld [vmem:[%s1 + $0x10] sm:$0xff]
      %v296 = vld [vmem:[%s1 + $0x18] sm:$0xff]
      %v297 = vld [vmem:[%s1 + $0x20] sm:$0xff]
      %v298 = vld [vmem:[%s1 + $0x28] sm:$0xff]
      %v299 = vld [vmem:[%s1 + $0x30] sm:$0xff]
      %v300 = vld [vmem:[%s1 + $0x38] sm:$0xff]
      %v301 = vld [vmem:[%s1 + $0x40] sm:$0xff]
      %v302 = vld [vmem:[%s1 + $0x48] sm:$0xff]
      %v303 = vld [vmem:[%s1 + $0x50] sm:$0xff]
      %v304 = vld [vmem:[%s1 + $0x58] sm:$0xff]
      %v305 = vld [vmem:[%s1 + $0x60] sm:$0xff]
      %v306 = vld [vmem:[%s1 + $0x68] sm:$0xff]
      %v307 = vld [vmem:[%s1 + $0x70] sm:$0xff]
      %v308 = vld [vmem:[%s1 + $0x78] sm:$0xff]
      %v309 = vld [vmem:[%s1 + $0x80] sm:$0xff]
      %v310 = vld [vmem:[%s1 + $0x88] sm:$0xff]
      %v311 = vld [vmem:[%s1 + $0x90] sm:$0xff]
      %v312 = vld [vmem:[%s1 + $0x98] sm:$0xff]
      %v313 = vld [vmem:[%s1 + $0xa0] sm:$0xff]
      %v314 = vld [vmem:[%s1 + $0xa8] sm:$0xff]
      %v315 = vld [vmem:[%s1 + $0xb0] sm:$0xff]
      %v316 = vld [vmem:[%s1 + $0xb8] sm:$0xff]
      %v317 = vld [vmem:[%s1 + $0xc0] sm:$0xff]
      %v318 = vld [vmem:[%s1 + $0xc8] sm:$0xff]
      %v319 = vld [vmem:[%s1 + $0xd0] sm:$0xff]
      %v320 = vld [vmem:[%s1 + $0xd8] sm:$0xff]
      %v321 = vld [vmem:[%s1 + $0xe0] sm:$0xff]
      %v322 = vld [vmem:[%s1 + $0xe8] sm:$0xff]
      %v323 = vld [vmem:[%s1 + $0xf0] sm:$0xff]
      %v324 = vld [vmem:[%s1 + $0xf8] sm:$0xff]
      %v325 = vld [vmem:[%s1 + $0x100] sm:$0xff]
      %v326 = vld [vmem:[%s1 + $0x108] sm:$0xff]
      %v327 = vld [vmem:[%s1 + $0x110] sm:$0xff]
      %v328 = vld [vmem:[%s1 + $0x118] sm:$0xff]
      %v329 = vld [vmem:[%s1 + $0x120] sm:$0xff]
      %v330 = vld [vmem:[%s1 + $0x128] sm:$0xff]
      %v331 = vld [vmem:[%s1 + $0x130] sm:$0xff]
      %v332 = vld [vmem:[%s1 + $0x138] sm:$0xff]
      %v333 = vld [vmem:[%s1 + $0x140] sm:$0xff]
      %v334 = vld [vmem:[%s1 + $0x148] sm:$0xff]
      %v335 = vld [vmem:[%s1 + $0x150] sm:$0xff]
      %v336 = vld [vmem:[%s1 + $0x158] sm:$0xff]
      %v337 = vld [vmem:[%s1 + $0x160] sm:$0xff]
      %v338 = vld [vmem:[%s1 + $0x168] sm:$0xff]
      %v339 = vld [vmem:[%s1 + $0x170] sm:$0xff]
      %v340 = vld [vmem:[%s1 + $0x178] sm:$0xff]
      %v341 = vld [vmem:[%s1 + $0x180] sm:$0xff]
      %v342 = vld [vmem:[%s1 + $0x188] sm:$0xff]
      %v343 = vld [vmem:[%s2] sm:$0x1]
      %v345 = vlaneseq
      %v346 = vshrl.u32 %v345, 7
      %v347 = vsub.s32 0, %v346
      %v348 = vrot.slane %v343, %v347
      %vm350 = vcmask 130048
      %v352 = vsel %vm350, %v288, 0
      %v355 = vsel %vm350, %v292, 0
      %357 = vmatprep.subr.mxu0 0.0
      %358 = vmatpush1.msra.mxu0 %v293
      %359 = vmatprep.subr.mxu0 0.0
      %360 = vmatpush1.msra.mxu0 %v294
      %361 = vmatprep.subr.mxu0 0.0
      %362 = vmatpush1.msra.mxu0 %v295
      %363 = vmatprep.subr.mxu0 0.0
      %364 = vmatpush1.msra.mxu0 %v296
      %365 = vmatprep.subr.mxu0 0.0
      %366 = vmatpush1.msra.mxu0 %v297
      %367 = vmatprep.subr.mxu0 0.0
      %368 = vmatpush1.msra.mxu0 %v298
      %369 = vmatprep.subr.mxu0 0.0
      %370 = vmatpush1.msra.mxu0 %v299
      %371 = vmatprep.subr.mxu0 0.0
      %372 = vmatpush1.msra.mxu0 %v300
      %373 = vmatprep.subr.mxu0 0.0
      %374 = vmatpush1.msra.mxu0 %v301
      %375 = vmatprep.subr.mxu0 0.0
      %376 = vmatpush1.msra.mxu0 %v302
      %377 = vmatprep.subr.mxu0 0.0
      %378 = vmatpush1.msra.mxu0 %v303
      %379 = vmatprep.subr.mxu0 0.0
      %380 = vmatpush1.msra.mxu0 %v304
      %381 = vmatprep.subr.mxu0 0.0
      %382 = vmatpush1.msra.mxu0 %v305
      %383 = vmatprep.subr.mxu0 0.0
      %384 = vmatpush1.msra.mxu0 %v306
      %385 = vmatprep.subr.mxu0 0.0
      %386 = vmatpush1.msra.mxu0 %v307
      %387 = vmatprep.subr.mxu0 0.0
      %388 = vmatpush1.msra.mxu0 %v308
      %389 = vmatprep.subr.mxu0 0.0
      %390 = vmatpush1.msra.mxu0 %v309
      %391 = vmatprep.subr.mxu0 0.0
      %392 = vmatpush1.msra.mxu0 %v310
      %393 = vmatprep.subr.mxu0 0.0
      %394 = vmatpush1.msra.mxu0 %v311
      %395 = vmatprep.subr.mxu0 0.0
      %396 = vmatpush1.msra.mxu0 %v312
      %397 = vmatprep.subr.mxu0 0.0
      %398 = vmatpush1.msra.mxu0 %v313
      %399 = vmatprep.subr.mxu0 0.0
      %400 = vmatpush1.msra.mxu0 %v314
      %401 = vmatprep.subr.mxu0 0.0
      %402 = vmatpush1.msra.mxu0 %v315
      %403 = vmatprep.subr.mxu0 0.0
      %404 = vmatpush1.msra.mxu0 %v316
      %405 = vmatprep.subr.mxu0 0.0
      %406 = vmatpush1.msra.mxu0 %v317
      %407 = vmatprep.subr.mxu0 0.0
      %408 = vmatpush1.msra.mxu0 %v318
      %409 = vmatprep.subr.mxu0 0.0
      %410 = vmatpush1.msra.mxu0 %v319
      %411 = vmatprep.subr.mxu0 0.0
      %412 = vmatpush1.msra.mxu0 %v320
      %413 = vmatprep.subr.mxu0 0.0
      %414 = vmatpush1.msra.mxu0 %v321
      %415 = vmatprep.subr.mxu0 0.0
      %416 = vmatpush1.msra.mxu0 %v322
      %417 = vmatprep.subr.mxu0 0.0
      %418 = vmatpush1.msra.mxu0 %v323
      %419 = vmatprep.subr.mxu0 0.0
      %420 = vmatpush1.msra.mxu0 %v324
      %421 = vmatprep.mubr.f32.mxu0 %v286
      %422 = vmatmul.mubr.f32.gmra.mrb[0].mxu0 %v285
      %v423 = vpop.f32.mrb[0].mxu0
      %v424 = vadd.f32 %v348, %v423
      %v425 = vpop.f32.mrb[0].mxu0
      %426 = vmatprep.mubr.f32.mxu0 %v290
      %427 = vmatmul.mubr.f32.gmra.mrb[0].mxu0 %v289
      %v428 = vpop.f32.mrb[0].mxu0
      %v429 = vadd.f32 %v348, %v428
      %v430 = vpop.f32.mrb[0].mxu0
      %431 = vdwg.mxu0
      %432 = vmatprep.subr.mxu0 0.0
      %433 = vmatpush1.msra.mxu0 %v325
      %434 = vmatprep.subr.mxu0 0.0
      %435 = vmatpush1.msra.mxu0 %v326
      %436 = vmatprep.subr.mxu0 0.0
      %437 = vmatpush1.msra.mxu0 %v327
      %438 = vmatprep.subr.mxu0 0.0
      %439 = vmatpush1.msra.mxu0 %v328
      %440 = vmatprep.subr.mxu0 0.0
      %441 = vmatpush1.msra.mxu0 %v329
      %442 = vmatprep.subr.mxu0 0.0
      %443 = vmatpush1.msra.mxu0 %v330
      %444 = vmatprep.subr.mxu0 0.0
      %445 = vmatpush1.msra.mxu0 %v331
      %446 = vmatprep.subr.mxu0 0.0
      %447 = vmatpush1.msra.mxu0 %v332
      %448 = vmatprep.subr.mxu0 0.0
      %449 = vmatpush1.msra.mxu0 %v333
      %450 = vmatprep.subr.mxu0 0.0
      %451 = vmatpush1.msra.mxu0 %v334
      %452 = vmatprep.subr.mxu0 0.0
      %453 = vmatpush1.msra.mxu0 %v335
      %454 = vmatprep.subr.mxu0 0.0
      %455 = vmatpush1.msra.mxu0 %v336
      %456 = vmatprep.subr.mxu0 0.0
      %457 = vmatpush1.msra.mxu0 %v337
      %458 = vmatprep.subr.mxu0 0.0
      %459 = vmatpush1.msra.mxu0 %v338
      %460 = vmatprep.subr.mxu0 0.0
      %461 = vmatpush1.msra.mxu0 %v339
      %462 = vmatprep.subr.mxu0 0.0
      %463 = vmatpush1.msra.mxu0 %v340
      %464 = vmatprep.subr.mxu0 0.0
      %465 = vmatpush1.msra.mxu0 %v341
      %466 = vmatprep.subr.mxu0 0.0
      %467 = vmatpush1.msra.mxu0 %v342
      %468 = vmatprep.subr.mxu0 0.0
      %469 = vmatpush1.msra.mxu0 0.0
      %470 = vmatprep.subr.mxu0 0.0
      %471 = vmatpush1.msra.mxu0 0.0
      %472 = vmatprep.subr.mxu0 0.0
      %473 = vmatpush1.msra.mxu0 0.0
      %474 = vmatprep.subr.mxu0 0.0
      %475 = vmatpush1.msra.mxu0 0.0
      %476 = vmatprep.subr.mxu0 0.0
      %477 = vmatpush1.msra.mxu0 0.0
      %478 = vmatprep.subr.mxu0 0.0
      %479 = vmatpush1.msra.mxu0 0.0
      %480 = vmatprep.subr.mxu0 0.0
      %481 = vmatpush1.msra.mxu0 0.0
      %482 = vmatprep.subr.mxu0 0.0
      %483 = vmatpush1.msra.mxu0 0.0
      %484 = vmatprep.subr.mxu0 0.0
      %485 = vmatpush1.msra.mxu0 0.0
      %486 = vmatprep.subr.mxu0 0.0
      %487 = vmatpush1.msra.mxu0 0.0
      %488 = vmatprep.subr.mxu0 0.0
      %489 = vmatpush1.msra.mxu0 0.0
      %490 = vmatprep.subr.mxu0 0.0
      %491 = vmatpush1.msra.mxu0 0.0
      %492 = vmatprep.subr.mxu0 0.0
      %493 = vmatpush1.msra.mxu0 0.0
      %494 = vmatprep.subr.mxu0 0.0
      %495 = vmatpush1.msra.mxu0 0.0
      %496 = vmatprep.mubr.f32.mxu0 %v352
      %497 = vmatmul.mubr.f32.gmra.mrb[0].mxu0 %v287
      %v498 = vpop.f32.mrb[0].mxu0
      %v499 = vadd.f32 %v424, %v498
      %v500 = vpop.f32.mrb[0].mxu0
      %501 = vmatprep.mubr.f32.mxu0 %v355
      %502 = vmatmul.mubr.f32.gmra.mrb[0].mxu0 %v291
      %v503 = vpop.f32.mrb[0].mxu0
      %v504 = vadd.f32 %v429, %v503
      %v505 = vpop.f32.mrb[0].mxu0
      %506 = vdwg.mxu0
      %v507 = vmax.f32 %v499, 0.0
      %v508 = vmax.f32 %v504, 0.0
      %v509 = vld [vmem:[%s3] sm:$0xff]
      %v510 = vld [vmem:[%s3 + $0x8] sm:$0xff]
      %v511 = vld [vmem:[%s3 + $0x10] sm:$0xff]
      %v512 = vld [vmem:[%s3 + $0x18] sm:$0xff]
      %v513 = vld [vmem:[%s3 + $0x20] sm:$0xff]
      %v514 = vld [vmem:[%s3 + $0x28] sm:$0xff]
      %v515 = vld [vmem:[%s3 + $0x30] sm:$0xff]
      %v516 = vld [vmem:[%s3 + $0x38] sm:$0xff]
      %v517 = vld [vmem:[%s3 + $0x40] sm:$0xff]
      %v518 = vld [vmem:[%s3 + $0x48] sm:$0xff]
      %v519 = vld [vmem:[%s3 + $0x50] sm:$0xff]
      %v520 = vld [vmem:[%s3 + $0x58] sm:$0xff]
      %v521 = vld [vmem:[%s3 + $0x60] sm:$0xff]
      %v522 = vld [vmem:[%s3 + $0x68] sm:$0xff]
      %v523 = vld [vmem:[%s3 + $0x70] sm:$0xff]
      %v524 = vld [vmem:[%s3 + $0x78] sm:$0xff]
      %v525 = vld [vmem:[%s4] sm:$0x1]
      %v527 = vlaneseq
      %v528 = vshrl.u32 %v527, 7
      %v529 = vsub.s32 0, %v528
      %v530 = vrot.slane %v525, %v529
      %532 = vmatprep.subr.mxu0 0.0
      %533 = vmatpush1.msra.mxu0 %v509
      %534 = vmatprep.subr.mxu0 0.0
      %535 = vmatpush1.msra.mxu0 %v510
      %536 = vmatprep.subr.mxu0 0.0
      %537 = vmatpush1.msra.mxu0 %v511
      %538 = vmatprep.subr.mxu0 0.0
      %539 = vmatpush1.msra.mxu0 %v512
      %540 = vmatprep.subr.mxu0 0.0
      %541 = vmatpush1.msra.mxu0 %v513
      %542 = vmatprep.subr.mxu0 0.0
      %543 = vmatpush1.msra.mxu0 %v514
      %544 = vmatprep.subr.mxu0 0.0
      %545 = vmatpush1.msra.mxu0 %v515
      %546 = vmatprep.subr.mxu0 0.0
      %547 = vmatpush1.msra.mxu0 %v516
      %548 = vmatprep.subr.mxu0 0.0
      %549 = vmatpush1.msra.mxu0 %v517
      %550 = vmatprep.subr.mxu0 0.0
      %551 = vmatpush1.msra.mxu0 %v518
      %552 = vmatprep.subr.mxu0 0.0
      %553 = vmatpush1.msra.mxu0 %v519
      %554 = vmatprep.subr.mxu0 0.0
      %555 = vmatpush1.msra.mxu0 %v520
      %556 = vmatprep.subr.mxu0 0.0
      %557 = vmatpush1.msra.mxu0 %v521
      %558 = vmatprep.subr.mxu0 0.0
      %559 = vmatpush1.msra.mxu0 %v522
      %560 = vmatprep.subr.mxu0 0.0
      %561 = vmatpush1.msra.mxu0 %v523
      %562 = vmatprep.subr.mxu0 0.0
      %563 = vmatpush1.msra.mxu0 %v524
      %564 = vmatprep.subr.mxu0 0.0
      %565 = vmatpush1.msra.mxu0 0.0
      %566 = vmatprep.subr.mxu0 0.0
      %567 = vmatpush1.msra.mxu0 0.0
      %568 = vmatprep.subr.mxu0 0.0
      %569 = vmatpush1.msra.mxu0 0.0
      %570 = vmatprep.subr.mxu0 0.0
      %571 = vmatpush1.msra.mxu0 0.0
      %572 = vmatprep.subr.mxu0 0.0
      %573 = vmatpush1.msra.mxu0 0.0
      %574 = vmatprep.subr.mxu0 0.0
      %575 = vmatpush1.msra.mxu0 0.0
      %576 = vmatprep.subr.mxu0 0.0
      %577 = vmatpush1.msra.mxu0 0.0
      %578 = vmatprep.subr.mxu0 0.0
      %579 = vmatpush1.msra.mxu0 0.0
      %580 = vmatprep.subr.mxu0 0.0
      %581 = vmatpush1.msra.mxu0 0.0
      %582 = vmatprep.subr.mxu0 0.0
      %583 = vmatpush1.msra.mxu0 0.0
      %584 = vmatprep.subr.mxu0 0.0
      %585 = vmatpush1.msra.mxu0 0.0
      %586 = vmatprep.subr.mxu0 0.0
      %587 = vmatpush1.msra.mxu0 0.0
      %588 = vmatprep.subr.mxu0 0.0
      %589 = vmatpush1.msra.mxu0 0.0
      %590 = vmatprep.subr.mxu0 0.0
      %591 = vmatpush1.msra.mxu0 0.0
      %592 = vmatprep.subr.mxu0 0.0
      %593 = vmatpush1.msra.mxu0 0.0
      %594 = vmatprep.subr.mxu0 0.0
      %595 = vmatpush1.msra.mxu0 0.0
      %596 = vmatprep.mubr.f32.mxu0 0.0
      %597 = vmatmul.mubr.f32.gmra.mrb[0].mxu0 %v507
      %v598 = vpop.f32.mrb[0].mxu0
      %v599 = vadd.f32 %v530, %v598
      %v600 = vpop.f32.mrb[0].mxu0
      %601 = vmatprep.mubr.f32.mxu0 0.0
      %602 = vmatmul.mubr.f32.gmra.mrb[0].mxu0 %v508
      %v603 = vpop.f32.mrb[0].mxu0
      %v604 = vadd.f32 %v530, %v603
      %v605 = vpop.f32.mrb[0].mxu0
      %606 = vdwg.mxu0
      %v607 = vmax.f32 %v599, 0.0
      %v608 = vmax.f32 %v604, 0.0
      %v609 = vld [vmem:[%s5] sm:$0xff]
      %v610 = vld [vmem:[%s5 + $0x8] sm:$0xff]
      %v611 = vld [vmem:[%s5 + $0x10] sm:$0xff]
      %v612 = vld [vmem:[%s5 + $0x18] sm:$0xff]
      %v613 = vld [vmem:[%s5 + $0x20] sm:$0xff]
      %v614 = vld [vmem:[%s5 + $0x28] sm:$0xff]
      %v615 = vld [vmem:[%s5 + $0x30] sm:$0xff]
      %v616 = vld [vmem:[%s5 + $0x38] sm:$0xff]
      %v617 = vld [vmem:[%s5 + $0x40] sm:$0xff]
      %v618 = vld [vmem:[%s5 + $0x48] sm:$0xff]
      %v619 = vld [vmem:[%s5 + $0x50] sm:$0xff]
      %v620 = vld [vmem:[%s5 + $0x58] sm:$0xff]
      %v621 = vld [vmem:[%s5 + $0x60] sm:$0xff]
      %v622 = vld [vmem:[%s5 + $0x68] sm:$0xff]
      %v623 = vld [vmem:[%s5 + $0x70] sm:$0xff]
      %v624 = vld [vmem:[%s5 + $0x78] sm:$0xff]
      %v625 = vld [vmem:[%s6] sm:$0x1]
      %v627 = vlaneseq
      %v628 = vshrl.u32 %v627, 7
      %v629 = vsub.s32 0, %v628
      %v630 = vrot.slane %v625, %v629
      %632 = vmatprep.subr.mxu0 0.0
      %633 = vmatpush1.msra.mxu0 %v609
      %634 = vmatprep.subr.mxu0 0.0
      %635 = vmatpush1.msra.mxu0 %v610
      %636 = vmatprep.subr.mxu0 0.0
      %637 = vmatpush1.msra.mxu0 %v611
      %638 = vmatprep.subr.mxu0 0.0
      %639 = vmatpush1.msra.mxu0 %v612
      %640 = vmatprep.subr.mxu0 0.0
      %641 = vmatpush1.msra.mxu0 %v613
      %642 = vmatprep.subr.mxu0 0.0
      %643 = vmatpush1.msra.mxu0 %v614
      %644 = vmatprep.subr.mxu0 0.0
      %645 = vmatpush1.msra.mxu0 %v615
      %646 = vmatprep.subr.mxu0 0.0
      %647 = vmatpush1.msra.mxu0 %v616
      %648 = vmatprep.subr.mxu0 0.0
      %649 = vmatpush1.msra.mxu0 %v617
      %650 = vmatprep.subr.mxu0 0.0
      %651 = vmatpush1.msra.mxu0 %v618
      %652 = vmatprep.subr.mxu0 0.0
      %653 = vmatpush1.msra.mxu0 %v619
      %654 = vmatprep.subr.mxu0 0.0
      %655 = vmatpush1.msra.mxu0 %v620
      %656 = vmatprep.subr.mxu0 0.0
      %657 = vmatpush1.msra.mxu0 %v621
      %658 = vmatprep.subr.mxu0 0.0
      %659 = vmatpush1.msra.mxu0 %v622
      %660 = vmatprep.subr.mxu0 0.0
      %661 = vmatpush1.msra.mxu0 %v623
      %662 = vmatprep.subr.mxu0 0.0
      %663 = vmatpush1.msra.mxu0 %v624
      %664 = vmatprep.subr.mxu0 0.0
      %665 = vmatpush1.msra.mxu0 0.0
      %666 = vmatprep.subr.mxu0 0.0
      %667 = vmatpush1.msra.mxu0 0.0
      %668 = vmatprep.subr.mxu0 0.0
      %669 = vmatpush1.msra.mxu0 0.0
      %670 = vmatprep.subr.mxu0 0.0
      %671 = vmatpush1.msra.mxu0 0.0
      %672 = vmatprep.subr.mxu0 0.0
      %673 = vmatpush1.msra.mxu0 0.0
      %674 = vmatprep.subr.mxu0 0.0
      %675 = vmatpush1.msra.mxu0 0.0
      %676 = vmatprep.subr.mxu0 0.0
      %677 = vmatpush1.msra.mxu0 0.0
      %678 = vmatprep.subr.mxu0 0.0
      %679 = vmatpush1.msra.mxu0 0.0
      %680 = vmatprep.subr.mxu0 0.0
      %681 = vmatpush1.msra.mxu0 0.0
      %682 = vmatprep.subr.mxu0 0.0
      %683 = vmatpush1.msra.mxu0 0.0
      %684 = vmatprep.subr.mxu0 0.0
      %685 = vmatpush1.msra.mxu0 0.0
      %686 = vmatprep.subr.mxu0 0.0
      %687 = vmatpush1.msra.mxu0 0.0
      %688 = vmatprep.subr.mxu0 0.0
      %689 = vmatpush1.msra.mxu0 0.0
      %690 = vmatprep.subr.mxu0 0.0
      %691 = vmatpush1.msra.mxu0 0.0
      %692 = vmatprep.subr.mxu0 0.0
      %693 = vmatpush1.msra.mxu0 0.0
      %694 = vmatprep.subr.mxu0 0.0
      %695 = vmatpush1.msra.mxu0 0.0
      %696 = vmatprep.mubr.f32.mxu0 0.0
      %697 = vmatmul.mubr.f32.gmra.mrb[0].mxu0 %v607
      %v698 = vpop.f32.mrb[0].mxu0
      %v699 = vadd.f32 %v630, %v698
      %v700 = vpop.f32.mrb[0].mxu0
      %701 = vmatprep.mubr.f32.mxu0 0.0
      %702 = vmatmul.mubr.f32.gmra.mrb[0].mxu0 %v608
      %v703 = vpop.f32.mrb[0].mxu0
      %v704 = vadd.f32 %v630, %v703
      %v705 = vpop.f32.mrb[0].mxu0
      %706 = vdwg.mxu0
      %707 = vst [vmem:[%s283] sm:$0xff] %v699
      %708 = vst [vmem:[%s283 + $0x8] sm:$0xff] %v704
      %s709 = smul.u32 2, %s18
      %p710 = scmp.lt.s32.totalorder %s709, 3
      %s711 = scalar_select %p710, %s709, 3
      %s712 = smul.addr %s711, 8
      %s713 = scalar_lea.vmem %s7, %s712
      // Predicated region
      $region49: #{cnn_forward.3} parent=47 // pred_check
        %p714 = pneg %p188
      $region50: #{cnn_forward.3} parent=47 // pred_check_branch
        %716 = sbr.rel (%p714) target = $region52
      $region51: #{cnn_forward.3} parent=47 // pred_region
        %s717 = smul.u32 2, %s18
      $region52: #{cnn_forward.3} parent=47 // pred_fallthru
        _
    $region48: #{cnn_forward.3} parent=5 // pred_fallthru
      _
    %p718 = scmp.le.s32.totalorder 2, %s13
    // Predicated region
    $region53: #{cnn_forward.3} parent=5 // pred_check
      %p719 = pneg %p718
    $region54: #{cnn_forward.3} parent=5 // pred_check_branch
      %721 = sbr.rel (%p719) target = $region56
    $region55: #{cnn_forward.3} parent=5 // pred_region
      %s722 = ssub.s32 %s13, 2
      // Predicated region
      $region57: #{cnn_forward.3} parent=55 // pred_check
        %p723 = pneg %p194
      $region58: #{cnn_forward.3} parent=55 // pred_check_branch
        %725 = sbr.rel (%p723) target = $region60
      $region59: #{cnn_forward.3} parent=55 // pred_region
        %s726 = smul.u32 2, %s19
        %p727 = scmp.lt.s32.totalorder %s726, 3
        %s728 = scalar_select %p727, %s726, 3
        %s729 = smul.addr %s728, 8
        %s730 = scalar_lea.vmem %s7, %s729
      $region60: #{cnn_forward.3} parent=55 // pred_fallthru
        _
    $region56: #{cnn_forward.3} parent=5 // pred_fallthru
      _
  $region6: #{cnn_forward.3} parent=0 // loop_footer
    %s17 = sadd.s32 1, %s13
  $region7: #{cnn_forward.3} parent=0 // loop_footer_branch
    %12 = sbr.rel target = $region3
  $region8: #{cnn_forward.3} parent=0 // loop_exit
    _

// kernel: cnn_forward.2
$region0: #{cnn_forward.2}
  #allocation0 [shape = 'u32[]', space=smem, size = 0x4, offset = 0x4, fixed_abs, tag = 'smem constant byte address 0x4 - core index']
  #allocation1 [shape = 'u32[144,128]{1,0:T(1,128)}', space=vmem, size = 0x12000, scoped, tag = 'internal scratch']
  #allocation2 [shape = 'f32[256,8]{1,0:T(8,128)}', space=vmem, size = 0x20000, scoped, tag = 'scratch operand']
  #allocation3 [shape = 'f32[144,128]{1,0:T(8,128)}', space=vmem, size = 0x12000, scoped, tag = 'scratch operand']
  %s0 = inlined_call_operand.vmem [shape: f32[2048,32], index: 0, kind: input, shape index: {}]
  %s1 = inlined_call_operand.vmem [shape: f32[32,128], index: 1, kind: input, shape index: {}]
  %s2 = inlined_call_operand.vmem [shape: f32[1,128], index: 2, kind: input, shape index: {}]
  %s3 = inlined_call_operand.vmem [shape: f32[200,128], index: 3, kind: input, shape index: {}]
  %s4 = inlined_call_operand.vmem [shape: f32[1,128], index: 4, kind: input, shape index: {}]
  %s5 = inlined_call_operand.vmem [shape: f32[2,25,16], index: 5, kind: output, shape index: {}]
  %s6 = sld [smem:[#allocation0]]
  $region53: #{cnn_forward.2} parent=0
    _
  %s8 = ssub.s32 1, %s6
  %s9 = scalar_select 0, %s8, %s6
  loop: start=0, step=1, limit=4
  $region2: #{cnn_forward.2} parent=0 // loop_pre_header
    _
  $region3: #{cnn_forward.2} parent=0 // loop_header
    %s11 = sphi 0, %s15
    %p12 = scmp.ge.s32.totalorder %s11, 4
    %s21 = sphi 0, %s23
    %s24 = sphi 0, %s21
    %s25 = sphi 0, %s24
    %s41 = sphi 0, %s25
    %s45 = sphi 0, %s45
    %s47 = sphi 0, %s45
    %s48 = sphi 0, %s47
    %s62 = sphi 0, %s48
    %s66 = sphi 0, %s66
    %s68 = sphi 0, %s66
    %s69 = sphi 0, %s68
    %s83 = sphi 0, %s69
    %s87 = sphi 0, %s87
    %s89 = sphi 0, %s87
    %s90 = sphi 0, %s89
    %s104 = sphi 0, %s90
    %s108 = sphi 0, %s108
    %s110 = sphi 0, %s108
    %s111 = sphi 0, %s110
    %s125 = sphi 0, %s111
    %s131 = sphi 0, %s133
    %s134 = sphi 0, %s131
    %s135 = sphi 0, %s134
    %s151 = sphi 0, %s135
  $region4: #{cnn_forward.2} parent=0 // loop_header_branch
    %14 = sbr.rel (%p12) target = $region8
  $region5: #{cnn_forward.2} parent=0 // loop_body
    %s16 = ssub.s32 %s11, 1
    %s17 = ssub.s32 %s11, 2
    %s18 = sadd.s32 %s11, 1
    %s19 = ssub.s32 %s11, %s18
    %p20 = scmp.eq.s32.totalorder %s19, 0
    %s22 = sadd.s32 %s21, 1
    %s23 = scalar_select %p20, %s21, %s22
    %p26 = pneg %p20
    %p27 = scmp.eq.s32.totalorder %s11, 1
    %p28 = por %p26, %p27
    %p29 = scmp.ne.s32.totalorder %s21, %s24
    %p30 = scmp.eq.s32.totalorder %s11, 0
    %p31 = por %p29, %p30
    %p32 = scmp.ne.s32.totalorder %s21, %s24
    %p33 = scmp.eq.s32.totalorder %s16, 1
    %p34 = por %p32, %p33
    %p35 = scmp.ne.s32.totalorder %s24, %s25
    %p36 = scmp.eq.s32.totalorder %s16, 0
    %p37 = por %p35, %p36
    %p38 = scmp.ne.s32.totalorder %s24, %s25
    %p39 = scmp.eq.s32.totalorder %s17, 1
    %p40 = por %p38, %p39
    %p42 = scmp.ne.s32.totalorder %s25, %s41
    %p43 = scmp.eq.s32.totalorder %s17, 0
    %p44 = por %p42, %p43
    %s46 = sadd.s32 %s45, 1
    %p49 = scmp.eq.s32.totalorder %s11, 1
    %p50 = scmp.ne.s32.totalorder %s45, %s47
    %p51 = scmp.eq.s32.totalorder %s11, 0
    %p52 = por %p50, %p51
    %p53 = scmp.ne.s32.totalorder %s45, %s47
    %p54 = scmp.eq.s32.totalorder %s16, 1
    %p55 = por %p53, %p54
    %p56 = scmp.ne.s32.totalorder %s47, %s48
    %p57 = scmp.eq.s32.totalorder %s16, 0
    %p58 = por %p56, %p57
    %p59 = scmp.ne.s32.totalorder %s47, %s48
    %p60 = scmp.eq.s32.totalorder %s17, 1
    %p61 = por %p59, %p60
    %p63 = scmp.ne.s32.totalorder %s48, %s62
    %p64 = scmp.eq.s32.totalorder %s17, 0
    %p65 = por %p63, %p64
    %s67 = sadd.s32 %s66, 1
    %p70 = scmp.eq.s32.totalorder %s11, 1
    %p71 = scmp.ne.s32.totalorder %s66, %s68
    %p72 = scmp.eq.s32.totalorder %s11, 0
    %p73 = por %p71, %p72
    %p74 = scmp.ne.s32.totalorder %s66, %s68
    %p75 = scmp.eq.s32.totalorder %s16, 1
    %p76 = por %p74, %p75
    %p77 = scmp.ne.s32.totalorder %s68, %s69
    %p78 = scmp.eq.s32.totalorder %s16, 0
    %p79 = por %p77, %p78
    %p80 = scmp.ne.s32.totalorder %s68, %s69
    %p81 = scmp.eq.s32.totalorder %s17, 1
    %p82 = por %p80, %p81
    %p84 = scmp.ne.s32.totalorder %s69, %s83
    %p85 = scmp.eq.s32.totalorder %s17, 0
    %p86 = por %p84, %p85
    %s88 = sadd.s32 %s87, 1
    %p91 = scmp.eq.s32.totalorder %s11, 1
    %p92 = scmp.ne.s32.totalorder %s87, %s89
    %p93 = scmp.eq.s32.totalorder %s11, 0
    %p94 = por %p92, %p93
    %p95 = scmp.ne.s32.totalorder %s87, %s89
    %p96 = scmp.eq.s32.totalorder %s16, 1
    %p97 = por %p95, %p96
    %p98 = scmp.ne.s32.totalorder %s89, %s90
    %p99 = scmp.eq.s32.totalorder %s16, 0
    %p100 = por %p98, %p99
    %p101 = scmp.ne.s32.totalorder %s89, %s90
    %p102 = scmp.eq.s32.totalorder %s17, 1
    %p103 = por %p101, %p102
    %p105 = scmp.ne.s32.totalorder %s90, %s104
    %p106 = scmp.eq.s32.totalorder %s17, 0
    %p107 = por %p105, %p106
    %s109 = sadd.s32 %s108, 1
    %p112 = scmp.eq.s32.totalorder %s11, 1
    %p113 = scmp.ne.s32.totalorder %s108, %s110
    %p114 = scmp.eq.s32.totalorder %s11, 0
    %p115 = por %p113, %p114
    %p116 = scmp.ne.s32.totalorder %s108, %s110
    %p117 = scmp.eq.s32.totalorder %s16, 1
    %p118 = por %p116, %p117
    %p119 = scmp.ne.s32.totalorder %s110, %s111
    %p120 = scmp.eq.s32.totalorder %s16, 0
    %p121 = por %p119, %p120
    %p122 = scmp.ne.s32.totalorder %s110, %s111
    %p123 = scmp.eq.s32.totalorder %s17, 1
    %p124 = por %p122, %p123
    %p126 = scmp.ne.s32.totalorder %s111, %s125
    %p127 = scmp.eq.s32.totalorder %s17, 0
    %p128 = por %p126, %p127
    %s129 = ssub.s32 %s11, %s18
    %p130 = scmp.eq.s32.totalorder %s129, 0
    %s132 = sadd.s32 %s131, 1
    %s133 = scalar_select %p130, %s131, %s132
    %p136 = pneg %p130
    %p137 = scmp.eq.s32.totalorder %s11, 1
    %p138 = por %p136, %p137
    %p139 = scmp.ne.s32.totalorder %s131, %s134
    %p140 = scmp.eq.s32.totalorder %s11, 0
    %p141 = por %p139, %p140
    %p142 = scmp.ne.s32.totalorder %s131, %s134
    %p143 = scmp.eq.s32.totalorder %s16, 1
    %p144 = por %p142, %p143
    %p145 = scmp.ne.s32.totalorder %s134, %s135
    %p146 = scmp.eq.s32.totalorder %s16, 0
    %p147 = por %p145, %p146
    %p148 = scmp.ne.s32.totalorder %s134, %s135
    %p149 = scmp.eq.s32.totalorder %s17, 1
    %p150 = por %p148, %p149
    %p152 = scmp.ne.s32.totalorder %s135, %s151
    %p153 = scmp.eq.s32.totalorder %s17, 0
    %p154 = por %p152, %p153
    %p155 = scmp.le.s32.totalorder 1, %s11
    %p156 = scmp.lt.s32.totalorder %s11, 3
    %p157 = pnand %p155, %p156
    %p158 = pneg %p157
    // Predicated region
    $region9: #{cnn_forward.2} parent=5 // pred_check
      _
    $region10: #{cnn_forward.2} parent=5 // pred_check_branch
      %160 = sbr.rel (%p157) target = $region12
    $region11: #{cnn_forward.2} parent=5 // pred_region
      %s161 = ssub.s32 %s11, 1
      // Predicated region
      $region13: #{cnn_forward.2} parent=11 // pred_check
        %p162 = pneg %p58
      $region14: #{cnn_forward.2} parent=11 // pred_check_branch
        %164 = sbr.rel (%p162) target = $region16
      $region15: #{cnn_forward.2} parent=11 // pred_region
        _
      $region16: #{cnn_forward.2} parent=11 // pred_fallthru
        _
      // Predicated region
      $region17: #{cnn_forward.2} parent=11 // pred_check
        %p165 = pneg %p79
      $region18: #{cnn_forward.2} parent=11 // pred_check_branch
        %167 = sbr.rel (%p165) target = $region20
      $region19: #{cnn_forward.2} parent=11 // pred_region
        _
      $region20: #{cnn_forward.2} parent=11 // pred_fallthru
        _
      // Predicated region
      $region21: #{cnn_forward.2} parent=11 // pred_check
        %p168 = pneg %p100
      $region22: #{cnn_forward.2} parent=11 // pred_check_branch
        %170 = sbr.rel (%p168) target = $region24
      $region23: #{cnn_forward.2} parent=11 // pred_region
        _
      $region24: #{cnn_forward.2} parent=11 // pred_fallthru
        _
      // Predicated region
      $region25: #{cnn_forward.2} parent=11 // pred_check
        %p171 = pneg %p121
      $region26: #{cnn_forward.2} parent=11 // pred_check_branch
        %173 = sbr.rel (%p171) target = $region28
      $region27: #{cnn_forward.2} parent=11 // pred_region
        _
      $region28: #{cnn_forward.2} parent=11 // pred_fallthru
        _
    $region12: #{cnn_forward.2} parent=5 // pred_fallthru
      _
    %p174 = scmp.lt.s32.totalorder %s11, 2
    // Predicated region
    $region29: #{cnn_forward.2} parent=5 // pred_check
      %p175 = pneg %p174
    $region30: #{cnn_forward.2} parent=5 // pred_check_branch
      %177 = sbr.rel (%p175) target = $region32
    $region31: #{cnn_forward.2} parent=5 // pred_region
      // Predicated region
      $region33: #{cnn_forward.2} parent=31 // pred_check
        %p178 = pneg %p31
      $region34: #{cnn_forward.2} parent=31 // pred_check_branch
        %180 = sbr.rel (%p178) target = $region36
      $region35: #{cnn_forward.2} parent=31 // pred_region
        %s181 = smul.u32 128, %s11
        %p182 = scmp.lt.s32.totalorder %s181, 255
        %s183 = scalar_select %p182, %s181, 255
        %s184 = smul.addr %s183, 8
        %s185 = scalar_lea.vmem %s0, %s184
        %s186 = smul.u32 128, %s11
      $region36: #{cnn_forward.2} parent=31 // pred_fallthru
        _
    $region32: #{cnn_forward.2} parent=5 // pred_fallthru
      _
    %p187 = scmp.le.s32.totalorder 1, %s11
    %p188 = scmp.lt.s32.totalorder %s11, 3
    %p189 = pnand %p187, %p188
    %p190 = pneg %p189
    // Predicated region
    $region37: #{cnn_forward.2} parent=5 // pred_check
      _
    $region38: #{cnn_forward.2} parent=5 // pred_check_branch
      %192 = sbr.rel (%p189) target = $region40
    $region39: #{cnn_forward.2} parent=5 // pred_region
      %s193 = ssub.s32 %s11, 1
      %s194 = smul.u32 128, %s16
      %p195 = scmp.lt.s32.totalorder %s194, 255
      %s196 = scalar_select %p195, %s194, 255
      %s197 = smul.addr %s196, 8
      %s198 = scalar_lea.vmem %s0, %s197
      %p199 = pneg %p37
      %p200 = pneg %p34
      %p201 = pneg %p58
      %p202 = pneg %p55
      %p203 = pneg %p79
      %p204 = pneg %p76
      %p205 = pneg %p100
      %p206 = pneg %p97
      %p207 = pneg %p121
      %p208 = pneg %p118
      %p209 = pneg %p147
      %p210 = pneg %p144
      %p211 = scmp.lt.s32.totalorder %s16, 1
      %s212 = scalar_select %p211, %s16, 1
      %s213 = smul.addr %s212, 4
      %s214 = smul.addr %s213, 8
      %s215 = scalar_lea.vmem %s5, %s214
      %s216 = smul.u32 128, %s16
      %p217 = scmp.lt.s32.totalorder %s216, 255
      %s218 = scalar_select %p217, %s216, 255
      %s219 = smul.addr %s218, 8
      %s220 = scalar_lea.vmem %s0, %s219
      %s221 = smul.u32 128, %s16
      %p222 = scmp.lt.s32.totalorder %s16, 1
      %s223 = scalar_select %p222, %s16, 1
      %s224 = smul.addr %s223, 4
      %s225 = smul.addr %s224, 8
      %s226 = scalar_lea.vmem %s5, %s225
      %v227 = vld [vmem:[%s220] sm:$0xff]
      %v228 = vld [vmem:[%s220 + $0x8] sm:$0xff]
      %v229 = vld [vmem:[%s220 + $0x10] sm:$0xff]
      %v230 = vld [vmem:[%s220 + $0x18] sm:$0xff]
      %v231 = vld [vmem:[%s220 + $0x20] sm:$0xff]
      %v232 = vld [vmem:[%s220 + $0x28] sm:$0xff]
      %v233 = vld [vmem:[%s220 + $0x30] sm:$0xff]
      %v234 = vld [vmem:[%s220 + $0x38] sm:$0xff]
      %v235 = vld [vmem:[%s220 + $0x40] sm:$0xff]
      %v236 = vld [vmem:[%s220 + $0x48] sm:$0xff]
      %v237 = vld [vmem:[%s220 + $0x50] sm:$0xff]
      %v238 = vld [vmem:[%s220 + $0x58] sm:$0xff]
      %v239 = vld [vmem:[%s220 + $0x60] sm:$0xff]
      %v240 = vld [vmem:[%s220 + $0x68] sm:$0xff]
      %v241 = vld [vmem:[%s220 + $0x70] sm:$0xff]
      %v242 = vld [vmem:[%s220 + $0x78] sm:$0xff]
      %v243 = vld [vmem:[%s220 + $0x80] sm:$0xff]
      %v244 = vld [vmem:[%s220 + $0x88] sm:$0xff]
      %v245 = vld [vmem:[%s220 + $0x90] sm:$0xff]
      %v246 = vld [vmem:[%s220 + $0x98] sm:$0xff]
      %v247 = vld [vmem:[%s220 + $0xa0] sm:$0xff]
      %v248 = vld [vmem:[%s220 + $0xa8] sm:$0xff]
      %v249 = vld [vmem:[%s220 + $0xb0] sm:$0xff]
      %v250 = vld [vmem:[%s220 + $0xb8] sm:$0xff]
      %v251 = vld [vmem:[%s220 + $0xc0] sm:$0xff]
      %v252 = vld [vmem:[%s220 + $0xc8] sm:$0xff]
      %v253 = vld [vmem:[%s220 + $0xd0] sm:$0xff]
      %v254 = vld [vmem:[%s220 + $0xd8] sm:$0xff]
      %v255 = vld [vmem:[%s220 + $0xe0] sm:$0xff]
      %v256 = vld [vmem:[%s220 + $0xe8] sm:$0xff]
      %v257 = vld [vmem:[%s220 + $0xf0] sm:$0xff]
      %v258 = vld [vmem:[%s220 + $0xf8] sm:$0xff]
      %v259 = vld [vmem:[%s220 + $0x100] sm:$0xff]
      %v260 = vld [vmem:[%s220 + $0x108] sm:$0xff]
      %v261 = vld [vmem:[%s220 + $0x110] sm:$0xff]
      %v262 = vld [vmem:[%s220 + $0x118] sm:$0xff]
      %v263 = vld [vmem:[%s220 + $0x120] sm:$0xff]
      %v264 = vld [vmem:[%s220 + $0x128] sm:$0xff]
      %v265 = vld [vmem:[%s220 + $0x130] sm:$0xff]
      %v266 = vld [vmem:[%s220 + $0x138] sm:$0xff]
      %v267 = vld [vmem:[%s220 + $0x140] sm:$0xff]
      %v268 = vld [vmem:[%s220 + $0x148] sm:$0xff]
      %v269 = vld [vmem:[%s220 + $0x150] sm:$0xff]
      %v270 = vld [vmem:[%s220 + $0x158] sm:$0xff]
      %v271 = vld [vmem:[%s220 + $0x160] sm:$0xff]
      %v272 = vld [vmem:[%s220 + $0x168] sm:$0xff]
      %v273 = vld [vmem:[%s220 + $0x170] sm:$0xff]
      %v274 = vld [vmem:[%s220 + $0x178] sm:$0xff]
      %v275 = vld [vmem:[%s220 + $0x180] sm:$0xff]
      %v276 = vld [vmem:[%s220 + $0x188] sm:$0xff]
      %v277 = vld [vmem:[%s220 + $0x190] sm:$0xff]
      %v278 = vld [vmem:[%s220 + $0x198] sm:$0xff]
      %v279 = vld [vmem:[%s220 + $0x1a0] sm:$0xff]
      %v280 = vld [vmem:[%s220 + $0x1a8] sm:$0xff]
      %v281 = vld [vmem:[%s220 + $0x1b0] sm:$0xff]
      %v282 = vld [vmem:[%s220 + $0x1b8] sm:$0xff]
      %v283 = vld [vmem:[%s220 + $0x1c0] sm:$0xff]
      %v284 = vld [vmem:[%s220 + $0x1c8] sm:$0xff]
      %v285 = vld [vmem:[%s220 + $0x1d0] sm:$0xff]
      %v286 = vld [vmem:[%s220 + $0x1d8] sm:$0xff]
      %v287 = vld [vmem:[%s220 + $0x1e0] sm:$0xff]
      %v288 = vld [vmem:[%s220 + $0x1e8] sm:$0xff]
      %v289 = vld [vmem:[%s220 + $0x1f0] sm:$0xff]
      %v290 = vld [vmem:[%s220 + $0x1f8] sm:$0xff]
      %v291 = vld [vmem:[%s220 + $0x200] sm:$0xff]
      %v292 = vld [vmem:[%s220 + $0x208] sm:$0xff]
      %v293 = vld [vmem:[%s220 + $0x210] sm:$0xff]
      %v294 = vld [vmem:[%s220 + $0x218] sm:$0xff]
      %v295 = vld [vmem:[%s220 + $0x220] sm:$0xff]
      %v296 = vld [vmem:[%s220 + $0x228] sm:$0xff]
      %v297 = vld [vmem:[%s220 + $0x230] sm:$0xff]
      %v298 = vld [vmem:[%s220 + $0x238] sm:$0xff]
      %v299 = vld [vmem:[%s220 + $0x240] sm:$0xff]
      %v300 = vld [vmem:[%s220 + $0x248] sm:$0xff]
      %v301 = vld [vmem:[%s220 + $0x250] sm:$0xff]
      %v302 = vld [vmem:[%s220 + $0x258] sm:$0xff]
      %v303 = vld [vmem:[%s220 + $0x260] sm:$0xff]
      %v304 = vld [vmem:[%s220 + $0x268] sm:$0xff]
      %v305 = vld [vmem:[%s220 + $0x270] sm:$0xff]
      %v306 = vld [vmem:[%s220 + $0x278] sm:$0xff]
      %v307 = vld [vmem:[%s220 + $0x280] sm:$0xff]
      %v308 = vld [vmem:[%s220 + $0x288] sm:$0xff]
      %v309 = vld [vmem:[%s220 + $0x290] sm:$0xff]
      %v310 = vld [vmem:[%s220 + $0x298] sm:$0xff]
      %v311 = vld [vmem:[%s220 + $0x2a0] sm:$0xff]
      %v312 = vld [vmem:[%s220 + $0x2a8] sm:$0xff]
      %v313 = vld [vmem:[%s220 + $0x2b0] sm:$0xff]
      %v314 = vld [vmem:[%s220 + $0x2b8] sm:$0xff]
      %v315 = vld [vmem:[%s220 + $0x2c0] sm:$0xff]
      %v316 = vld [vmem:[%s220 + $0x2c8] sm:$0xff]
      %v317 = vld [vmem:[%s220 + $0x2d0] sm:$0xff]
      %v318 = vld [vmem:[%s220 + $0x2d8] sm:$0xff]
      %v319 = vld [vmem:[%s220 + $0x2e0] sm:$0xff]
      %v320 = vld [vmem:[%s220 + $0x2e8] sm:$0xff]
      %v321 = vld [vmem:[%s220 + $0x2f0] sm:$0xff]
      %v322 = vld [vmem:[%s220 + $0x2f8] sm:$0xff]
      %v323 = vld [vmem:[%s220 + $0x300] sm:$0xff]
      %v324 = vld [vmem:[%s220 + $0x308] sm:$0xff]
      %v325 = vld [vmem:[%s220 + $0x310] sm:$0xff]
      %v326 = vld [vmem:[%s220 + $0x318] sm:$0xff]
      %v327 = vld [vmem:[%s220 + $0x320] sm:$0xff]
      %v328 = vld [vmem:[%s220 + $0x328] sm:$0xff]
      %v329 = vld [vmem:[%s220 + $0x330] sm:$0xff]
      %v330 = vld [vmem:[%s220 + $0x338] sm:$0xff]
      %v331 = vld [vmem:[%s220 + $0x340] sm:$0xff]
      %v332 = vld [vmem:[%s220 + $0x348] sm:$0xff]
      %v333 = vld [vmem:[%s220 + $0x350] sm:$0xff]
      %v334 = vld [vmem:[%s220 + $0x358] sm:$0xff]
      %v335 = vld [vmem:[%s220 + $0x360] sm:$0xff]
      %v336 = vld [vmem:[%s220 + $0x368] sm:$0xff]
      %v337 = vld [vmem:[%s220 + $0x370] sm:$0xff]
      %v338 = vld [vmem:[%s220 + $0x378] sm:$0xff]
      %v339 = vld [vmem:[%s220 + $0x380] sm:$0xff]
      %v340 = vld [vmem:[%s220 + $0x388] sm:$0xff]
      %v341 = vld [vmem:[%s220 + $0x390] sm:$0xff]
      %v342 = vld [vmem:[%s220 + $0x398] sm:$0xff]
      %v343 = vld [vmem:[%s220 + $0x3a0] sm:$0xff]
      %v344 = vld [vmem:[%s220 + $0x3a8] sm:$0xff]
      %v345 = vld [vmem:[%s220 + $0x3b0] sm:$0xff]
      %v346 = vld [vmem:[%s220 + $0x3b8] sm:$0xff]
      %v347 = vld [vmem:[%s220 + $0x3c0] sm:$0xff]
      %v348 = vld [vmem:[%s220 + $0x3c8] sm:$0xff]
      %v349 = vld [vmem:[%s220 + $0x3d0] sm:$0xff]
      %v350 = vld [vmem:[%s220 + $0x3d8] sm:$0xff]
      %v351 = vld [vmem:[%s220 + $0x3e0] sm:$0xff]
      %v352 = vld [vmem:[%s220 + $0x3e8] sm:$0xff]
      %v353 = vld [vmem:[%s220 + $0x3f0] sm:$0xff]
      %v354 = vld [vmem:[%s220 + $0x3f8] sm:$0xff]
      %v355 = vld [vmem:[%s1] sm:$0xff]
      %v356 = vld [vmem:[%s1 + $0x8] sm:$0xff]
      %v357 = vld [vmem:[%s1 + $0x10] sm:$0xff]
      %v358 = vld [vmem:[%s1 + $0x18] sm:$0xff]
      %vm359 = vcmask 261120
      %v361 = vsel %vm359, %v227, 0
      %v364 = vsel %vm359, %v228, 0
      %v367 = vsel %vm359, %v229, 0
      %v370 = vsel %vm359, %v230, 0
      %v373 = vsel %vm359, %v231, 0
      %v376 = vsel %vm359, %v232, 0
      %v379 = vsel %vm359, %v233, 0
      %v382 = vsel %vm359, %v234, 0
      %v385 = vsel %vm359, %v235, 0
      %v388 = vsel %vm359, %v236, 0
      %v391 = vsel %vm359, %v237, 0
      %v394 = vsel %vm359, %v238, 0
      %v397 = vsel %vm359, %v239, 0
      %v400 = vsel %vm359, %v240, 0
      %v403 = vsel %vm359, %v241, 0
      %v406 = vsel %vm359, %v242, 0
      %v409 = vsel %vm359, %v243, 0
      %v412 = vsel %vm359, %v244, 0
      %v415 = vsel %vm359, %v245, 0
      %v418 = vsel %vm359, %v246, 0
      %v421 = vsel %vm359, %v247, 0
      %v424 = vsel %vm359, %v248, 0
      %v427 = vsel %vm359, %v249, 0
      %v430 = vsel %vm359, %v250, 0
      %v433 = vsel %vm359, %v251, 0
      %v436 = vsel %vm359, %v252, 0
      %v439 = vsel %vm359, %v253, 0
      %v442 = vsel %vm359, %v254, 0
      %v445 = vsel %vm359, %v255, 0
      %v448 = vsel %vm359, %v256, 0
      %v451 = vsel %vm359, %v257, 0
      %v454 = vsel %vm359, %v258, 0
      %v457 = vsel %vm359, %v259, 0
      %v460 = vsel %vm359, %v260, 0
      %v463 = vsel %vm359, %v261, 0
      %v466 = vsel %vm359, %v262, 0
      %v469 = vsel %vm359, %v263, 0
      %v472 = vsel %vm359, %v264, 0
      %v475 = vsel %vm359, %v265, 0
      %v478 = vsel %vm359, %v266, 0
      %v481 = vsel %vm359, %v267, 0
      %v484 = vsel %vm359, %v268, 0
      %v487 = vsel %vm359, %v269, 0
      %v490 = vsel %vm359, %v270, 0
      %v493 = vsel %vm359, %v271, 0
      %v496 = vsel %vm359, %v272, 0
      %v499 = vsel %vm359, %v273, 0
      %v502 = vsel %vm359, %v274, 0
      %v505 = vsel %vm359, %v275, 0
      %v508 = vsel %vm359, %v276, 0
      %v511 = vsel %vm359, %v277, 0
      %v514 = vsel %vm359, %v278, 0
      %v517 = vsel %vm359, %v279, 0
      %v520 = vsel %vm359, %v280, 0
      %v523 = vsel %vm359, %v281, 0
      %v526 = vsel %vm359, %v282, 0
      %v529 = vsel %vm359, %v283, 0
      %v532 = vsel %vm359, %v284, 0
      %v535 = vsel %vm359, %v285, 0
      %v538 = vsel %vm359, %v286, 0
      %v541 = vsel %vm359, %v287, 0
      %v544 = vsel %vm359, %v288, 0
      %v547 = vsel %vm359, %v289, 0
      %v550 = vsel %vm359, %v290, 0
      %v553 = vsel %vm359, %v291, 0
      %v556 = vsel %vm359, %v292, 0
      %v559 = vsel %vm359, %v293, 0
      %v562 = vsel %vm359, %v294, 0
      %v565 = vsel %vm359, %v295, 0
      %v568 = vsel %vm359, %v296, 0
      %v571 = vsel %vm359, %v297, 0
      %v574 = vsel %vm359, %v298, 0
      %v577 = vsel %vm359, %v299, 0
      %v580 = vsel %vm359, %v300, 0
      %v583 = vsel %vm359, %v301, 0
      %v586 = vsel %vm359, %v302, 0
      %v589 = vsel %vm359, %v303, 0
      %v592 = vsel %vm359, %v304, 0
      %v595 = vsel %vm359, %v305, 0
      %v598 = vsel %vm359, %v306, 0
      %v601 = vsel %vm359, %v307, 0
      %v604 = vsel %vm359, %v308, 0
      %v607 = vsel %vm359, %v309, 0
      %v610 = vsel %vm359, %v310, 0
      %v613 = vsel %vm359, %v311, 0
      %v616 = vsel %vm359, %v312, 0
      %v619 = vsel %vm359, %v313, 0
      %v622 = vsel %vm359, %v314, 0
      %v625 = vsel %vm359, %v315, 0
      %v628 = vsel %vm359, %v316, 0
      %v631 = vsel %vm359, %v317, 0
      %v634 = vsel %vm359, %v318, 0
      %v637 = vsel %vm359, %v319, 0
      %v640 = vsel %vm359, %v320, 0
      %v643 = vsel %vm359, %v321, 0
      %v646 = vsel %vm359, %v322, 0
      %v649 = vsel %vm359, %v323, 0
      %v652 = vsel %vm359, %v324, 0
      %v655 = vsel %vm359, %v325, 0
      %v658 = vsel %vm359, %v326, 0
      %v661 = vsel %vm359, %v327, 0
      %v664 = vsel %vm359, %v328, 0
      %v667 = vsel %vm359, %v329, 0
      %v670 = vsel %vm359, %v330, 0
      %v673 = vsel %vm359, %v331, 0
      %v676 = vsel %vm359, %v332, 0
      %v679 = vsel %vm359, %v333, 0
      %v682 = vsel %vm359, %v334, 0
      %v685 = vsel %vm359, %v335, 0
      %v688 = vsel %vm359, %v336, 0
      %v691 = vsel %vm359, %v337, 0
      %v694 = vsel %vm359, %v338, 0
      %v697 = vsel %vm359, %v339, 0
      %v700 = vsel %vm359, %v340, 0
      %v703 = vsel %vm359, %v341, 0
      %v706 = vsel %vm359, %v342, 0
      %v709 = vsel %vm359, %v343, 0
      %v712 = vsel %vm359, %v344, 0
      %v715 = vsel %vm359, %v345, 0
      %v718 = vsel %vm359, %v346, 0
      %v721 = vsel %vm359, %v347, 0
      %v724 = vsel %vm359, %v348, 0
      %v727 = vsel %vm359, %v349, 0
      %v730 = vsel %vm359, %v350, 0
      %v733 = vsel %vm359, %v351, 0
      %v736 = vsel %vm359, %v352, 0
      %v739 = vsel %vm359, %v353, 0
      %v742 = vsel %vm359, %v354, 0
      %744 = vmatprep.subr.mxu0 0.0
      %745 = vmatpush1.msra.mxu0 %v355
      %746 = vmatprep.subr.mxu0 0.0
      %747 = vmatpush1.msra.mxu0 %v356
      %748 = vmatprep.subr.mxu0 0.0
      %749 = vmatpush1.msra.mxu0 %v357
      %750 = vmatprep.subr.mxu0 0.0
      %751 = vmatpush1.msra.mxu0 %v358
      %752 = vmatprep.subr.mxu0 0.0
      %753 = vmatpush1.msra.mxu0 0.0
      %754 = vmatprep.subr.mxu0 0.0
      %755 = vmatpush1.msra.mxu0 0.0
      %756 = vmatprep.subr.mxu0 0.0
      %757 = vmatpush1.msra.mxu0 0.0
      %758 = vmatprep.subr.mxu0 0.0
      %759 = vmatpush1.msra.mxu0 0.0
      %760 = vmatprep.subr.mxu0 0.0
      %761 = vmatpush1.msra.mxu0 0.0
      %762 = vmatprep.subr.mxu0 0.0
      %763 = vmatpush1.msra.mxu0 0.0
      %764 = vmatprep.subr.mxu0 0.0
      %765 = vmatpush1.msra.mxu0 0.0
      %766 = vmatprep.subr.mxu0 0.0
      %767 = vmatpush1.msra.mxu0 0.0
      %768 = vmatprep.subr.mxu0 0.0
      %769 = vmatpush1.msra.mxu0 0.0
      %770 = vmatprep.subr.mxu0 0.0
      %771 = vmatpush1.msra.mxu0 0.0
      %772 = vmatprep.subr.mxu0 0.0
      %773 = vmatpush1.msra.mxu0 0.0
      %774 = vmatprep.subr.mxu0 0.0
      %775 = vmatpush1.msra.mxu0 0.0
      %776 = vmatprep.subr.mxu0 0.0
      %777 = vmatpush1.msra.mxu0 0.0
      %778 = vmatprep.subr.mxu0 0.0
      %779 = vmatpush1.msra.mxu0 0.0
      %780 = vmatprep.subr.mxu0 0.0
      %781 = vmatpush1.msra.mxu0 0.0
      %782 = vmatprep.subr.mxu0 0.0
      %783 = vmatpush1.msra.mxu0 0.0
      %784 = vmatprep.subr.mxu0 0.0
      %785 = vmatpush1.msra.mxu0 0.0
      %786 = vmatprep.subr.mxu0 0.0
      %787 = vmatpush1.msra.mxu0 0.0
      %788 = vmatprep.subr.mxu0 0.0
      %789 = vmatpush1.msra.mxu0 0.0
      %790 = vmatprep.subr.mxu0 0.0
      %791 = vmatpush1.msra.mxu0 0.0
      %792 = vmatprep.subr.mxu0 0.0
      %793 = vmatpush1.msra.mxu0 0.0
      %794 = vmatprep.subr.mxu0 0.0
      %795 = vmatpush1.msra.mxu0 0.0
      %796 = vmatprep.subr.mxu0 0.0
      %797 = vmatpush1.msra.mxu0 0.0
      %798 = vmatprep.subr.mxu0 0.0
      %799 = vmatpush1.msra.mxu0 0.0
      %800 = vmatprep.subr.mxu0 0.0
      %801 = vmatpush1.msra.mxu0 0.0
      %802 = vmatprep.subr.mxu0 0.0
      %803 = vmatpush1.msra.mxu0 0.0
      %804 = vmatprep.subr.mxu0 0.0
      %805 = vmatpush1.msra.mxu0 0.0
      %806 = vmatprep.subr.mxu0 0.0
      %807 = vmatpush1.msra.mxu0 0.0
      %808 = vmatprep.mubr.f32.mxu0 0.0
      %809 = vmatmul.mubr.f32.gmra.mrb[0].mxu0 %v361
      %v810 = vpop.f32.mrb[0].mxu0
      %v811 = vadd.f32 0.0, %v810
      %v812 = vpop.f32.mrb[0].mxu0
      %813 = vmatprep.mubr.f32.mxu0 0.0
      %814 = vmatmul.mubr.f32.gmra.mrb[0].mxu0 %v364
      %v815 = vpop.f32.mrb[0].mxu0
      %v816 = vadd.f32 0.0, %v815
      %v817 = vpop.f32.mrb[0].mxu0
      %818 = vmatprep.mubr.f32.mxu0 0.0
      %819 = vmatmul.mubr.f32.gmra.mrb[0].mxu0 %v367
      %v820 = vpop.f32.mrb[0].mxu0
      %v821 = vadd.f32 0.0, %v820
      %v822 = vpop.f32.mrb[0].mxu0
      %823 = vmatprep.mubr.f32.mxu0 0.0
      %824 = vmatmul.mubr.f32.gmra.mrb[0].mxu0 %v370
      %v825 = vpop.f32.mrb[0].mxu0
      %v826 = vadd.f32 0.0, %v825
      %v827 = vpop.f32.mrb[0].mxu0
      %828 = vmatprep.mubr.f32.mxu0 0.0
      %829 = vmatmul.mubr.f32.gmra.mrb[0].mxu0 %v373
      %v830 = vpop.f32.mrb[0].mxu0
      %v831 = vadd.f32 0.0, %v830
      %v832 = vpop.f32.mrb[0].mxu0
      %833 = vmatprep.mubr.f32.mxu0 0.0
      %834 = vmatmul.mubr.f32.gmra.mrb[0].mxu0 %v376
      %v835 = vpop.f32.mrb[0].mxu0
      %v836 = vadd.f32 0.0, %v835
      %v837 = vpop.f32.mrb[0].mxu0
      %838 = vmatprep.mubr.f32.mxu0 0.0
      %839 = vmatmul.mubr.f32.gmra.mrb[0].mxu0 %v379
      %v840 = vpop.f32.mrb[0].mxu0
      %v841 = vadd.f32 0.0, %v840
      %v842 = vpop.f32.mrb[0].mxu0
      %843 = vmatprep.mubr.f32.mxu0 0.0
      %844 = vmatmul.mubr.f32.gmra.mrb[0].mxu0 %v382
      %v845 = vpop.f32.mrb[0].mxu0
      %v846 = vadd.f32 0.0, %v845
      %v847 = vpop.f32.mrb[0].mxu0
      %848 = vmatprep.mubr.f32.mxu0 0.0
      %849 = vmatmul.mubr.f32.gmra.mrb[0].mxu0 %v385
      %v850 = vpop.f32.mrb[0].mxu0
      %v851 = vadd.f32 0.0, %v850
      %v852 = vpop.f32.mrb[0].mxu0
      %853 = vmatprep.mubr.f32.mxu0 0.0
      %854 = vmatmul.mubr.f32.gmra.mrb[0].mxu0 %v388
      %v855 = vpop.f32.mrb[0].mxu0
      %v856 = vadd.f32 0.0, %v855
      %v857 = vpop.f32.mrb[0].mxu0
      %858 = vmatprep.mubr.f32.mxu0 0.0
      %859 = vmatmul.mubr.f32.gmra.mrb[0].mxu0 %v391
      %v860 = vpop.f32.mrb[0].mxu0
      %v861 = vadd.f32 0.0, %v860
      %v862 = vpop.f32.mrb[0].mxu0
      %863 = vmatprep.mubr.f32.mxu0 0.0
      %864 = vmatmul.mubr.f32.gmra.mrb[0].mxu0 %v394
      %v865 = vpop.f32.mrb[0].mxu0
      %v866 = vadd.f32 0.0, %v865
      %v867 = vpop.f32.mrb[0].mxu0
      %868 = vmatprep.mubr.f32.mxu0 0.0
      %869 = vmatmul.mubr.f32.gmra.mrb[0].mxu0 %v397
      %v870 = vpop.f32.mrb[0].mxu0
      %v871 = vadd.f32 0.0, %v870
      %v872 = vpop.f32.mrb[0].mxu0
      %873 = vmatprep.mubr.f32.mxu0 0.0
      %874 = vmatmul.mubr.f32.gmra.mrb[0].mxu0 %v400
      %v875 = vpop.f32.mrb[0].mxu0
      %v876 = vadd.f32 0.0, %v875
      %v877 = vpop.f32.mrb[0].mxu0
      %878 = vmatprep.mubr.f32.mxu0 0.0
      %879 = vmatmul.mubr.f32.gmra.mrb[0].mxu0 %v403
      %v880 = vpop.f32.mrb[0].mxu0
      %v881 = vadd.f32 0.0, %v880
      %v882 = vpop.f32.mrb[0].mxu0
      %883 = vmatprep.mubr.f32.mxu0 0.0
      %884 = vmatmul.mubr.f32.gmra.mrb[0].mxu0 %v406
      %v885 = vpop.f32.mrb[0].mxu0
      %v886 = vadd.f32 0.0, %v885
      %v887 = vpop.f32.mrb[0].mxu0
      %888 = vmatprep.mubr.f32.mxu0 0.0
      %889 = vmatmul.mubr.f32.gmra.mrb[0].mxu0 %v409
      %v890 = vpop.f32.mrb[0].mxu0
      %v891 = vadd.f32 0.0, %v890
      %v892 = vpop.f32.mrb[0].mxu0
      %893 = vmatprep.mubr.f32.mxu0 0.0
      %894 = vmatmul.mubr.f32.gmra.mrb[0].mxu0 %v412
      %v895 = vpop.f32.mrb[0].mxu0
      %v896 = vadd.f32 0.0, %v895
      %v897 = vpop.f32.mrb[0].mxu0
      %898 = vmatprep.mubr.f32.mxu0 0.0
      %899 = vmatmul.mubr.f32.gmra.mrb[0].mxu0 %v415
      %v900 = vpop.f32.mrb[0].mxu0
      %v901 = vadd.f32 0.0, %v900
      %v902 = vpop.f32.mrb[0].mxu0
      %903 = vmatprep.mubr.f32.mxu0 0.0
      %904 = vmatmul.mubr.f32.gmra.mrb[0].mxu0 %v418
      %v905 = vpop.f32.mrb[0].mxu0
      %v906 = vadd.f32 0.0, %v905
      %v907 = vpop.f32.mrb[0].mxu0
      %908 = vmatprep.mubr.f32.mxu0 0.0
      %909 = vmatmul.mubr.f32.gmra.mrb[0].mxu0 %v421
      %v910 = vpop.f32.mrb[0].mxu0
      %v911 = vadd.f32 0.0, %v910
      %v912 = vpop.f32.mrb[0].mxu0
      %913 = vmatprep.mubr.f32.mxu0 0.0
      %914 = vmatmul.mubr.f32.gmra.mrb[0].mxu0 %v424
      %v915 = vpop.f32.mrb[0].mxu0
      %v916 = vadd.f32 0.0, %v915
      %v917 = vpop.f32.mrb[0].mxu0
      %918 = vmatprep.mubr.f32.mxu0 0.0
      %919 = vmatmul.mubr.f32.gmra.mrb[0].mxu0 %v427
      %v920 = vpop.f32.mrb[0].mxu0
      %v921 = vadd.f32 0.0, %v920
      %v922 = vpop.f32.mrb[0].mxu0
      %923 = vmatprep.mubr.f32.mxu0 0.0
      %924 = vmatmul.mubr.f32.gmra.mrb[0].mxu0 %v430
      %v925 = vpop.f32.mrb[0].mxu0
      %v926 = vadd.f32 0.0, %v925
      %v927 = vpop.f32.mrb[0].mxu0
      %928 = vmatprep.mubr.f32.mxu0 0.0
      %929 = vmatmul.mubr.f32.gmra.mrb[0].mxu0 %v433
      %v930 = vpop.f32.mrb[0].mxu0
      %v931 = vadd.f32 0.0, %v930
      %v932 = vpop.f32.mrb[0].mxu0
      %933 = vmatprep.mubr.f32.mxu0 0.0
      %934 = vmatmul.mubr.f32.gmra.mrb[0].mxu0 %v436
      %v935 = vpop.f32.mrb[0].mxu0
      %v936 = vadd.f32 0.0, %v935
      %v937 = vpop.f32.mrb[0].mxu0
      %938 = vmatprep.mubr.f32.mxu0 0.0
      %939 = vmatmul.mubr.f32.gmra.mrb[0].mxu0 %v439
      %v940 = vpop.f32.mrb[0].mxu0
      %v941 = vadd.f32 0.0, %v940
      %v942 = vpop.f32.mrb[0].mxu0
      %943 = vmatprep.mubr.f32.mxu0 0.0
      %944 = vmatmul.mubr.f32.gmra.mrb[0].mxu0 %v442
      %v945 = vpop.f32.mrb[0].mxu0
      %v946 = vadd.f32 0.0, %v945
      %v947 = vpop.f32.mrb[0].mxu0
      %948 = vmatprep.mubr.f32.mxu0 0.0
      %949 = vmatmul.mubr.f32.gmra.mrb[0].mxu0 %v445
      %v950 = vpop.f32.mrb[0].mxu0
      %v951 = vadd.f32 0.0, %v950
      %v952 = vpop.f32.mrb[0].mxu0
      %953 = vmatprep.mubr.f32.mxu0 0.0
      %954 = vmatmul.mubr.f32.gmra.mrb[0].mxu0 %v448
      %v955 = vpop.f32.mrb[0].mxu0
      %v956 = vadd.f32 0.0, %v955
      %v957 = vpop.f32.mrb[0].mxu0
      %958 = vmatprep.mubr.f32.mxu0 0.0
      %959 = vmatmul.mubr.f32.gmra.mrb[0].mxu0 %v451
      %v960 = vpop.f32.mrb[0].mxu0
      %v961 = vadd.f32 0.0, %v960
      %v962 = vpop.f32.mrb[0].mxu0
      %963 = vmatprep.mubr.f32.mxu0 0.0
      %964 = vmatmul.mubr.f32.gmra.mrb[0].mxu0 %v454
      %v965 = vpop.f32.mrb[0].mxu0
      %v966 = vadd.f32 0.0, %v965
      %v967 = vpop.f32.mrb[0].mxu0
      %968 = vmatprep.mubr.f32.mxu0 0.0
      %969 = vmatmul.mubr.f32.gmra.mrb[0].mxu0 %v457
      %v970 = vpop.f32.mrb[0].mxu0
      %v971 = vadd.f32 0.0, %v970
      %v972 = vpop.f32.mrb[0].mxu0
      %973 = vmatprep.mubr.f32.mxu0 0.0
      %974 = vmatmul.mubr.f32.gmra.mrb[0].mxu0 %v460
      %v975 = vpop.f32.mrb[0].mxu0
      %v976 = vadd.f32 0.0, %v975
      %v977 = vpop.f32.mrb[0].mxu0
      %978 = vmatprep.mubr.f32.mxu0 0.0
      %979 = vmatmul.mubr.f32.gmra.mrb[0].mxu0 %v463
      %v980 = vpop.f32.mrb[0].mxu0
      %v981 = vadd.f32 0.0, %v980
      %v982 = vpop.f32.mrb[0].mxu0
      %983 = vmatprep.mubr.f32.mxu0 0.0
      %984 = vmatmul.mubr.f32.gmra.mrb[0].mxu0 %v466
      %v985 = vpop.f32.mrb[0].mxu0
      %v986 = vadd.f32 0.0, %v985
      %v987 = vpop.f32.mrb[0].mxu0
      %988 = vmatprep.mubr.f32.mxu0 0.0
      %989 = vmatmul.mubr.f32.gmra.mrb[0].mxu0 %v469
      %v990 = vpop.f32.mrb[0].mxu0
      %v991 = vadd.f32 0.0, %v990
      %v992 = vpop.f32.mrb[0].mxu0
      %993 = vmatprep.mubr.f32.mxu0 0.0
      %994 = vmatmul.mubr.f32.gmra.mrb[0].mxu0 %v472
      %v995 = vpop.f32.mrb[0].mxu0
      %v996 = vadd.f32 0.0, %v995
      %v997 = vpop.f32.mrb[0].mxu0
      %998 = vmatprep.mubr.f32.mxu0 0.0
      %999 = vmatmul.mubr.f32.gmra.mrb[0].mxu0 %v475
      %v1000 = vpop.f32.mrb[0].mxu0
      %v1001 = vadd.f32 0.0, %v1000
      %v1002 = vpop.f32.mrb[0].mxu0
      %1003 = vmatprep.mubr.f32.mxu0 0.0
      %1004 = vmatmul.mubr.f32.gmra.mrb[0].mxu0 %v478
      %v1005 = vpop.f32.mrb[0].mxu0
      %v1006 = vadd.f32 0.0, %v1005
      %v1007 = vpop.f32.mrb[0].mxu0
      %1008 = vmatprep.mubr.f32.mxu0 0.0
      %1009 = vmatmul.mubr.f32.gmra.mrb[0].mxu0 %v481
      %v1010 = vpop.f32.mrb[0].mxu0
      %v1011 = vadd.f32 0.0, %v1010
      %v1012 = vpop.f32.mrb[0].mxu0
      %1013 = vmatprep.mubr.f32.mxu0 0.0
      %1014 = vmatmul.mubr.f32.gmra.mrb[0].mxu0 %v484
      %v1015 = vpop.f32.mrb[0].mxu0
      %v1016 = vadd.f32 0.0, %v1015
      %v1017 = vpop.f32.mrb[0].mxu0
      %1018 = vmatprep.mubr.f32.mxu0 0.0
      %1019 = vmatmul.mubr.f32.gmra.mrb[0].mxu0 %v487
      %v1020 = vpop.f32.mrb[0].mxu0
      %v1021 = vadd.f32 0.0, %v1020
      %v1022 = vpop.f32.mrb[0].mxu0
      %1023 = vmatprep.mubr.f32.mxu0 0.0
      %1024 = vmatmul.mubr.f32.gmra.mrb[0].mxu0 %v490
      %v1025 = vpop.f32.mrb[0].mxu0
      %v1026 = vadd.f32 0.0, %v1025
      %v1027 = vpop.f32.mrb[0].mxu0
      %1028 = vmatprep.mubr.f32.mxu0 0.0
      %1029 = vmatmul.mubr.f32.gmra.mrb[0].mxu0 %v493
      %v1030 = vpop.f32.mrb[0].mxu0
      %v1031 = vadd.f32 0.0, %v1030
      %v1032 = vpop.f32.mrb[0].mxu0
      %1033 = vmatprep.mubr.f32.mxu0 0.0
      %1034 = vmatmul.mubr.f32.gmra.mrb[0].mxu0 %v496
      %v1035 = vpop.f32.mrb[0].mxu0
      %v1036 = vadd.f32 0.0, %v1035
      %v1037 = vpop.f32.mrb[0].mxu0
      %1038 = vmatprep.mubr.f32.mxu0 0.0
      %1039 = vmatmul.mubr.f32.gmra.mrb[0].mxu0 %v499
      %v1040 = vpop.f32.mrb[0].mxu0
      %v1041 = vadd.f32 0.0, %v1040
      %v1042 = vpop.f32.mrb[0].mxu0
      %1043 = vmatprep.mubr.f32.mxu0 0.0
      %1044 = vmatmul.mubr.f32.gmra.mrb[0].mxu0 %v502
      %v1045 = vpop.f32.mrb[0].mxu0
      %v1046 = vadd.f32 0.0, %v1045
      %v1047 = vpop.f32.mrb[0].mxu0
      %1048 = vmatprep.mubr.f32.mxu0 0.0
      %1049 = vmatmul.mubr.f32.gmra.mrb[0].mxu0 %v505
      %v1050 = vpop.f32.mrb[0].mxu0
      %v1051 = vadd.f32 0.0, %v1050
      %v1052 = vpop.f32.mrb[0].mxu0
      %1053 = vmatprep.mubr.f32.mxu0 0.0
      %1054 = vmatmul.mubr.f32.gmra.mrb[0].mxu0 %v508
      %v1055 = vpop.f32.mrb[0].mxu0
      %v1056 = vadd.f32 0.0, %v1055
      %v1057 = vpop.f32.mrb[0].mxu0
      %1058 = vmatprep.mubr.f32.mxu0 0.0
      %1059 = vmatmul.mubr.f32.gmra.mrb[0].mxu0 %v511
      %v1060 = vpop.f32.mrb[0].mxu0
      %v1061 = vadd.f32 0.0, %v1060
      %v1062 = vpop.f32.mrb[0].mxu0
      %1063 = vmatprep.mubr.f32.mxu0 0.0
      %1064 = vmatmul.mubr.f32.gmra.mrb[0].mxu0 %v514
      %v1065 = vpop.f32.mrb[0].mxu0
      %v1066 = vadd.f32 0.0, %v1065
      %v1067 = vpop.f32.mrb[0].mxu0
      %1068 = vmatprep.mubr.f32.mxu0 0.0
      %1069 = vmatmul.mubr.f32.gmra.mrb[0].mxu0 %v517
      %v1070 = vpop.f32.mrb[0].mxu0
      %v1071 = vadd.f32 0.0, %v1070
      %v1072 = vpop.f32.mrb[0].mxu0
      %1073 = vmatprep.mubr.f32.mxu0 0.0
      %1074 = vmatmul.mubr.f32.gmra.mrb[0].mxu0 %v520
      %v1075 = vpop.f32.mrb[0].mxu0
      %v1076 = vadd.f32 0.0, %v1075
      %v1077 = vpop.f32.mrb[0].mxu0
      %1078 = vmatprep.mubr.f32.mxu0 0.0
      %1079 = vmatmul.mubr.f32.gmra.mrb[0].mxu0 %v523
      %v1080 = vpop.f32.mrb[0].mxu0
      %v1081 = vadd.f32 0.0, %v1080
      %v1082 = vpop.f32.mrb[0].mxu0
      %1083 = vmatprep.mubr.f32.mxu0 0.0
      %1084 = vmatmul.mubr.f32.gmra.mrb[0].mxu0 %v526
      %v1085 = vpop.f32.mrb[0].mxu0
      %v1086 = vadd.f32 0.0, %v1085
      %v1087 = vpop.f32.mrb[0].mxu0
      %1088 = vmatprep.mubr.f32.mxu0 0.0
      %1089 = vmatmul.mubr.f32.gmra.mrb[0].mxu0 %v529
      %v1090 = vpop.f32.mrb[0].mxu0
      %v1091 = vadd.f32 0.0, %v1090
      %v1092 = vpop.f32.mrb[0].mxu0
      %1093 = vmatprep.mubr.f32.mxu0 0.0
      %1094 = vmatmul.mubr.f32.gmra.mrb[0].mxu0 %v532
      %v1095 = vpop.f32.mrb[0].mxu0
      %v1096 = vadd.f32 0.0, %v1095
      %v1097 = vpop.f32.mrb[0].mxu0
      %1098 = vmatprep.mubr.f32.mxu0 0.0
      %1099 = vmatmul.mubr.f32.gmra.mrb[0].mxu0 %v535
      %v1100 = vpop.f32.mrb[0].mxu0
      %v1101 = vadd.f32 0.0, %v1100
      %v1102 = vpop.f32.mrb[0].mxu0
      %1103 = vmatprep.mubr.f32.mxu0 0.0
      %1104 = vmatmul.mubr.f32.gmra.mrb[0].mxu0 %v538
      %v1105 = vpop.f32.mrb[0].mxu0
      %v1106 = vadd.f32 0.0, %v1105
      %v1107 = vpop.f32.mrb[0].mxu0
      %1108 = vmatprep.mubr.f32.mxu0 0.0
      %1109 = vmatmul.mubr.f32.gmra.mrb[0].mxu0 %v541
      %v1110 = vpop.f32.mrb[0].mxu0
      %v1111 = vadd.f32 0.0, %v1110
      %v1112 = vpop.f32.mrb[0].mxu0
      %1113 = vmatprep.mubr.f32.mxu0 0.0
      %1114 = vmatmul.mubr.f32.gmra.mrb[0].mxu0 %v544
      %v1115 = vpop.f32.mrb[0].mxu0
      %v1116 = vadd.f32 0.0, %v1115
      %v1117 = vpop.f32.mrb[0].mxu0
      %1118 = vmatprep.mubr.f32.mxu0 0.0
      %1119 = vmatmul.mubr.f32.gmra.mrb[0].mxu0 %v547
      %v1120 = vpop.f32.mrb[0].mxu0
      %v1121 = vadd.f32 0.0, %v1120
      %v1122 = vpop.f32.mrb[0].mxu0
      %1123 = vmatprep.mubr.f32.mxu0 0.0
      %1124 = vmatmul.mubr.f32.gmra.mrb[0].mxu0 %v550
      %v1125 = vpop.f32.mrb[0].mxu0
      %v1126 = vadd.f32 0.0, %v1125
      %v1127 = vpop.f32.mrb[0].mxu0
      %1128 = vmatprep.mubr.f32.mxu0 0.0
      %1129 = vmatmul.mubr.f32.gmra.mrb[0].mxu0 %v553
      %v1130 = vpop.f32.mrb[0].mxu0
      %v1131 = vadd.f32 0.0, %v1130
      %v1132 = vpop.f32.mrb[0].mxu0
      %1133 = vmatprep.mubr.f32.mxu0 0.0
      %1134 = vmatmul.mubr.f32.gmra.mrb[0].mxu0 %v556
      %v1135 = vpop.f32.mrb[0].mxu0
      %v1136 = vadd.f32 0.0, %v1135
      %v1137 = vpop.f32.mrb[0].mxu0
      %1138 = vmatprep.mubr.f32.mxu0 0.0
      %1139 = vmatmul.mubr.f32.gmra.mrb[0].mxu0 %v559
      %v1140 = vpop.f32.mrb[0].mxu0
      %v1141 = vadd.f32 0.0, %v1140
      %v1142 = vpop.f32.mrb[0].mxu0
      %1143 = vmatprep.mubr.f32.mxu0 0.0
      %1144 = vmatmul.mubr.f32.gmra.mrb[0].mxu0 %v562
      %v1145 = vpop.f32.mrb[0].mxu0
      %v1146 = vadd.f32 0.0, %v1145
      %v1147 = vpop.f32.mrb[0].mxu0
      %1148 = vmatprep.mubr.f32.mxu0 0.0
      %1149 = vmatmul.mubr.f32.gmra.mrb[0].mxu0 %v565
      %v1150 = vpop.f32.mrb[0].mxu0
      %v1151 = vadd.f32 0.0, %v1150
      %v1152 = vpop.f32.mrb[0].mxu0
      %1153 = vmatprep.mubr.f32.mxu0 0.0
      %1154 = vmatmul.mubr.f32.gmra.mrb[0].mxu0 %v568
      %v1155 = vpop.f32.mrb[0].mxu0
      %v1156 = vadd.f32 0.0, %v1155
      %v1157 = vpop.f32.mrb[0].mxu0
      %1158 = vmatprep.mubr.f32.mxu0 0.0
      %1159 = vmatmul.mubr.f32.gmra.mrb[0].mxu0 %v571
      %v1160 = vpop.f32.mrb[0].mxu0
      %v1161 = vadd.f32 0.0, %v1160
      %v1162 = vpop.f32.mrb[0].mxu0
      %1163 = vmatprep.mubr.f32.mxu0 0.0
      %1164 = vmatmul.mubr.f32.gmra.mrb[0].mxu0 %v574
      %v1165 = vpop.f32.mrb[0].mxu0
      %v1166 = vadd.f32 0.0, %v1165
      %v1167 = vpop.f32.mrb[0].mxu0
      %1168 = vmatprep.mubr.f32.mxu0 0.0
      %1169 = vmatmul.mubr.f32.gmra.mrb[0].mxu0 %v577
      %v1170 = vpop.f32.mrb[0].mxu0
      %v1171 = vadd.f32 0.0, %v1170
      %v1172 = vpop.f32.mrb[0].mxu0
      %1173 = vmatprep.mubr.f32.mxu0 0.0
      %1174 = vmatmul.mubr.f32.gmra.mrb[0].mxu0 %v580
      %v1175 = vpop.f32.mrb[0].mxu0
      %v1176 = vadd.f32 0.0, %v1175
      %v1177 = vpop.f32.mrb[0].mxu0
      %1178 = vmatprep.mubr.f32.mxu0 0.0
      %1179 = vmatmul.mubr.f32.gmra.mrb[0].mxu0 %v583
      %v1180 = vpop.f32.mrb[0].mxu0
      %v1181 = vadd.f32 0.0, %v1180
      %v1182 = vpop.f32.mrb[0].mxu0
      %1183 = vmatprep.mubr.f32.mxu0 0.0
      %1184 = vmatmul.mubr.f32.gmra.mrb[0].mxu0 %v586
      %v1185 = vpop.f32.mrb[0].mxu0
      %v1186 = vadd.f32 0.0, %v1185
      %v1187 = vpop.f32.mrb[0].mxu0
      %1188 = vmatprep.mubr.f32.mxu0 0.0
      %1189 = vmatmul.mubr.f32.gmra.mrb[0].mxu0 %v589
      %v1190 = vpop.f32.mrb[0].mxu0
      %v1191 = vadd.f32 0.0, %v1190
      %v1192 = vpop.f32.mrb[0].mxu0
      %1193 = vmatprep.mubr.f32.mxu0 0.0
      %1194 = vmatmul.mubr.f32.gmra.mrb[0].mxu0 %v592
      %v1195 = vpop.f32.mrb[0].mxu0
      %v1196 = vadd.f32 0.0, %v1195
      %v1197 = vpop.f32.mrb[0].mxu0
      %1198 = vmatprep.mubr.f32.mxu0 0.0
      %1199 = vmatmul.mubr.f32.gmra.mrb[0].mxu0 %v595
      %v1200 = vpop.f32.mrb[0].mxu0
      %v1201 = vadd.f32 0.0, %v1200
      %v1202 = vpop.f32.mrb[0].mxu0
      %1203 = vmatprep.mubr.f32.mxu0 0.0
      %1204 = vmatmul.mubr.f32.gmra.mrb[0].mxu0 %v598
      %v1205 = vpop.f32.mrb[0].mxu0
      %v1206 = vadd.f32 0.0, %v1205
      %v1207 = vpop.f32.mrb[0].mxu0
      %1208 = vmatprep.mubr.f32.mxu0 0.0
      %1209 = vmatmul.mubr.f32.gmra.mrb[0].mxu0 %v601
      %v1210 = vpop.f32.mrb[0].mxu0
      %v1211 = vadd.f32 0.0, %v1210
      %v1212 = vpop.f32.mrb[0].mxu0
      %1213 = vmatprep.mubr.f32.mxu0 0.0
      %1214 = vmatmul.mubr.f32.gmra.mrb[0].mxu0 %v604
      %v1215 = vpop.f32.mrb[0].mxu0
      %v1216 = vadd.f32 0.0, %v1215
      %v1217 = vpop.f32.mrb[0].mxu0
      %1218 = vmatprep.mubr.f32.mxu0 0.0
      %1219 = vmatmul.mubr.f32.gmra.mrb[0].mxu0 %v607
      %v1220 = vpop.f32.mrb[0].mxu0
      %v1221 = vadd.f32 0.0, %v1220
      %v1222 = vpop.f32.mrb[0].mxu0
      %1223 = vmatprep.mubr.f32.mxu0 0.0
      %1224 = vmatmul.mubr.f32.gmra.mrb[0].mxu0 %v610
      %v1225 = vpop.f32.mrb[0].mxu0
      %v1226 = vadd.f32 0.0, %v1225
      %v1227 = vpop.f32.mrb[0].mxu0
      %1228 = vmatprep.mubr.f32.mxu0 0.0
      %1229 = vmatmul.mubr.f32.gmra.mrb[0].mxu0 %v613
      %v1230 = vpop.f32.mrb[0].mxu0
      %v1231 = vadd.f32 0.0, %v1230
      %v1232 = vpop.f32.mrb[0].mxu0
      %1233 = vmatprep.mubr.f32.mxu0 0.0
      %1234 = vmatmul.mubr.f32.gmra.mrb[0].mxu0 %v616
      %v1235 = vpop.f32.mrb[0].mxu0
      %v1236 = vadd.f32 0.0, %v1235
      %v1237 = vpop.f32.mrb[0].mxu0
      %1238 = vmatprep.mubr.f32.mxu0 0.0
      %1239 = vmatmul.mubr.f32.gmra.mrb[0].mxu0 %v619
      %v1240 = vpop.f32.mrb[0].mxu0
      %v1241 = vadd.f32 0.0, %v1240
      %v1242 = vpop.f32.mrb[0].mxu0
      %1243 = vmatprep.mubr.f32.mxu0 0.0
      %1244 = vmatmul.mubr.f32.gmra.mrb[0].mxu0 %v622
      %v1245 = vpop.f32.mrb[0].mxu0
      %v1246 = vadd.f32 0.0, %v1245
      %v1247 = vpop.f32.mrb[0].mxu0
      %1248 = vmatprep.mubr.f32.mxu0 0.0
      %1249 = vmatmul.mubr.f32.gmra.mrb[0].mxu0 %v625
      %v1250 = vpop.f32.mrb[0].mxu0
      %v1251 = vadd.f32 0.0, %v1250
      %v1252 = vpop.f32.mrb[0].mxu0
      %1253 = vmatprep.mubr.f32.mxu0 0.0
      %1254 = vmatmul.mubr.f32.gmra.mrb[0].mxu0 %v628
      %v1255 = vpop.f32.mrb[0].mxu0
      %v1256 = vadd.f32 0.0, %v1255
      %v1257 = vpop.f32.mrb[0].mxu0
      %1258 = vmatprep.mubr.f32.mxu0 0.0
      %1259 = vmatmul.mubr.f32.gmra.mrb[0].mxu0 %v631
      %v1260 = vpop.f32.mrb[0].mxu0
      %v1261 = vadd.f32 0.0, %v1260
      %v1262 = vpop.f32.mrb[0].mxu0
      %1263 = vmatprep.mubr.f32.mxu0 0.0
      %1264 = vmatmul.mubr.f32.gmra.mrb[0].mxu0 %v634
      %v1265 = vpop.f32.mrb[0].mxu0
      %v1266 = vadd.f32 0.0, %v1265
      %v1267 = vpop.f32.mrb[0].mxu0
      %1268 = vmatprep.mubr.f32.mxu0 0.0
      %1269 = vmatmul.mubr.f32.gmra.mrb[0].mxu0 %v637
      %v1270 = vpop.f32.mrb[0].mxu0
      %v1271 = vadd.f32 0.0, %v1270
      %v1272 = vpop.f32.mrb[0].mxu0
      %1273 = vmatprep.mubr.f32.mxu0 0.0
      %1274 = vmatmul.mubr.f32.gmra.mrb[0].mxu0 %v640
      %v1275 = vpop.f32.mrb[0].mxu0
      %v1276 = vadd.f32 0.0, %v1275
      %v1277 = vpop.f32.mrb[0].mxu0
      %1278 = vmatprep.mubr.f32.mxu0 0.0
      %1279 = vmatmul.mubr.f32.gmra.mrb[0].mxu0 %v643
      %v1280 = vpop.f32.mrb[0].mxu0
      %v1281 = vadd.f32 0.0, %v1280
      %v1282 = vpop.f32.mrb[0].mxu0
      %1283 = vmatprep.mubr.f32.mxu0 0.0
      %1284 = vmatmul.mubr.f32.gmra.mrb[0].mxu0 %v646
      %v1285 = vpop.f32.mrb[0].mxu0
      %v1286 = vadd.f32 0.0, %v1285
      %v1287 = vpop.f32.mrb[0].mxu0
      %1288 = vmatprep.mubr.f32.mxu0 0.0
      %1289 = vmatmul.mubr.f32.gmra.mrb[0].mxu0 %v649
      %v1290 = vpop.f32.mrb[0].mxu0
      %v1291 = vadd.f32 0.0, %v1290
      %v1292 = vpop.f32.mrb[0].mxu0
      %1293 = vmatprep.mubr.f32.mxu0 0.0
      %1294 = vmatmul.mubr.f32.gmra.mrb[0].mxu0 %v652
      %v1295 = vpop.f32.mrb[0].mxu0
      %v1296 = vadd.f32 0.0, %v1295
      %v1297 = vpop.f32.mrb[0].mxu0
      %1298 = vmatprep.mubr.f32.mxu0 0.0
      %1299 = vmatmul.mubr.f32.gmra.mrb[0].mxu0 %v655
      %v1300 = vpop.f32.mrb[0].mxu0
      %v1301 = vadd.f32 0.0, %v1300
      %v1302 = vpop.f32.mrb[0].mxu0
      %1303 = vmatprep.mubr.f32.mxu0 0.0
      %1304 = vmatmul.mubr.f32.gmra.mrb[0].mxu0 %v658
      %v1305 = vpop.f32.mrb[0].mxu0
      %v1306 = vadd.f32 0.0, %v1305
      %v1307 = vpop.f32.mrb[0].mxu0
      %1308 = vmatprep.mubr.f32.mxu0 0.0
      %1309 = vmatmul.mubr.f32.gmra.mrb[0].mxu0 %v661
      %v1310 = vpop.f32.mrb[0].mxu0
      %v1311 = vadd.f32 0.0, %v1310
      %v1312 = vpop.f32.mrb[0].mxu0
      %1313 = vmatprep.mubr.f32.mxu0 0.0
      %1314 = vmatmul.mubr.f32.gmra.mrb[0].mxu0 %v664
      %v1315 = vpop.f32.mrb[0].mxu0
      %v1316 = vadd.f32 0.0, %v1315
      %v1317 = vpop.f32.mrb[0].mxu0
      %1318 = vmatprep.mubr.f32.mxu0 0.0
      %1319 = vmatmul.mubr.f32.gmra.mrb[0].mxu0 %v667
      %v1320 = vpop.f32.mrb[0].mxu0
      %v1321 = vadd.f32 0.0, %v1320
      %v1322 = vpop.f32.mrb[0].mxu0
      %1323 = vmatprep.mubr.f32.mxu0 0.0
      %1324 = vmatmul.mubr.f32.gmra.mrb[0].mxu0 %v670
      %v1325 = vpop.f32.mrb[0].mxu0
      %v1326 = vadd.f32 0.0, %v1325
      %v1327 = vpop.f32.mrb[0].mxu0
      %1328 = vmatprep.mubr.f32.mxu0 0.0
      %1329 = vmatmul.mubr.f32.gmra.mrb[0].mxu0 %v673
      %v1330 = vpop.f32.mrb[0].mxu0
      %v1331 = vadd.f32 0.0, %v1330
      %v1332 = vpop.f32.mrb[0].mxu0
      %1333 = vmatprep.mubr.f32.mxu0 0.0
      %1334 = vmatmul.mubr.f32.gmra.mrb[0].mxu0 %v676
      %v1335 = vpop.f32.mrb[0].mxu0
      %v1336 = vadd.f32 0.0, %v1335
      %v1337 = vpop.f32.mrb[0].mxu0
      %1338 = vmatprep.mubr.f32.mxu0 0.0
      %1339 = vmatmul.mubr.f32.gmra.mrb[0].mxu0 %v679
      %v1340 = vpop.f32.mrb[0].mxu0
      %v1341 = vadd.f32 0.0, %v1340
      %v1342 = vpop.f32.mrb[0].mxu0
      %1343 = vmatprep.mubr.f32.mxu0 0.0
      %1344 = vmatmul.mubr.f32.gmra.mrb[0].mxu0 %v682
      %v1345 = vpop.f32.mrb[0].mxu0
      %v1346 = vadd.f32 0.0, %v1345
      %v1347 = vpop.f32.mrb[0].mxu0
      %1348 = vmatprep.mubr.f32.mxu0 0.0
      %1349 = vmatmul.mubr.f32.gmra.mrb[0].mxu0 %v685
      %v1350 = vpop.f32.mrb[0].mxu0
      %v1351 = vadd.f32 0.0, %v1350
      %v1352 = vpop.f32.mrb[0].mxu0
      %1353 = vmatprep.mubr.f32.mxu0 0.0
      %1354 = vmatmul.mubr.f32.gmra.mrb[0].mxu0 %v688
      %v1355 = vpop.f32.mrb[0].mxu0
      %v1356 = vadd.f32 0.0, %v1355
      %v1357 = vpop.f32.mrb[0].mxu0
      %1358 = vmatprep.mubr.f32.mxu0 0.0
      %1359 = vmatmul.mubr.f32.gmra.mrb[0].mxu0 %v691
      %v1360 = vpop.f32.mrb[0].mxu0
      %v1361 = vadd.f32 0.0, %v1360
      %v1362 = vpop.f32.mrb[0].mxu0
      %1363 = vmatprep.mubr.f32.mxu0 0.0
      %1364 = vmatmul.mubr.f32.gmra.mrb[0].mxu0 %v694
      %v1365 = vpop.f32.mrb[0].mxu0
      %v1366 = vadd.f32 0.0, %v1365
      %v1367 = vpop.f32.mrb[0].mxu0
      %1368 = vmatprep.mubr.f32.mxu0 0.0
      %1369 = vmatmul.mubr.f32.gmra.mrb[0].mxu0 %v697
      %v1370 = vpop.f32.mrb[0].mxu0
      %v1371 = vadd.f32 0.0, %v1370
      %v1372 = vpop.f32.mrb[0].mxu0
      %1373 = vmatprep.mubr.f32.mxu0 0.0
      %1374 = vmatmul.mubr.f32.gmra.mrb[0].mxu0 %v700
      %v1375 = vpop.f32.mrb[0].mxu0
      %v1376 = vadd.f32 0.0, %v1375
      %v1377 = vpop.f32.mrb[0].mxu0
      %1378 = vmatprep.mubr.f32.mxu0 0.0
      %1379 = vmatmul.mubr.f32.gmra.mrb[0].mxu0 %v703
      %v1380 = vpop.f32.mrb[0].mxu0
      %v1381 = vadd.f32 0.0, %v1380
      %v1382 = vpop.f32.mrb[0].mxu0
      %1383 = vmatprep.mubr.f32.mxu0 0.0
      %1384 = vmatmul.mubr.f32.gmra.mrb[0].mxu0 %v706
      %v1385 = vpop.f32.mrb[0].mxu0
      %v1386 = vadd.f32 0.0, %v1385
      %v1387 = vpop.f32.mrb[0].mxu0
      %1388 = vmatprep.mubr.f32.mxu0 0.0
      %1389 = vmatmul.mubr.f32.gmra.mrb[0].mxu0 %v709
      %v1390 = vpop.f32.mrb[0].mxu0
      %v1391 = vadd.f32 0.0, %v1390
      %v1392 = vpop.f32.mrb[0].mxu0
      %1393 = vmatprep.mubr.f32.mxu0 0.0
      %1394 = vmatmul.mubr.f32.gmra.mrb[0].mxu0 %v712
      %v1395 = vpop.f32.mrb[0].mxu0
      %v1396 = vadd.f32 0.0, %v1395
      %v1397 = vpop.f32.mrb[0].mxu0
      %1398 = vmatprep.mubr.f32.mxu0 0.0
      %1399 = vmatmul.mubr.f32.gmra.mrb[0].mxu0 %v715
      %v1400 = vpop.f32.mrb[0].mxu0
      %v1401 = vadd.f32 0.0, %v1400
      %v1402 = vpop.f32.mrb[0].mxu0
      %1403 = vmatprep.mubr.f32.mxu0 0.0
      %1404 = vmatmul.mubr.f32.gmra.mrb[0].mxu0 %v718
      %v1405 = vpop.f32.mrb[0].mxu0
      %v1406 = vadd.f32 0.0, %v1405
      %v1407 = vpop.f32.mrb[0].mxu0
      %1408 = vmatprep.mubr.f32.mxu0 0.0
      %1409 = vmatmul.mubr.f32.gmra.mrb[0].mxu0 %v721
      %v1410 = vpop.f32.mrb[0].mxu0
      %v1411 = vadd.f32 0.0, %v1410
      %v1412 = vpop.f32.mrb[0].mxu0
      %1413 = vmatprep.mubr.f32.mxu0 0.0
      %1414 = vmatmul.mubr.f32.gmra.mrb[0].mxu0 %v724
      %v1415 = vpop.f32.mrb[0].mxu0
      %v1416 = vadd.f32 0.0, %v1415
      %v1417 = vpop.f32.mrb[0].mxu0
      %1418 = vmatprep.mubr.f32.mxu0 0.0
      %1419 = vmatmul.mubr.f32.gmra.mrb[0].mxu0 %v727
      %v1420 = vpop.f32.mrb[0].mxu0
      %v1421 = vadd.f32 0.0, %v1420
      %v1422 = vpop.f32.mrb[0].mxu0
      %1423 = vmatprep.mubr.f32.mxu0 0.0
      %1424 = vmatmul.mubr.f32.gmra.mrb[0].mxu0 %v730
      %v1425 = vpop.f32.mrb[0].mxu0
      %v1426 = vadd.f32 0.0, %v1425
      %v1427 = vpop.f32.mrb[0].mxu0
      %1428 = vmatprep.mubr.f32.mxu0 0.0
      %1429 = vmatmul.mubr.f32.gmra.mrb[0].mxu0 %v733
      %v1430 = vpop.f32.mrb[0].mxu0
      %v1431 = vadd.f32 0.0, %v1430
      %v1432 = vpop.f32.mrb[0].mxu0
      %1433 = vmatprep.mubr.f32.mxu0 0.0
      %1434 = vmatmul.mubr.f32.gmra.mrb[0].mxu0 %v736
      %v1435 = vpop.f32.mrb[0].mxu0
      %v1436 = vadd.f32 0.0, %v1435
      %v1437 = vpop.f32.mrb[0].mxu0
      %1438 = vmatprep.mubr.f32.mxu0 0.0
      %1439 = vmatmul.mubr.f32.gmra.mrb[0].mxu0 %v739
      %v1440 = vpop.f32.mrb[0].mxu0
      %v1441 = vadd.f32 0.0, %v1440
      %v1442 = vpop.f32.mrb[0].mxu0
      %1443 = vmatprep.mubr.f32.mxu0 0.0
      %1444 = vmatmul.mubr.f32.gmra.mrb[0].mxu0 %v742
      %v1445 = vpop.f32.mrb[0].mxu0
      %v1446 = vadd.f32 0.0, %v1445
      %v1447 = vpop.f32.mrb[0].mxu0
      %1448 = vdwg.mxu0
      %v1449 = vmax.f32 %v811, %v971
      %v1450 = vmax.f32 %v816, %v976
      %v1451 = vmax.f32 %v821, %v981
      %v1452 = vmax.f32 %v826, %v986
      %v1453 = vmax.f32 %v831, %v991
      %v1454 = vmax.f32 %v836, %v996
      %v1455 = vmax.f32 %v841, %v1001
      %v1456 = vmax.f32 %v846, %v1006
      %v1457 = vmax.f32 %v851, %v1011
      %v1458 = vmax.f32 %v856, %v1016
      %v1459 = vmax.f32 %v861, %v1021
      %v1460 = vmax.f32 %v866, %v1026
      %v1461 = vmax.f32 %v871, %v1031
      %v1462 = vmax.f32 %v876, %v1036
      %v1463 = vmax.f32 %v881, %v1041
      %v1464 = vmax.f32 %v886, %v1046
      %v1465 = vmax.f32 %v891, %v1051
      %v1466 = vmax.f32 %v896, %v1056
      %v1467 = vmax.f32 %v901, %v1061
      %v1468 = vmax.f32 %v906, %v1066
      %v1469 = vmax.f32 %v911, %v1071
      %v1470 = vmax.f32 %v916, %v1076
      %v1471 = vmax.f32 %v921, %v1081
      %v1472 = vmax.f32 %v926, %v1086
      %v1473 = vmax.f32 %v931, %v1091
      %v1474 = vmax.f32 %v936, %v1096
      %v1475 = vmax.f32 %v941, %v1101
      %v1476 = vmax.f32 %v946, %v1106
      %v1477 = vmax.f32 %v951, %v1111
      %v1478 = vmax.f32 %v956, %v1116
      %v1479 = vmax.f32 %v961, %v1121
      %v1480 = vmax.f32 %v966, %v1126
      %v1481 = vmax.f32 %v1131, %v1291
      %v1482 = vmax.f32 %v1136, %v1296
      %v1483 = vmax.f32 %v1141, %v1301
      %v1484 = vmax.f32 %v1146, %v1306
      %v1485 = vmax.f32 %v1151, %v1311
      %v1486 = vmax.f32 %v1156, %v1316
      %v1487 = vmax.f32 %v1161, %v1321
      %v1488 = vmax.f32 %v1166, %v1326
      %v1489 = vmax.f32 %v1171, %v1331
      %v1490 = vmax.f32 %v1176, %v1336
      %v1491 = vmax.f32 %v1181, %v1341
      %v1492 = vmax.f32 %v1186, %v1346
      %v1493 = vmax.f32 %v1191, %v1351
      %v1494 = vmax.f32 %v1196, %v1356
      %v1495 = vmax.f32 %v1201, %v1361
      %v1496 = vmax.f32 %v1206, %v1366
      %v1497 = vmax.f32 %v1211, %v1371
      %v1498 = vmax.f32 %v1216, %v1376
      %v1499 = vmax.f32 %v1221, %v1381
      %v1500 = vmax.f32 %v1226, %v1386
      %v1501 = vmax.f32 %v1231, %v1391
      %v1502 = vmax.f32 %v1236, %v1396
      %v1503 = vmax.f32 %v1241, %v1401
      %v1504 = vmax.f32 %v1246, %v1406
      %v1505 = vmax.f32 %v1251, %v1411
      %v1506 = vmax.f32 %v1256, %v1416
      %v1507 = vmax.f32 %v1261, %v1421
      %v1508 = vmax.f32 %v1266, %v1426
      %v1509 = vmax.f32 %v1271, %v1431
      %v1510 = vmax.f32 %v1276, %v1436
      %v1511 = vmax.f32 %v1281, %v1441
      %v1512 = vmax.f32 %v1286, %v1446
      %v1513 = vmax.f32 %v1449, %v1481
      %v1514 = vmax.f32 %v1450, %v1482
      %v1515 = vmax.f32 %v1451, %v1483
      %v1516 = vmax.f32 %v1452, %v1484
      %v1517 = vmax.f32 %v1453, %v1485
      %v1518 = vmax.f32 %v1454, %v1486
      %v1519 = vmax.f32 %v1455, %v1487
      %v1520 = vmax.f32 %v1456, %v1488
      %v1521 = vmax.f32 %v1457, %v1489
      %v1522 = vmax.f32 %v1458, %v1490
      %v1523 = vmax.f32 %v1459, %v1491
      %v1524 = vmax.f32 %v1460, %v1492
      %v1525 = vmax.f32 %v1461, %v1493
      %v1526 = vmax.f32 %v1462, %v1494
      %v1527 = vmax.f32 %v1463, %v1495
      %v1528 = vmax.f32 %v1464, %v1496
      %v1529 = vmax.f32 %v1465, %v1497
      %v1530 = vmax.f32 %v1466, %v1498
      %v1531 = vmax.f32 %v1467, %v1499
      %v1532 = vmax.f32 %v1468, %v1500
      %v1533 = vmax.f32 %v1469, %v1501
      %v1534 = vmax.f32 %v1470, %v1502
      %v1535 = vmax.f32 %v1471, %v1503
      %v1536 = vmax.f32 %v1472, %v1504
      %v1537 = vmax.f32 %v1473, %v1505
      %v1538 = vmax.f32 %v1474, %v1506
      %v1539 = vmax.f32 %v1475, %v1507
      %v1540 = vmax.f32 %v1476, %v1508
      %v1541 = vmax.f32 %v1477, %v1509
      %v1542 = vmax.f32 %v1478, %v1510
      %v1543 = vmax.f32 %v1479, %v1511
      %v1544 = vmax.f32 %v1480, %v1512
      %v1545 = vld [vmem:[%s2] sm:$0x1]
      %v1547 = vlaneseq
      %v1548 = vshrl.u32 %v1547, 7
      %v1549 = vsub.s32 0, %v1548
      %v1550 = vrot.slane %v1545, %v1549
      %v1552 = vadd.f32 %v1513, %v1550
      %v1553 = vadd.f32 %v1514, %v1550
      %v1554 = vadd.f32 %v1515, %v1550
      %v1555 = vadd.f32 %v1516, %v1550
      %v1556 = vadd.f32 %v1517, %v1550
      %v1557 = vadd.f32 %v1518, %v1550
      %v1558 = vadd.f32 %v1519, %v1550
      %v1559 = vadd.f32 %v1520, %v1550
      %v1560 = vadd.f32 %v1521, %v1550
      %v1561 = vadd.f32 %v1522, %v1550
      %v1562 = vadd.f32 %v1523, %v1550
      %v1563 = vadd.f32 %v1524, %v1550
      %v1564 = vadd.f32 %v1525, %v1550
      %v1565 = vadd.f32 %v1526, %v1550
      %v1566 = vadd.f32 %v1527, %v1550
      %v1567 = vadd.f32 %v1528, %v1550
      %v1568 = vadd.f32 %v1529, %v1550
      %v1569 = vadd.f32 %v1530, %v1550
      %v1570 = vadd.f32 %v1531, %v1550
      %v1571 = vadd.f32 %v1532, %v1550
      %v1572 = vadd.f32 %v1533, %v1550
      %v1573 = vadd.f32 %v1534, %v1550
      %v1574 = vadd.f32 %v1535, %v1550
      %v1575 = vadd.f32 %v1536, %v1550
      %v1576 = vadd.f32 %v1537, %v1550
      %v1577 = vadd.f32 %v1538, %v1550
      %v1578 = vadd.f32 %v1539, %v1550
      %v1579 = vadd.f32 %v1540, %v1550
      %v1580 = vadd.f32 %v1541, %v1550
      %v1581 = vadd.f32 %v1542, %v1550
      %v1582 = vadd.f32 %v1543, %v1550
      %v1583 = vadd.f32 %v1544, %v1550
      %v1584 = vmax.f32 %v1552, 0.0
      %v1585 = vmax.f32 %v1553, 0.0
      %v1586 = vmax.f32 %v1554, 0.0
      %v1587 = vmax.f32 %v1555, 0.0
      %v1588 = vmax.f32 %v1556, 0.0
      %v1589 = vmax.f32 %v1557, 0.0
      %v1590 = vmax.f32 %v1558, 0.0
      %v1591 = vmax.f32 %v1559, 0.0
      %v1592 = vmax.f32 %v1560, 0.0
      %v1593 = vmax.f32 %v1561, 0.0
      %v1594 = vmax.f32 %v1562, 0.0
      %v1595 = vmax.f32 %v1563, 0.0
      %v1596 = vmax.f32 %v1564, 0.0
      %v1597 = vmax.f32 %v1565, 0.0
      %v1598 = vmax.f32 %v1566, 0.0
      %v1599 = vmax.f32 %v1567, 0.0
      %v1600 = vmax.f32 %v1568, 0.0
      %v1601 = vmax.f32 %v1569, 0.0
      %v1602 = vmax.f32 %v1570, 0.0
      %v1603 = vmax.f32 %v1571, 0.0
      %v1604 = vmax.f32 %v1572, 0.0
      %v1605 = vmax.f32 %v1573, 0.0
      %v1606 = vmax.f32 %v1574, 0.0
      %v1607 = vmax.f32 %v1575, 0.0
      %v1608 = vmax.f32 %v1576, 0.0
      %v1609 = vmax.f32 %v1577, 0.0
      %v1610 = vmax.f32 %v1578, 0.0
      %v1611 = vmax.f32 %v1579, 0.0
      %v1612 = vmax.f32 %v1580, 0.0
      %v1613 = vmax.f32 %v1581, 0.0
      %v1614 = vmax.f32 %v1582, 0.0
      %v1615 = vmax.f32 %v1583, 0.0
      %vm1616 = vcmask 64512
      %1617 = vst.msk [vmem:[#allocation2] sm:$0xff] %vm1616, %v1584
      %1618 = vst.msk [vmem:[#allocation2 + $0x8] sm:$0xff] %vm1616, %v1585
      %1619 = vst.msk [vmem:[#allocation2 + $0x10] sm:$0xff] %vm1616, %v1586
      %1620 = vst.msk [vmem:[#allocation2 + $0x18] sm:$0xff] %vm1616, %v1587
      %1621 = vst.msk [vmem:[#allocation2 + $0x20] sm:$0xff] %vm1616, %v1588
      %1622 = vst.msk [vmem:[#allocation2 + $0x28] sm:$0xff] %vm1616, %v1589
      %1623 = vst.msk [vmem:[#allocation2 + $0x30] sm:$0xff] %vm1616, %v1590
      %1624 = vst.msk [vmem:[#allocation2 + $0x38] sm:$0xff] %vm1616, %v1591
      %1625 = vst.msk [vmem:[#allocation2 + $0x40] sm:$0xff] %vm1616, %v1592
      %1626 = vst.msk [vmem:[#allocation2 + $0x48] sm:$0xff] %vm1616, %v1593
      %1627 = vst.msk [vmem:[#allocation2 + $0x50] sm:$0xff] %vm1616, %v1594
      %1628 = vst.msk [vmem:[#allocation2 + $0x58] sm:$0xff] %vm1616, %v1595
      %1629 = vst.msk [vmem:[#allocation2 + $0x60] sm:$0xff] %vm1616, %v1596
      %1630 = vst.msk [vmem:[#allocation2 + $0x68] sm:$0xff] %vm1616, %v1597
      %1631 = vst.msk [vmem:[#allocation2 + $0x70] sm:$0xff] %vm1616, %v1598
      %1632 = vst.msk [vmem:[#allocation2 + $0x78] sm:$0xff] %vm1616, %v1599
      %1633 = vst.msk [vmem:[#allocation2 + $0x80] sm:$0xff] %vm1616, %v1600
      %1634 = vst.msk [vmem:[#allocation2 + $0x88] sm:$0xff] %vm1616, %v1601
      %1635 = vst.msk [vmem:[#allocation2 + $0x90] sm:$0xff] %vm1616, %v1602
      %1636 = vst.msk [vmem:[#allocation2 + $0x98] sm:$0xff] %vm1616, %v1603
      %1637 = vst.msk [vmem:[#allocation2 + $0xa0] sm:$0xff] %vm1616, %v1604
      %1638 = vst.msk [vmem:[#allocation2 + $0xa8] sm:$0xff] %vm1616, %v1605
      %1639 = vst.msk [vmem:[#allocation2 + $0xb0] sm:$0xff] %vm1616, %v1606
      %1640 = vst.msk [vmem:[#allocation2 + $0xb8] sm:$0xff] %vm1616, %v1607
      %1641 = vst.msk [vmem:[#allocation2 + $0xc0] sm:$0xff] %vm1616, %v1608
      %1642 = vst.msk [vmem:[#allocation2 + $0xc8] sm:$0xff] %vm1616, %v1609
      %1643 = vst.msk [vmem:[#allocation2 + $0xd0] sm:$0xff] %vm1616, %v1610
      %1644 = vst.msk [vmem:[#allocation2 + $0xd8] sm:$0xff] %vm1616, %v1611
      %1645 = vst.msk [vmem:[#allocation2 + $0xe0] sm:$0xff] %vm1616, %v1612
      %1646 = vst.msk [vmem:[#allocation2 + $0xe8] sm:$0xff] %vm1616, %v1613
      %1647 = vst.msk [vmem:[#allocation2 + $0xf0] sm:$0xff] %vm1616, %v1614
      %1648 = vst.msk [vmem:[#allocation2 + $0xf8] sm:$0xff] %vm1616, %v1615
      %v1649 = vld [vmem:[#allocation2] sm:$0xff]
      %v1650 = vld [vmem:[#allocation2 + $0x8] sm:$0xff]
      %v1651 = vld [vmem:[#allocation2 + $0x10] sm:$0xff]
      %v1652 = vld [vmem:[#allocation2 + $0x18] sm:$0xff]
      %v1653 = vld [vmem:[#allocation2 + $0x20] sm:$0xff]
      %v1654 = vld [vmem:[#allocation2 + $0x28] sm:$0xff]
      %v1655 = vld [vmem:[#allocation2 + $0x30] sm:$0xff]
      %v1656 = vld [vmem:[#allocation2 + $0x38] sm:$0xff]
      %v1657 = vld [vmem:[#allocation2 + $0x40] sm:$0xff]
      %v1658 = vld [vmem:[#allocation2 + $0x48] sm:$0xff]
      %v1659 = vld [vmem:[#allocation2 + $0x50] sm:$0xff]
      %v1660 = vld [vmem:[#allocation2 + $0x58] sm:$0xff]
      %v1661 = vld [vmem:[#allocation2 + $0x60] sm:$0xff]
      %v1662 = vld [vmem:[#allocation2 + $0x68] sm:$0xff]
      %v1663 = vld [vmem:[#allocation2 + $0x70] sm:$0xff]
      %v1664 = vld [vmem:[#allocation2 + $0x78] sm:$0xff]
      %v1665 = vld [vmem:[#allocation2 + $0x80] sm:$0xff]
      %v1666 = vld [vmem:[#allocation2 + $0x88] sm:$0xff]
      %v1667 = vld [vmem:[#allocation2 + $0x1] sm:$0xff]
      %v1668 = vld [vmem:[#allocation2 + $0x9] sm:$0xff]
      %v1669 = vld [vmem:[#allocation2 + $0x11] sm:$0xff]
      %v1670 = vld [vmem:[#allocation2 + $0x19] sm:$0xff]
      %v1671 = vld [vmem:[#allocation2 + $0x21] sm:$0xff]
      %v1672 = vld [vmem:[#allocation2 + $0x29] sm:$0xff]
      %v1673 = vld [vmem:[#allocation2 + $0x31] sm:$0xff]
      %v1674 = vld [vmem:[#allocation2 + $0x39] sm:$0xff]
      %v1675 = vld [vmem:[#allocation2 + $0x41] sm:$0xff]
      %v1676 = vld [vmem:[#allocation2 + $0x49] sm:$0xff]
      %v1677 = vld [vmem:[#allocation2 + $0x51] sm:$0xff]
      %v1678 = vld [vmem:[#allocation2 + $0x59] sm:$0xff]
      %v1679 = vld [vmem:[#allocation2 + $0x61] sm:$0xff]
      %v1680 = vld [vmem:[#allocation2 + $0x69] sm:$0xff]
      %v1681 = vld [vmem:[#allocation2 + $0x71] sm:$0xff]
      %v1682 = vld [vmem:[#allocation2 + $0x79] sm:$0xff]
      %v1683 = vld [vmem:[#allocation2 + $0x81] sm:$0xff]
      %v1684 = vld [vmem:[#allocation2 + $0x89] sm:$0xff]
      %v1685 = vld [vmem:[#allocation2 + $0x2] sm:$0xff]
      %v1686 = vld [vmem:[#allocation2 + $0xa] sm:$0xff]
      %v1687 = vld [vmem:[#allocation2 + $0x12] sm:$0xff]
      %v1688 = vld [vmem:[#allocation2 + $0x1a] sm:$0xff]
      %v1689 = vld [vmem:[#allocation2 + $0x22] sm:$0xff]
      %v1690 = vld [vmem:[#allocation2 + $0x2a] sm:$0xff]
      %v1691 = vld [vmem:[#allocation2 + $0x32] sm:$0xff]
      %v1692 = vld [vmem:[#allocation2 + $0x3a] sm:$0xff]
      %v1693 = vld [vmem:[#allocation2 + $0x42] sm:$0xff]
      %v1694 = vld [vmem:[#allocation2 + $0x4a] sm:$0xff]
      %v1695 = vld [vmem:[#allocation2 + $0x52] sm:$0xff]
      %v1696 = vld [vmem:[#allocation2 + $0x5a] sm:$0xff]
      %v1697 = vld [vmem:[#allocation2 + $0x62] sm:$0xff]
      %v1698 = vld [vmem:[#allocation2 + $0x6a] sm:$0xff]
      %v1699 = vld [vmem:[#allocation2 + $0x72] sm:$0xff]
      %v1700 = vld [vmem:[#allocation2 + $0x7a] sm:$0xff]
      %v1701 = vld [vmem:[#allocation2 + $0x82] sm:$0xff]
      %v1702 = vld [vmem:[#allocation2 + $0x8a] sm:$0xff]
      %v1703 = vld [vmem:[#allocation2 + $0x3] sm:$0xff]
      %v1704 = vld [vmem:[#allocation2 + $0xb] sm:$0xff]
      %v1705 = vld [vmem:[#allocation2 + $0x13] sm:$0xff]
      %v1706 = vld [vmem:[#allocation2 + $0x1b] sm:$0xff]
      %v1707 = vld [vmem:[#allocation2 + $0x23] sm:$0xff]
      %v1708 = vld [vmem:[#allocation2 + $0x2b] sm:$0xff]
      %v1709 = vld [vmem:[#allocation2 + $0x33] sm:$0xff]
      %v1710 = vld [vmem:[#allocation2 + $0x3b] sm:$0xff]
      %v1711 = vld [vmem:[#allocation2 + $0x43] sm:$0xff]
      %v1712 = vld [vmem:[#allocation2 + $0x4b] sm:$0xff]
      %v1713 = vld [vmem:[#allocation2 + $0x53] sm:$0xff]
      %v1714 = vld [vmem:[#allocation2 + $0x5b] sm:$0xff]
      %v1715 = vld [vmem:[#allocation2 + $0x63] sm:$0xff]
      %v1716 = vld [vmem:[#allocation2 + $0x6b] sm:$0xff]
      %v1717 = vld [vmem:[#allocation2 + $0x73] sm:$0xff]
      %v1718 = vld [vmem:[#allocation2 + $0x7b] sm:$0xff]
      %v1719 = vld [vmem:[#allocation2 + $0x83] sm:$0xff]
      %v1720 = vld [vmem:[#allocation2 + $0x8b] sm:$0xff]
      %v1721 = vld [vmem:[#allocation2 + $0x4] sm:$0xff]
      %v1722 = vld [vmem:[#allocation2 + $0xc] sm:$0xff]
      %v1723 = vld [vmem:[#allocation2 + $0x14] sm:$0xff]
      %v1724 = vld [vmem:[#allocation2 + $0x1c] sm:$0xff]
      %v1725 = vld [vmem:[#allocation2 + $0x24] sm:$0xff]
      %v1726 = vld [vmem:[#allocation2 + $0x2c] sm:$0xff]
      %v1727 = vld [vmem:[#allocation2 + $0x34] sm:$0xff]
      %v1728 = vld [vmem:[#allocation2 + $0x3c] sm:$0xff]
      %v1729 = vld [vmem:[#allocation2 + $0x44] sm:$0xff]
      %v1730 = vld [vmem:[#allocation2 + $0x4c] sm:$0xff]
      %v1731 = vld [vmem:[#allocation2 + $0x54] sm:$0xff]
      %v1732 = vld [vmem:[#allocation2 + $0x5c] sm:$0xff]
      %v1733 = vld [vmem:[#allocation2 + $0x64] sm:$0xff]
      %v1734 = vld [vmem:[#allocation2 + $0x6c] sm:$0xff]
      %v1735 = vld [vmem:[#allocation2 + $0x74] sm:$0xff]
      %v1736 = vld [vmem:[#allocation2 + $0x7c] sm:$0xff]
      %v1737 = vld [vmem:[#allocation2 + $0x84] sm:$0xff]
      %v1738 = vld [vmem:[#allocation2 + $0x8c] sm:$0xff]
      %v1739 = vld [vmem:[#allocation2 + $0xe] sm:$0xff]
      %v1740 = vld [vmem:[#allocation2 + $0x16] sm:$0xff]
      %v1741 = vld [vmem:[#allocation2 + $0x1e] sm:$0xff]
      %v1742 = vld [vmem:[#allocation2 + $0x26] sm:$0xff]
      %v1743 = vld [vmem:[#allocation2 + $0x2e] sm:$0xff]
      %v1744 = vld [vmem:[#allocation2 + $0x36] sm:$0xff]
      %v1745 = vld [vmem:[#allocation2 + $0x3e] sm:$0xff]
      %v1746 = vld [vmem:[#allocation2 + $0x46] sm:$0xff]
      %v1747 = vld [vmem:[#allocation2 + $0x4e] sm:$0xff]
      %v1748 = vld [vmem:[#allocation2 + $0x56] sm:$0xff]
      %v1749 = vld [vmem:[#allocation2 + $0x5e] sm:$0xff]
      %v1750 = vld [vmem:[#allocation2 + $0x66] sm:$0xff]
      %v1751 = vld [vmem:[#allocation2 + $0x6e] sm:$0xff]
      %v1752 = vld [vmem:[#allocation2 + $0x76] sm:$0xff]
      %v1753 = vld [vmem:[#allocation2 + $0x7e] sm:$0xff]
      %v1754 = vld [vmem:[#allocation2 + $0x86] sm:$0xff]
      %v1755 = vld [vmem:[#allocation2 + $0x8e] sm:$0xff]
      %v1756 = vld [vmem:[#allocation2 + $0x96] sm:$0xff]
      %v1757 = vld [vmem:[#allocation2 + $0xf] sm:$0xff]
      %v1758 = vld [vmem:[#allocation2 + $0x17] sm:$0xff]
      %v1759 = vld [vmem:[#allocation2 + $0x1f] sm:$0xff]
      %v1760 = vld [vmem:[#allocation2 + $0x27] sm:$0xff]
      %v1761 = vld [vmem:[#allocation2 + $0x2f] sm:$0xff]
      %v1762 = vld [vmem:[#allocation2 + $0x37] sm:$0xff]
      %v1763 = vld [vmem:[#allocation2 + $0x3f] sm:$0xff]
      %v1764 = vld [vmem:[#allocation2 + $0x47] sm:$0xff]
      %v1765 = vld [vmem:[#allocation2 + $0x4f] sm:$0xff]
      %v1766 = vld [vmem:[#allocation2 + $0x57] sm:$0xff]
      %v1767 = vld [vmem:[#allocation2 + $0x5f] sm:$0xff]
      %v1768 = vld [vmem:[#allocation2 + $0x67] sm:$0xff]
      %v1769 = vld [vmem:[#allocation2 + $0x6f] sm:$0xff]
      %v1770 = vld [vmem:[#allocation2 + $0x77] sm:$0xff]
      %v1771 = vld [vmem:[#allocation2 + $0x7f] sm:$0xff]
      %v1772 = vld [vmem:[#allocation2 + $0x87] sm:$0xff]
      %v1773 = vld [vmem:[#allocation2 + $0x8f] sm:$0xff]
      %v1774 = vld [vmem:[#allocation2 + $0x97] sm:$0xff]
      %v1775 = vld [vmem:[#allocation2 + $0x90] sm:$0xff]
      %v1776 = vld [vmem:[#allocation2 + $0x98] sm:$0xff]
      %v1777 = vld [vmem:[#allocation2 + $0x91] sm:$0xff]
      %v1778 = vld [vmem:[#allocation2 + $0x99] sm:$0xff]
      %v1779 = vld [vmem:[#allocation2 + $0x92] sm:$0xff]
      %v1780 = vld [vmem:[#allocation2 + $0x9a] sm:$0xff]
      %v1781 = vld [vmem:[#allocation2 + $0x94] sm:$0xff]
      %v1782 = vld [vmem:[#allocation2 + $0x9c] sm:$0xff]
      %v1783 = vld [vmem:[#allocation2 + $0xa4] sm:$0xff]
      %v1784 = vld [vmem:[#allocation2 + $0x1d] sm:$0xff]
      %v1785 = vld [vmem:[#allocation2 + $0x25] sm:$0xff]
      %v1786 = vld [vmem:[#allocation2 + $0x2d] sm:$0xff]
      %v1787 = vld [vmem:[#allocation2 + $0x35] sm:$0xff]
      %v1788 = vld [vmem:[#allocation2 + $0x3d] sm:$0xff]
      %v1789 = vld [vmem:[#allocation2 + $0x45] sm:$0xff]
      %v1790 = vld [vmem:[#allocation2 + $0x4d] sm:$0xff]
      %v1791 = vld [vmem:[#allocation2 + $0x55] sm:$0xff]
      %v1792 = vld [vmem:[#allocation2 + $0x5d] sm:$0xff]
      %v1793 = vld [vmem:[#allocation2 + $0x65] sm:$0xff]
      %v1794 = vld [vmem:[#allocation2 + $0x6d] sm:$0xff]
      %v1795 = vld [vmem:[#allocation2 + $0x75] sm:$0xff]
      %v1796 = vld [vmem:[#allocation2 + $0x7d] sm:$0xff]
      %v1797 = vld [vmem:[#allocation2 + $0x85] sm:$0xff]
      %v1798 = vld [vmem:[#allocation2 + $0x8d] sm:$0xff]
      %v1799 = vld [vmem:[#allocation2 + $0x95] sm:$0xff]
      %v1800 = vld [vmem:[#allocation2 + $0x9d] sm:$0xff]
      %v1801 = vld [vmem:[#allocation2 + $0xa5] sm:$0xff]
      %v1802 = vld [vmem:[#allocation2 + $0x9e] sm:$0xff]
      %v1803 = vld [vmem:[#allocation2 + $0xa6] sm:$0xff]
      %v1804 = vld [vmem:[#allocation2 + $0x9f] sm:$0xff]
      %v1805 = vld [vmem:[#allocation2 + $0xa7] sm:$0xff]
      %v1806 = vld [vmem:[#allocation2 + $0xa0] sm:$0xff]
      %v1807 = vld [vmem:[#allocation2 + $0xa8] sm:$0xff]
      %v1808 = vld [vmem:[#allocation2 + $0xa2] sm:$0xff]
      %v1809 = vld [vmem:[#allocation2 + $0xaa] sm:$0xff]
      %v1810 = vld [vmem:[#allocation2 + $0xb2] sm:$0xff]
      %v1811 = vld [vmem:[#allocation2 + $0x93] sm:$0xff]
      %v1812 = vld [vmem:[#allocation2 + $0x9b] sm:$0xff]
      %v1813 = vld [vmem:[#allocation2 + $0xa3] sm:$0xff]
      %v1814 = vld [vmem:[#allocation2 + $0xab] sm:$0xff]
      %v1815 = vld [vmem:[#allocation2 + $0xb3] sm:$0xff]
      %v1816 = vld [vmem:[#allocation2 + $0xac] sm:$0xff]
      %v1817 = vld [vmem:[#allocation2 + $0xb4] sm:$0xff]
      %v1818 = vld [vmem:[#allocation2 + $0xad] sm:$0xff]
      %v1819 = vld [vmem:[#allocation2 + $0xb5] sm:$0xff]
      %v1820 = vld [vmem:[#allocation2 + $0xae] sm:$0xff]
      %v1821 = vld [vmem:[#allocation2 + $0xb6] sm:$0xff]
      %v1822 = vld [vmem:[#allocation2 + $0xb0] sm:$0xff]
      %v1823 = vld [vmem:[#allocation2 + $0xb8] sm:$0xff]
      %v1824 = vld [vmem:[#allocation2 + $0xc0] sm:$0xff]
      %v1825 = vld [vmem:[#allocation2 + $0xa1] sm:$0xff]
      %v1826 = vld [vmem:[#allocation2 + $0xa9] sm:$0xff]
      %v1827 = vld [vmem:[#allocation2 + $0xb1] sm:$0xff]
      %v1828 = vld [vmem:[#allocation2 + $0xb9] sm:$0xff]
      %v1829 = vld [vmem:[#allocation2 + $0xc1] sm:$0xff]
      %v1830 = vld [vmem:[#allocation2 + $0xba] sm:$0xff]
      %v1831 = vld [vmem:[#allocation2 + $0xc2] sm:$0xff]
      %v1832 = vld [vmem:[#allocation2 + $0xbb] sm:$0xff]
      %v1833 = vld [vmem:[#allocation2 + $0xc3] sm:$0xff]
      %v1834 = vld [vmem:[#allocation2 + $0xbc] sm:$0xff]
      %v1835 = vld [vmem:[#allocation2 + $0xc4] sm:$0xff]
      %1854 = vrot.lane.b32.xlu0 %v1667, 8
      %v1855 = vpop.permute.xlu0 %1854
      %1856 = vrot.lane.b32.xlu0 %v1668, 8
      %v1857 = vpop.permute.xlu0 %1856
      %1858 = vrot.lane.b32.xlu0 %v1669, 8
      %v1859 = vpop.permute.xlu0 %1858
      %1860 = vrot.lane.b32.xlu0 %v1670, 8
      %v1861 = vpop.permute.xlu0 %1860
      %1862 = vrot.lane.b32.xlu0 %v1671, 8
      %v1863 = vpop.permute.xlu0 %1862
      %1864 = vrot.lane.b32.xlu0 %v1672, 8
      %v1865 = vpop.permute.xlu0 %1864
      %1866 = vrot.lane.b32.xlu0 %v1673, 8
      %v1867 = vpop.permute.xlu0 %1866
      %1868 = vrot.lane.b32.xlu0 %v1674, 8
      %v1869 = vpop.permute.xlu0 %1868
      %1870 = vrot.lane.b32.xlu0 %v1675, 8
      %v1871 = vpop.permute.xlu0 %1870
      %1872 = vrot.lane.b32.xlu0 %v1676, 8
      %v1873 = vpop.permute.xlu0 %1872
      %1874 = vrot.lane.b32.xlu0 %v1677, 8
      %v1875 = vpop.permute.xlu0 %1874
      %1876 = vrot.lane.b32.xlu0 %v1678, 8
      %v1877 = vpop.permute.xlu0 %1876
      %1878 = vrot.lane.b32.xlu0 %v1679, 8
      %v1879 = vpop.permute.xlu0 %1878
      %1880 = vrot.lane.b32.xlu0 %v1680, 8
      %v1881 = vpop.permute.xlu0 %1880
      %1882 = vrot.lane.b32.xlu0 %v1681, 8
      %v1883 = vpop.permute.xlu0 %1882
      %1884 = vrot.lane.b32.xlu0 %v1682, 8
      %v1885 = vpop.permute.xlu0 %1884
      %1886 = vrot.lane.b32.xlu0 %v1683, 8
      %v1887 = vpop.permute.xlu0 %1886
      %1888 = vrot.lane.b32.xlu0 %v1684, 8
      %v1889 = vpop.permute.xlu0 %1888
      %1926 = vrot.lane.b32.xlu0 %v1685, 16
      %v1927 = vpop.permute.xlu0 %1926
      %1928 = vrot.lane.b32.xlu0 %v1686, 16
      %v1929 = vpop.permute.xlu0 %1928
      %1930 = vrot.lane.b32.xlu0 %v1687, 16
      %v1931 = vpop.permute.xlu0 %1930
      %1932 = vrot.lane.b32.xlu0 %v1688, 16
      %v1933 = vpop.permute.xlu0 %1932
      %1934 = vrot.lane.b32.xlu0 %v1689, 16
      %v1935 = vpop.permute.xlu0 %1934
      %1936 = vrot.lane.b32.xlu0 %v1690, 16
      %v1937 = vpop.permute.xlu0 %1936
      %1938 = vrot.lane.b32.xlu0 %v1691, 16
      %v1939 = vpop.permute.xlu0 %1938
      %1940 = vrot.lane.b32.xlu0 %v1692, 16
      %v1941 = vpop.permute.xlu0 %1940
      %1942 = vrot.lane.b32.xlu0 %v1693, 16
      %v1943 = vpop.permute.xlu0 %1942
      %1944 = vrot.lane.b32.xlu0 %v1694, 16
      %v1945 = vpop.permute.xlu0 %1944
      %1946 = vrot.lane.b32.xlu0 %v1695, 16
      %v1947 = vpop.permute.xlu0 %1946
      %1948 = vrot.lane.b32.xlu0 %v1696, 16
      %v1949 = vpop.permute.xlu0 %1948
      %1950 = vrot.lane.b32.xlu0 %v1697, 16
      %v1951 = vpop.permute.xlu0 %1950
      %1952 = vrot.lane.b32.xlu0 %v1698, 16
      %v1953 = vpop.permute.xlu0 %1952
      %1954 = vrot.lane.b32.xlu0 %v1699, 16
      %v1955 = vpop.permute.xlu0 %1954
      %1956 = vrot.lane.b32.xlu0 %v1700, 16
      %v1957 = vpop.permute.xlu0 %1956
      %1958 = vrot.lane.b32.xlu0 %v1701, 16
      %v1959 = vpop.permute.xlu0 %1958
      %1960 = vrot.lane.b32.xlu0 %v1702, 16
      %v1961 = vpop.permute.xlu0 %1960
      %1998 = vrot.lane.b32.xlu0 %v1703, 24
      %v1999 = vpop.permute.xlu0 %1998
      %2000 = vrot.lane.b32.xlu0 %v1704, 24
      %v2001 = vpop.permute.xlu0 %2000
      %2002 = vrot.lane.b32.xlu0 %v1705, 24
      %v2003 = vpop.permute.xlu0 %2002
      %2004 = vrot.lane.b32.xlu0 %v1706, 24
      %v2005 = vpop.permute.xlu0 %2004
      %2006 = vrot.lane.b32.xlu0 %v1707, 24
      %v2007 = vpop.permute.xlu0 %2006
      %2008 = vrot.lane.b32.xlu0 %v1708, 24
      %v2009 = vpop.permute.xlu0 %2008
      %2010 = vrot.lane.b32.xlu0 %v1709, 24
      %v2011 = vpop.permute.xlu0 %2010
      %2012 = vrot.lane.b32.xlu0 %v1710, 24
      %v2013 = vpop.permute.xlu0 %2012
      %2014 = vrot.lane.b32.xlu0 %v1711, 24
      %v2015 = vpop.permute.xlu0 %2014
      %2016 = vrot.lane.b32.xlu0 %v1712, 24
      %v2017 = vpop.permute.xlu0 %2016
      %2018 = vrot.lane.b32.xlu0 %v1713, 24
      %v2019 = vpop.permute.xlu0 %2018
      %2020 = vrot.lane.b32.xlu0 %v1714, 24
      %v2021 = vpop.permute.xlu0 %2020
      %2022 = vrot.lane.b32.xlu0 %v1715, 24
      %v2023 = vpop.permute.xlu0 %2022
      %2024 = vrot.lane.b32.xlu0 %v1716, 24
      %v2025 = vpop.permute.xlu0 %2024
      %2026 = vrot.lane.b32.xlu0 %v1717, 24
      %v2027 = vpop.permute.xlu0 %2026
      %2028 = vrot.lane.b32.xlu0 %v1718, 24
      %v2029 = vpop.permute.xlu0 %2028
      %2030 = vrot.lane.b32.xlu0 %v1719, 24
      %v2031 = vpop.permute.xlu0 %2030
      %2032 = vrot.lane.b32.xlu0 %v1720, 24
      %v2033 = vpop.permute.xlu0 %2032
      %2070 = vrot.lane.b32.xlu0 %v1721, 32
      %v2071 = vpop.permute.xlu0 %2070
      %2072 = vrot.lane.b32.xlu0 %v1722, 32
      %v2073 = vpop.permute.xlu0 %2072
      %2074 = vrot.lane.b32.xlu0 %v1723, 32
      %v2075 = vpop.permute.xlu0 %2074
      %2076 = vrot.lane.b32.xlu0 %v1724, 32
      %v2077 = vpop.permute.xlu0 %2076
      %2078 = vrot.lane.b32.xlu0 %v1725, 32
      %v2079 = vpop.permute.xlu0 %2078
      %2080 = vrot.lane.b32.xlu0 %v1726, 32
      %v2081 = vpop.permute.xlu0 %2080
      %2082 = vrot.lane.b32.xlu0 %v1727, 32
      %v2083 = vpop.permute.xlu0 %2082
      %2084 = vrot.lane.b32.xlu0 %v1728, 32
      %v2085 = vpop.permute.xlu0 %2084
      %2086 = vrot.lane.b32.xlu0 %v1729, 32
      %v2087 = vpop.permute.xlu0 %2086
      %2088 = vrot.lane.b32.xlu0 %v1730, 32
      %v2089 = vpop.permute.xlu0 %2088
      %2090 = vrot.lane.b32.xlu0 %v1731, 32
      %v2091 = vpop.permute.xlu0 %2090
      %2092 = vrot.lane.b32.xlu0 %v1732, 32
      %v2093 = vpop.permute.xlu0 %2092
      %2094 = vrot.lane.b32.xlu0 %v1733, 32
      %v2095 = vpop.permute.xlu0 %2094
      %2096 = vrot.lane.b32.xlu0 %v1734, 32
      %v2097 = vpop.permute.xlu0 %2096
      %2098 = vrot.lane.b32.xlu0 %v1735, 32
      %v2099 = vpop.permute.xlu0 %2098
      %2100 = vrot.lane.b32.xlu0 %v1736, 32
      %v2101 = vpop.permute.xlu0 %2100
      %2102 = vrot.lane.b32.xlu0 %v1737, 32
      %v2103 = vpop.permute.xlu0 %2102
      %2104 = vrot.lane.b32.xlu0 %v1738, 32
      %v2105 = vpop.permute.xlu0 %2104
      %2142 = vrot.lane.b32.xlu0 %v1739, 40
      %v2143 = vpop.permute.xlu0 %2142
      %2144 = vrot.lane.b32.xlu0 %v1740, 40
      %v2145 = vpop.permute.xlu0 %2144
      %2146 = vrot.lane.b32.xlu0 %v1741, 40
      %v2147 = vpop.permute.xlu0 %2146
      %2148 = vrot.lane.b32.xlu0 %v1742, 40
      %v2149 = vpop.permute.xlu0 %2148
      %2150 = vrot.lane.b32.xlu0 %v1743, 40
      %v2151 = vpop.permute.xlu0 %2150
      %2152 = vrot.lane.b32.xlu0 %v1744, 40
      %v2153 = vpop.permute.xlu0 %2152
      %2154 = vrot.lane.b32.xlu0 %v1745, 40
      %v2155 = vpop.permute.xlu0 %2154
      %2156 = vrot.lane.b32.xlu0 %v1746, 40
      %v2157 = vpop.permute.xlu0 %2156
      %2158 = vrot.lane.b32.xlu0 %v1747, 40
      %v2159 = vpop.permute.xlu0 %2158
      %2160 = vrot.lane.b32.xlu0 %v1748, 40
      %v2161 = vpop.permute.xlu0 %2160
      %2162 = vrot.lane.b32.xlu0 %v1749, 40
      %v2163 = vpop.permute.xlu0 %2162
      %2164 = vrot.lane.b32.xlu0 %v1750, 40
      %v2165 = vpop.permute.xlu0 %2164
      %2166 = vrot.lane.b32.xlu0 %v1751, 40
      %v2167 = vpop.permute.xlu0 %2166
      %2168 = vrot.lane.b32.xlu0 %v1752, 40
      %v2169 = vpop.permute.xlu0 %2168
      %2170 = vrot.lane.b32.xlu0 %v1753, 40
      %v2171 = vpop.permute.xlu0 %2170
      %2172 = vrot.lane.b32.xlu0 %v1754, 40
      %v2173 = vpop.permute.xlu0 %2172
      %2174 = vrot.lane.b32.xlu0 %v1755, 40
      %v2175 = vpop.permute.xlu0 %2174
      %2176 = vrot.lane.b32.xlu0 %v1756, 40
      %v2177 = vpop.permute.xlu0 %2176
      %2214 = vrot.lane.b32.xlu0 %v1757, 48
      %v2215 = vpop.permute.xlu0 %2214
      %2216 = vrot.lane.b32.xlu0 %v1758, 48
      %v2217 = vpop.permute.xlu0 %2216
      %2218 = vrot.lane.b32.xlu0 %v1759, 48
      %v2219 = vpop.permute.xlu0 %2218
      %2220 = vrot.lane.b32.xlu0 %v1760, 48
      %v2221 = vpop.permute.xlu0 %2220
      %2222 = vrot.lane.b32.xlu0 %v1761, 48
      %v2223 = vpop.permute.xlu0 %2222
      %2224 = vrot.lane.b32.xlu0 %v1762, 48
      %v2225 = vpop.permute.xlu0 %2224
      %2226 = vrot.lane.b32.xlu0 %v1763, 48
      %v2227 = vpop.permute.xlu0 %2226
      %2228 = vrot.lane.b32.xlu0 %v1764, 48
      %v2229 = vpop.permute.xlu0 %2228
      %2230 = vrot.lane.b32.xlu0 %v1765, 48
      %v2231 = vpop.permute.xlu0 %2230
      %2232 = vrot.lane.b32.xlu0 %v1766, 48
      %v2233 = vpop.permute.xlu0 %2232
      %2234 = vrot.lane.b32.xlu0 %v1767, 48
      %v2235 = vpop.permute.xlu0 %2234
      %2236 = vrot.lane.b32.xlu0 %v1768, 48
      %v2237 = vpop.permute.xlu0 %2236
      %2238 = vrot.lane.b32.xlu0 %v1769, 48
      %v2239 = vpop.permute.xlu0 %2238
      %2240 = vrot.lane.b32.xlu0 %v1770, 48
      %v2241 = vpop.permute.xlu0 %2240
      %2242 = vrot.lane.b32.xlu0 %v1771, 48
      %v2243 = vpop.permute.xlu0 %2242
      %2244 = vrot.lane.b32.xlu0 %v1772, 48
      %v2245 = vpop.permute.xlu0 %2244
      %2246 = vrot.lane.b32.xlu0 %v1773, 48
      %v2247 = vpop.permute.xlu0 %2246
      %2248 = vrot.lane.b32.xlu0 %v1774, 48
      %v2249 = vpop.permute.xlu0 %2248
      %2286 = vrot.lane.b32.xlu0 %v1651, 56
      %v2287 = vpop.permute.xlu0 %2286
      %2288 = vrot.lane.b32.xlu0 %v1652, 56
      %v2289 = vpop.permute.xlu0 %2288
      %2290 = vrot.lane.b32.xlu0 %v1653, 56
      %v2291 = vpop.permute.xlu0 %2290
      %2292 = vrot.lane.b32.xlu0 %v1654, 56
      %v2293 = vpop.permute.xlu0 %2292
      %2294 = vrot.lane.b32.xlu0 %v1655, 56
      %v2295 = vpop.permute.xlu0 %2294
      %2296 = vrot.lane.b32.xlu0 %v1656, 56
      %v2297 = vpop.permute.xlu0 %2296
      %2298 = vrot.lane.b32.xlu0 %v1657, 56
      %v2299 = vpop.permute.xlu0 %2298
      %2300 = vrot.lane.b32.xlu0 %v1658, 56
      %v2301 = vpop.permute.xlu0 %2300
      %2302 = vrot.lane.b32.xlu0 %v1659, 56
      %v2303 = vpop.permute.xlu0 %2302
      %2304 = vrot.lane.b32.xlu0 %v1660, 56
      %v2305 = vpop.permute.xlu0 %2304
      %2306 = vrot.lane.b32.xlu0 %v1661, 56
      %v2307 = vpop.permute.xlu0 %2306
      %2308 = vrot.lane.b32.xlu0 %v1662, 56
      %v2309 = vpop.permute.xlu0 %2308
      %2310 = vrot.lane.b32.xlu0 %v1663, 56
      %v2311 = vpop.permute.xlu0 %2310
      %2312 = vrot.lane.b32.xlu0 %v1664, 56
      %v2313 = vpop.permute.xlu0 %2312
      %2314 = vrot.lane.b32.xlu0 %v1665, 56
      %v2315 = vpop.permute.xlu0 %2314
      %2316 = vrot.lane.b32.xlu0 %v1666, 56
      %v2317 = vpop.permute.xlu0 %2316
      %2318 = vrot.lane.b32.xlu0 %v1775, 56
      %v2319 = vpop.permute.xlu0 %2318
      %2320 = vrot.lane.b32.xlu0 %v1776, 56
      %v2321 = vpop.permute.xlu0 %2320
      %2342 = vrot.lane.b32.xlu0 %v1669, 64
      %v2343 = vpop.permute.xlu0 %2342
      %2344 = vrot.lane.b32.xlu0 %v1670, 64
      %v2345 = vpop.permute.xlu0 %2344
      %2346 = vrot.lane.b32.xlu0 %v1671, 64
      %v2347 = vpop.permute.xlu0 %2346
      %2348 = vrot.lane.b32.xlu0 %v1672, 64
      %v2349 = vpop.permute.xlu0 %2348
      %2350 = vrot.lane.b32.xlu0 %v1673, 64
      %v2351 = vpop.permute.xlu0 %2350
      %2352 = vrot.lane.b32.xlu0 %v1674, 64
      %v2353 = vpop.permute.xlu0 %2352
      %2354 = vrot.lane.b32.xlu0 %v1675, 64
      %v2355 = vpop.permute.xlu0 %2354
      %2356 = vrot.lane.b32.xlu0 %v1676, 64
      %v2357 = vpop.permute.xlu0 %2356
      %2358 = vrot.lane.b32.xlu0 %v1677, 64
      %v2359 = vpop.permute.xlu0 %2358
      %2360 = vrot.lane.b32.xlu0 %v1678, 64
      %v2361 = vpop.permute.xlu0 %2360
      %2362 = vrot.lane.b32.xlu0 %v1679, 64
      %v2363 = vpop.permute.xlu0 %2362
      %2364 = vrot.lane.b32.xlu0 %v1680, 64
      %v2365 = vpop.permute.xlu0 %2364
      %2366 = vrot.lane.b32.xlu0 %v1681, 64
      %v2367 = vpop.permute.xlu0 %2366
      %2368 = vrot.lane.b32.xlu0 %v1682, 64
      %v2369 = vpop.permute.xlu0 %2368
      %2370 = vrot.lane.b32.xlu0 %v1683, 64
      %v2371 = vpop.permute.xlu0 %2370
      %2372 = vrot.lane.b32.xlu0 %v1684, 64
      %v2373 = vpop.permute.xlu0 %2372
      %2374 = vrot.lane.b32.xlu0 %v1777, 64
      %v2375 = vpop.permute.xlu0 %2374
      %2376 = vrot.lane.b32.xlu0 %v1778, 64
      %v2377 = vpop.permute.xlu0 %2376
      %2398 = vrot.lane.b32.xlu0 %v1687, 72
      %v2399 = vpop.permute.xlu0 %2398
      %2400 = vrot.lane.b32.xlu0 %v1688, 72
      %v2401 = vpop.permute.xlu0 %2400
      %2402 = vrot.lane.b32.xlu0 %v1689, 72
      %v2403 = vpop.permute.xlu0 %2402
      %2404 = vrot.lane.b32.xlu0 %v1690, 72
      %v2405 = vpop.permute.xlu0 %2404
      %2406 = vrot.lane.b32.xlu0 %v1691, 72
      %v2407 = vpop.permute.xlu0 %2406
      %2408 = vrot.lane.b32.xlu0 %v1692, 72
      %v2409 = vpop.permute.xlu0 %2408
      %2410 = vrot.lane.b32.xlu0 %v1693, 72
      %v2411 = vpop.permute.xlu0 %2410
      %2412 = vrot.lane.b32.xlu0 %v1694, 72
      %v2413 = vpop.permute.xlu0 %2412
      %2414 = vrot.lane.b32.xlu0 %v1695, 72
      %v2415 = vpop.permute.xlu0 %2414
      %2416 = vrot.lane.b32.xlu0 %v1696, 72
      %v2417 = vpop.permute.xlu0 %2416
      %2418 = vrot.lane.b32.xlu0 %v1697, 72
      %v2419 = vpop.permute.xlu0 %2418
      %2420 = vrot.lane.b32.xlu0 %v1698, 72
      %v2421 = vpop.permute.xlu0 %2420
      %2422 = vrot.lane.b32.xlu0 %v1699, 72
      %v2423 = vpop.permute.xlu0 %2422
      %2424 = vrot.lane.b32.xlu0 %v1700, 72
      %v2425 = vpop.permute.xlu0 %2424
      %2426 = vrot.lane.b32.xlu0 %v1701, 72
      %v2427 = vpop.permute.xlu0 %2426
      %2428 = vrot.lane.b32.xlu0 %v1702, 72
      %v2429 = vpop.permute.xlu0 %2428
      %2430 = vrot.lane.b32.xlu0 %v1779, 72
      %v2431 = vpop.permute.xlu0 %2430
      %2432 = vrot.lane.b32.xlu0 %v1780, 72
      %v2433 = vpop.permute.xlu0 %2432
      %2455 = vrot.lane.b32.xlu0 %v1724, 80
      %v2456 = vpop.permute.xlu0 %2455
      %2457 = vrot.lane.b32.xlu0 %v1725, 80
      %v2458 = vpop.permute.xlu0 %2457
      %2459 = vrot.lane.b32.xlu0 %v1726, 80
      %v2460 = vpop.permute.xlu0 %2459
      %2461 = vrot.lane.b32.xlu0 %v1727, 80
      %v2462 = vpop.permute.xlu0 %2461
      %2463 = vrot.lane.b32.xlu0 %v1728, 80
      %v2464 = vpop.permute.xlu0 %2463
      %2465 = vrot.lane.b32.xlu0 %v1729, 80
      %v2466 = vpop.permute.xlu0 %2465
      %2467 = vrot.lane.b32.xlu0 %v1730, 80
      %v2468 = vpop.permute.xlu0 %2467
      %2469 = vrot.lane.b32.xlu0 %v1731, 80
      %v2470 = vpop.permute.xlu0 %2469
      %2471 = vrot.lane.b32.xlu0 %v1732, 80
      %v2472 = vpop.permute.xlu0 %2471
      %2473 = vrot.lane.b32.xlu0 %v1733, 80
      %v2474 = vpop.permute.xlu0 %2473
      %2475 = vrot.lane.b32.xlu0 %v1734, 80
      %v2476 = vpop.permute.xlu0 %2475
      %2477 = vrot.lane.b32.xlu0 %v1735, 80
      %v2478 = vpop.permute.xlu0 %2477
      %2479 = vrot.lane.b32.xlu0 %v1736, 80
      %v2480 = vpop.permute.xlu0 %2479
      %2481 = vrot.lane.b32.xlu0 %v1737, 80
      %v2482 = vpop.permute.xlu0 %2481
      %2483 = vrot.lane.b32.xlu0 %v1738, 80
      %v2484 = vpop.permute.xlu0 %2483
      %2485 = vrot.lane.b32.xlu0 %v1781, 80
      %v2486 = vpop.permute.xlu0 %2485
      %2487 = vrot.lane.b32.xlu0 %v1782, 80
      %v2488 = vpop.permute.xlu0 %2487
      %2489 = vrot.lane.b32.xlu0 %v1783, 80
      %v2490 = vpop.permute.xlu0 %2489
      %2527 = vrot.lane.b32.xlu0 %v1784, 88
      %v2528 = vpop.permute.xlu0 %2527
      %2529 = vrot.lane.b32.xlu0 %v1785, 88
      %v2530 = vpop.permute.xlu0 %2529
      %2531 = vrot.lane.b32.xlu0 %v1786, 88
      %v2532 = vpop.permute.xlu0 %2531
      %2533 = vrot.lane.b32.xlu0 %v1787, 88
      %v2534 = vpop.permute.xlu0 %2533
      %2535 = vrot.lane.b32.xlu0 %v1788, 88
      %v2536 = vpop.permute.xlu0 %2535
      %2537 = vrot.lane.b32.xlu0 %v1789, 88
      %v2538 = vpop.permute.xlu0 %2537
      %2539 = vrot.lane.b32.xlu0 %v1790, 88
      %v2540 = vpop.permute.xlu0 %2539
      %2541 = vrot.lane.b32.xlu0 %v1791, 88
      %v2542 = vpop.permute.xlu0 %2541
      %2543 = vrot.lane.b32.xlu0 %v1792, 88
      %v2544 = vpop.permute.xlu0 %2543
      %2545 = vrot.lane.b32.xlu0 %v1793, 88
      %v2546 = vpop.permute.xlu0 %2545
      %2547 = vrot.lane.b32.xlu0 %v1794, 88
      %v2548 = vpop.permute.xlu0 %2547
      %2549 = vrot.lane.b32.xlu0 %v1795, 88
      %v2550 = vpop.permute.xlu0 %2549
      %2551 = vrot.lane.b32.xlu0 %v1796, 88
      %v2552 = vpop.permute.xlu0 %2551
      %2553 = vrot.lane.b32.xlu0 %v1797, 88
      %v2554 = vpop.permute.xlu0 %2553
      %2555 = vrot.lane.b32.xlu0 %v1798, 88
      %v2556 = vpop.permute.xlu0 %2555
      %2557 = vrot.lane.b32.xlu0 %v1799, 88
      %v2558 = vpop.permute.xlu0 %2557
      %2559 = vrot.lane.b32.xlu0 %v1800, 88
      %v2560 = vpop.permute.xlu0 %2559
      %2561 = vrot.lane.b32.xlu0 %v1801, 88
      %v2562 = vpop.permute.xlu0 %2561
      %2583 = vrot.lane.b32.xlu0 %v1741, 96
      %v2584 = vpop.permute.xlu0 %2583
      %2585 = vrot.lane.b32.xlu0 %v1742, 96
      %v2586 = vpop.permute.xlu0 %2585
      %2587 = vrot.lane.b32.xlu0 %v1743, 96
      %v2588 = vpop.permute.xlu0 %2587
      %2589 = vrot.lane.b32.xlu0 %v1744, 96
      %v2590 = vpop.permute.xlu0 %2589
      %2591 = vrot.lane.b32.xlu0 %v1745, 96
      %v2592 = vpop.permute.xlu0 %2591
      %2593 = vrot.lane.b32.xlu0 %v1746, 96
      %v2594 = vpop.permute.xlu0 %2593
      %2595 = vrot.lane.b32.xlu0 %v1747, 96
      %v2596 = vpop.permute.xlu0 %2595
      %2597 = vrot.lane.b32.xlu0 %v1748, 96
      %v2598 = vpop.permute.xlu0 %2597
      %2599 = vrot.lane.b32.xlu0 %v1749, 96
      %v2600 = vpop.permute.xlu0 %2599
      %2601 = vrot.lane.b32.xlu0 %v1750, 96
      %v2602 = vpop.permute.xlu0 %2601
      %2603 = vrot.lane.b32.xlu0 %v1751, 96
      %v2604 = vpop.permute.xlu0 %2603
      %2605 = vrot.lane.b32.xlu0 %v1752, 96
      %v2606 = vpop.permute.xlu0 %2605
      %2607 = vrot.lane.b32.xlu0 %v1753, 96
      %v2608 = vpop.permute.xlu0 %2607
      %2609 = vrot.lane.b32.xlu0 %v1754, 96
      %v2610 = vpop.permute.xlu0 %2609
      %2611 = vrot.lane.b32.xlu0 %v1755, 96
      %v2612 = vpop.permute.xlu0 %2611
      %2613 = vrot.lane.b32.xlu0 %v1756, 96
      %v2614 = vpop.permute.xlu0 %2613
      %2615 = vrot.lane.b32.xlu0 %v1802, 96
      %v2616 = vpop.permute.xlu0 %2615
      %2617 = vrot.lane.b32.xlu0 %v1803, 96
      %v2618 = vpop.permute.xlu0 %2617
      %2639 = vrot.lane.b32.xlu0 %v1759, 104
      %v2640 = vpop.permute.xlu0 %2639
      %2641 = vrot.lane.b32.xlu0 %v1760, 104
      %v2642 = vpop.permute.xlu0 %2641
      %2643 = vrot.lane.b32.xlu0 %v1761, 104
      %v2644 = vpop.permute.xlu0 %2643
      %2645 = vrot.lane.b32.xlu0 %v1762, 104
      %v2646 = vpop.permute.xlu0 %2645
      %2647 = vrot.lane.b32.xlu0 %v1763, 104
      %v2648 = vpop.permute.xlu0 %2647
      %2649 = vrot.lane.b32.xlu0 %v1764, 104
      %v2650 = vpop.permute.xlu0 %2649
      %2651 = vrot.lane.b32.xlu0 %v1765, 104
      %v2652 = vpop.permute.xlu0 %2651
      %2653 = vrot.lane.b32.xlu0 %v1766, 104
      %v2654 = vpop.permute.xlu0 %2653
      %2655 = vrot.lane.b32.xlu0 %v1767, 104
      %v2656 = vpop.permute.xlu0 %2655
      %2657 = vrot.lane.b32.xlu0 %v1768, 104
      %v2658 = vpop.permute.xlu0 %2657
      %2659 = vrot.lane.b32.xlu0 %v1769, 104
      %v2660 = vpop.permute.xlu0 %2659
      %2661 = vrot.lane.b32.xlu0 %v1770, 104
      %v2662 = vpop.permute.xlu0 %2661
      %2663 = vrot.lane.b32.xlu0 %v1771, 104
      %v2664 = vpop.permute.xlu0 %2663
      %2665 = vrot.lane.b32.xlu0 %v1772, 104
      %v2666 = vpop.permute.xlu0 %2665
      %2667 = vrot.lane.b32.xlu0 %v1773, 104
      %v2668 = vpop.permute.xlu0 %2667
      %2669 = vrot.lane.b32.xlu0 %v1774, 104
      %v2670 = vpop.permute.xlu0 %2669
      %2671 = vrot.lane.b32.xlu0 %v1804, 104
      %v2672 = vpop.permute.xlu0 %2671
      %2673 = vrot.lane.b32.xlu0 %v1805, 104
      %v2674 = vpop.permute.xlu0 %2673
      %2695 = vrot.lane.b32.xlu0 %v1653, 112
      %v2696 = vpop.permute.xlu0 %2695
      %2697 = vrot.lane.b32.xlu0 %v1654, 112
      %v2698 = vpop.permute.xlu0 %2697
      %2699 = vrot.lane.b32.xlu0 %v1655, 112
      %v2700 = vpop.permute.xlu0 %2699
      %2701 = vrot.lane.b32.xlu0 %v1656, 112
      %v2702 = vpop.permute.xlu0 %2701
      %2703 = vrot.lane.b32.xlu0 %v1657, 112
      %v2704 = vpop.permute.xlu0 %2703
      %2705 = vrot.lane.b32.xlu0 %v1658, 112
      %v2706 = vpop.permute.xlu0 %2705
      %2707 = vrot.lane.b32.xlu0 %v1659, 112
      %v2708 = vpop.permute.xlu0 %2707
      %2709 = vrot.lane.b32.xlu0 %v1660, 112
      %v2710 = vpop.permute.xlu0 %2709
      %2711 = vrot.lane.b32.xlu0 %v1661, 112
      %v2712 = vpop.permute.xlu0 %2711
      %2713 = vrot.lane.b32.xlu0 %v1662, 112
      %v2714 = vpop.permute.xlu0 %2713
      %2715 = vrot.lane.b32.xlu0 %v1663, 112
      %v2716 = vpop.permute.xlu0 %2715
      %2717 = vrot.lane.b32.xlu0 %v1664, 112
      %v2718 = vpop.permute.xlu0 %2717
      %2719 = vrot.lane.b32.xlu0 %v1665, 112
      %v2720 = vpop.permute.xlu0 %2719
      %2721 = vrot.lane.b32.xlu0 %v1666, 112
      %v2722 = vpop.permute.xlu0 %2721
      %2723 = vrot.lane.b32.xlu0 %v1775, 112
      %v2724 = vpop.permute.xlu0 %2723
      %2725 = vrot.lane.b32.xlu0 %v1776, 112
      %v2726 = vpop.permute.xlu0 %2725
      %2727 = vrot.lane.b32.xlu0 %v1806, 112
      %v2728 = vpop.permute.xlu0 %2727
      %2729 = vrot.lane.b32.xlu0 %v1807, 112
      %v2730 = vpop.permute.xlu0 %2729
      %2752 = vrot.lane.b32.xlu0 %v1690, 120
      %v2753 = vpop.permute.xlu0 %2752
      %2754 = vrot.lane.b32.xlu0 %v1691, 120
      %v2755 = vpop.permute.xlu0 %2754
      %2756 = vrot.lane.b32.xlu0 %v1692, 120
      %v2757 = vpop.permute.xlu0 %2756
      %2758 = vrot.lane.b32.xlu0 %v1693, 120
      %v2759 = vpop.permute.xlu0 %2758
      %2760 = vrot.lane.b32.xlu0 %v1694, 120
      %v2761 = vpop.permute.xlu0 %2760
      %2762 = vrot.lane.b32.xlu0 %v1695, 120
      %v2763 = vpop.permute.xlu0 %2762
      %2764 = vrot.lane.b32.xlu0 %v1696, 120
      %v2765 = vpop.permute.xlu0 %2764
      %2766 = vrot.lane.b32.xlu0 %v1697, 120
      %v2767 = vpop.permute.xlu0 %2766
      %2768 = vrot.lane.b32.xlu0 %v1698, 120
      %v2769 = vpop.permute.xlu0 %2768
      %2770 = vrot.lane.b32.xlu0 %v1699, 120
      %v2771 = vpop.permute.xlu0 %2770
      %2772 = vrot.lane.b32.xlu0 %v1700, 120
      %v2773 = vpop.permute.xlu0 %2772
      %2774 = vrot.lane.b32.xlu0 %v1701, 120
      %v2775 = vpop.permute.xlu0 %2774
      %2776 = vrot.lane.b32.xlu0 %v1702, 120
      %v2777 = vpop.permute.xlu0 %2776
      %2778 = vrot.lane.b32.xlu0 %v1779, 120
      %v2779 = vpop.permute.xlu0 %2778
      %2780 = vrot.lane.b32.xlu0 %v1780, 120
      %v2781 = vpop.permute.xlu0 %2780
      %2782 = vrot.lane.b32.xlu0 %v1808, 120
      %v2783 = vpop.permute.xlu0 %2782
      %2784 = vrot.lane.b32.xlu0 %v1809, 120
      %v2785 = vpop.permute.xlu0 %2784
      %2786 = vrot.lane.b32.xlu0 %v1810, 120
      %v2787 = vpop.permute.xlu0 %2786
      %v2806 = vsel %vm1616, %v1649, %v1855
      %v2807 = vsel %vm1616, %v1650, %v1857
      %v2808 = vsel %vm1616, %v1651, %v1859
      %v2809 = vsel %vm1616, %v1652, %v1861
      %v2810 = vsel %vm1616, %v1653, %v1863
      %v2811 = vsel %vm1616, %v1654, %v1865
      %v2812 = vsel %vm1616, %v1655, %v1867
      %v2813 = vsel %vm1616, %v1656, %v1869
      %v2814 = vsel %vm1616, %v1657, %v1871
      %v2815 = vsel %vm1616, %v1658, %v1873
      %v2816 = vsel %vm1616, %v1659, %v1875
      %v2817 = vsel %vm1616, %v1660, %v1877
      %v2818 = vsel %vm1616, %v1661, %v1879
      %v2819 = vsel %vm1616, %v1662, %v1881
      %v2820 = vsel %vm1616, %v1663, %v1883
      %v2821 = vsel %vm1616, %v1664, %v1885
      %v2822 = vsel %vm1616, %v1665, %v1887
      %v2823 = vsel %vm1616, %v1666, %v1889
      %vm2824 = vcmask 130048
      %v2825 = vsel %vm2824, %v2806, %v1927
      %v2826 = vsel %vm2824, %v2807, %v1929
      %v2827 = vsel %vm2824, %v2808, %v1931
      %v2828 = vsel %vm2824, %v2809, %v1933
      %v2829 = vsel %vm2824, %v2810, %v1935
      %v2830 = vsel %vm2824, %v2811, %v1937
      %v2831 = vsel %vm2824, %v2812, %v1939
      %v2832 = vsel %vm2824, %v2813, %v1941
      %v2833 = vsel %vm2824, %v2814, %v1943
      %v2834 = vsel %vm2824, %v2815, %v1945
      %v2835 = vsel %vm2824, %v2816, %v1947
      %v2836 = vsel %vm2824, %v2817, %v1949
      %v2837 = vsel %vm2824, %v2818, %v1951
      %v2838 = vsel %vm2824, %v2819, %v1953
      %v2839 = vsel %vm2824, %v2820, %v1955
      %v2840 = vsel %vm2824, %v2821, %v1957
      %v2841 = vsel %vm2824, %v2822, %v1959
      %v2842 = vsel %vm2824, %v2823, %v1961
      %vm2843 = vcmask 195584
      %v2844 = vsel %vm2843, %v2825, %v1999
      %v2845 = vsel %vm2843, %v2826, %v2001
      %v2846 = vsel %vm2843, %v2827, %v2003
      %v2847 = vsel %vm2843, %v2828, %v2005
      %v2848 = vsel %vm2843, %v2829, %v2007
      %v2849 = vsel %vm2843, %v2830, %v2009
      %v2850 = vsel %vm2843, %v2831, %v2011
      %v2851 = vsel %vm2843, %v2832, %v2013
      %v2852 = vsel %vm2843, %v2833, %v2015
      %v2853 = vsel %vm2843, %v2834, %v2017
      %v2854 = vsel %vm2843, %v2835, %v2019
      %v2855 = vsel %vm2843, %v2836, %v2021
      %v2856 = vsel %vm2843, %v2837, %v2023
      %v2857 = vsel %vm2843, %v2838, %v2025
      %v2858 = vsel %vm2843, %v2839, %v2027
      %v2859 = vsel %vm2843, %v2840, %v2029
      %v2860 = vsel %vm2843, %v2841, %v2031
      %v2861 = vsel %vm2843, %v2842, %v2033
      %v2862 = vsel %vm359, %v2844, %v2071
      %v2863 = vsel %vm359, %v2845, %v2073
      %v2864 = vsel %vm359, %v2846, %v2075
      %v2865 = vsel %vm359, %v2847, %v2077
      %v2866 = vsel %vm359, %v2848, %v2079
      %v2867 = vsel %vm359, %v2849, %v2081
      %v2868 = vsel %vm359, %v2850, %v2083
      %v2869 = vsel %vm359, %v2851, %v2085
      %v2870 = vsel %vm359, %v2852, %v2087
      %v2871 = vsel %vm359, %v2853, %v2089
      %v2872 = vsel %vm359, %v2854, %v2091
      %v2873 = vsel %vm359, %v2855, %v2093
      %v2874 = vsel %vm359, %v2856, %v2095
      %v2875 = vsel %vm359, %v2857, %v2097
      %v2876 = vsel %vm359, %v2858, %v2099
      %v2877 = vsel %vm359, %v2859, %v2101
      %v2878 = vsel %vm359, %v2860, %v2103
      %v2879 = vsel %vm359, %v2861, %v2105
      %vm2880 = vcmask 326656
      %v2881 = vsel %vm2880, %v2862, %v2143
      %v2882 = vsel %vm2880, %v2863, %v2145
      %v2883 = vsel %vm2880, %v2864, %v2147
      %v2884 = vsel %vm2880, %v2865, %v2149
      %v2885 = vsel %vm2880, %v2866, %v2151
      %v2886 = vsel %vm2880, %v2867, %v2153
      %v2887 = vsel %vm2880, %v2868, %v2155
      %v2888 = vsel %vm2880, %v2869, %v2157
      %v2889 = vsel %vm2880, %v2870, %v2159
      %v2890 = vsel %vm2880, %v2871, %v2161
      %v2891 = vsel %vm2880, %v2872, %v2163
      %v2892 = vsel %vm2880, %v2873, %v2165
      %v2893 = vsel %vm2880, %v2874, %v2167
      %v2894 = vsel %vm2880, %v2875, %v2169
      %v2895 = vsel %vm2880, %v2876, %v2171
      %v2896 = vsel %vm2880, %v2877, %v2173
      %v2897 = vsel %vm2880, %v2878, %v2175
      %v2898 = vsel %vm2880, %v2879, %v2177
      %vm2899 = vcmask 392192
      %v2900 = vsel %vm2899, %v2881, %v2215
      %v2901 = vsel %vm2899, %v2882, %v2217
      %v2902 = vsel %vm2899, %v2883, %v2219
      %v2903 = vsel %vm2899, %v2884, %v2221
      %v2904 = vsel %vm2899, %v2885, %v2223
      %v2905 = vsel %vm2899, %v2886, %v2225
      %v2906 = vsel %vm2899, %v2887, %v2227
      %v2907 = vsel %vm2899, %v2888, %v2229
      %v2908 = vsel %vm2899, %v2889, %v2231
      %v2909 = vsel %vm2899, %v2890, %v2233
      %v2910 = vsel %vm2899, %v2891, %v2235
      %v2911 = vsel %vm2899, %v2892, %v2237
      %v2912 = vsel %vm2899, %v2893, %v2239
      %v2913 = vsel %vm2899, %v2894, %v2241
      %v2914 = vsel %vm2899, %v2895, %v2243
      %v2915 = vsel %vm2899, %v2896, %v2245
      %v2916 = vsel %vm2899, %v2897, %v2247
      %v2917 = vsel %vm2899, %v2898, %v2249
      %vm2918 = vcmask 457728
      %v2919 = vsel %vm2918, %v2900, %v2287
      %v2920 = vsel %vm2918, %v2901, %v2289
      %v2921 = vsel %vm2918, %v2902, %v2291
      %v2922 = vsel %vm2918, %v2903, %v2293
      %v2923 = vsel %vm2918, %v2904, %v2295
      %v2924 = vsel %vm2918, %v2905, %v2297
      %v2925 = vsel %vm2918, %v2906, %v2299
      %v2926 = vsel %vm2918, %v2907, %v2301
      %v2927 = vsel %vm2918, %v2908, %v2303
      %v2928 = vsel %vm2918, %v2909, %v2305
      %v2929 = vsel %vm2918, %v2910, %v2307
      %v2930 = vsel %vm2918, %v2911, %v2309
      %v2931 = vsel %vm2918, %v2912, %v2311
      %v2932 = vsel %vm2918, %v2913, %v2313
      %v2933 = vsel %vm2918, %v2914, %v2315
      %v2934 = vsel %vm2918, %v2915, %v2317
      %v2935 = vsel %vm2918, %v2916, %v2319
      %v2936 = vsel %vm2918, %v2917, %v2321
      %vm2937 = vcmask 523264
      %v2938 = vsel %vm2937, %v2919, %v2343
      %v2939 = vsel %vm2937, %v2920, %v2345
      %v2940 = vsel %vm2937, %v2921, %v2347
      %v2941 = vsel %vm2937, %v2922, %v2349
      %v2942 = vsel %vm2937, %v2923, %v2351
      %v2943 = vsel %vm2937, %v2924, %v2353
      %v2944 = vsel %vm2937, %v2925, %v2355
      %v2945 = vsel %vm2937, %v2926, %v2357
      %v2946 = vsel %vm2937, %v2927, %v2359
      %v2947 = vsel %vm2937, %v2928, %v2361
      %v2948 = vsel %vm2937, %v2929, %v2363
      %v2949 = vsel %vm2937, %v2930, %v2365
      %v2950 = vsel %vm2937, %v2931, %v2367
      %v2951 = vsel %vm2937, %v2932, %v2369
      %v2952 = vsel %vm2937, %v2933, %v2371
      %v2953 = vsel %vm2937, %v2934, %v2373
      %v2954 = vsel %vm2937, %v2935, %v2375
      %v2955 = vsel %vm2937, %v2936, %v2377
      %vm2956 = vcmask 588800
      %v2957 = vsel %vm2956, %v2938, %v2399
      %v2958 = vsel %vm2956, %v2939, %v2401
      %v2959 = vsel %vm2956, %v2940, %v2403
      %v2960 = vsel %vm2956, %v2941, %v2405
      %v2961 = vsel %vm2956, %v2942, %v2407
      %v2962 = vsel %vm2956, %v2943, %v2409
      %v2963 = vsel %vm2956, %v2944, %v2411
      %v2964 = vsel %vm2956, %v2945, %v2413
      %v2965 = vsel %vm2956, %v2946, %v2415
      %v2966 = vsel %vm2956, %v2947, %v2417
      %v2967 = vsel %vm2956, %v2948, %v2419
      %v2968 = vsel %vm2956, %v2949, %v2421
      %v2969 = vsel %vm2956, %v2950, %v2423
      %v2970 = vsel %vm2956, %v2951, %v2425
      %v2971 = vsel %vm2956, %v2952, %v2427
      %v2972 = vsel %vm2956, %v2953, %v2429
      %v2973 = vsel %vm2956, %v2954, %v2431
      %v2974 = vsel %vm2956, %v2955, %v2433
      %vm2975 = vcmask 654336
      %v2976 = vsel %vm2975, %v2957, %v2456
      %v2977 = vsel %vm2975, %v2958, %v2458
      %v2978 = vsel %vm2975, %v2959, %v2460
      %v2979 = vsel %vm2975, %v2960, %v2462
      %v2980 = vsel %vm2975, %v2961, %v2464
      %v2981 = vsel %vm2975, %v2962, %v2466
      %v2982 = vsel %vm2975, %v2963, %v2468
      %v2983 = vsel %vm2975, %v2964, %v2470
      %v2984 = vsel %vm2975, %v2965, %v2472
      %v2985 = vsel %vm2975, %v2966, %v2474
      %v2986 = vsel %vm2975, %v2967, %v2476
      %v2987 = vsel %vm2975, %v2968, %v2478
      %v2988 = vsel %vm2975, %v2969, %v2480
      %v2989 = vsel %vm2975, %v2970, %v2482
      %v2990 = vsel %vm2975, %v2971, %v2484
      %v2991 = vsel %vm2975, %v2972, %v2486
      %v2992 = vsel %vm2975, %v2973, %v2488
      %v2993 = vsel %vm2975, %v2974, %v2490
      %vm2994 = vcmask 719872
      %v2995 = vsel %vm2994, %v2976, %v2528
      %v2996 = vsel %vm2994, %v2977, %v2530
      %v2997 = vsel %vm2994, %v2978, %v2532
      %v2998 = vsel %vm2994, %v2979, %v2534
      %v2999 = vsel %vm2994, %v2980, %v2536
      %v3000 = vsel %vm2994, %v2981, %v2538
      %v3001 = vsel %vm2994, %v2982, %v2540
      %v3002 = vsel %vm2994, %v2983, %v2542
      %v3003 = vsel %vm2994, %v2984, %v2544
      %v3004 = vsel %vm2994, %v2985, %v2546
      %v3005 = vsel %vm2994, %v2986, %v2548
      %v3006 = vsel %vm2994, %v2987, %v2550
      %v3007 = vsel %vm2994, %v2988, %v2552
      %v3008 = vsel %vm2994, %v2989, %v2554
      %v3009 = vsel %vm2994, %v2990, %v2556
      %v3010 = vsel %vm2994, %v2991, %v2558
      %v3011 = vsel %vm2994, %v2992, %v2560
      %v3012 = vsel %vm2994, %v2993, %v2562
      %vm3013 = vcmask 785408
      %v3014 = vsel %vm3013, %v2995, %v2584
      %v3015 = vsel %vm3013, %v2996, %v2586
      %v3016 = vsel %vm3013, %v2997, %v2588
      %v3017 = vsel %vm3013, %v2998, %v2590
      %v3018 = vsel %vm3013, %v2999, %v2592
      %v3019 = vsel %vm3013, %v3000, %v2594
      %v3020 = vsel %vm3013, %v3001, %v2596
      %v3021 = vsel %vm3013, %v3002, %v2598
      %v3022 = vsel %vm3013, %v3003, %v2600
      %v3023 = vsel %vm3013, %v3004, %v2602
      %v3024 = vsel %vm3013, %v3005, %v2604
      %v3025 = vsel %vm3013, %v3006, %v2606
      %v3026 = vsel %vm3013, %v3007, %v2608
      %v3027 = vsel %vm3013, %v3008, %v2610
      %v3028 = vsel %vm3013, %v3009, %v2612
      %v3029 = vsel %vm3013, %v3010, %v2614
      %v3030 = vsel %vm3013, %v3011, %v2616
      %v3031 = vsel %vm3013, %v3012, %v2618
      %vm3032 = vcmask 850944
      %v3033 = vsel %vm3032, %v3014, %v2640
      %v3034 = vsel %vm3032, %v3015, %v2642
      %v3035 = vsel %vm3032, %v3016, %v2644
      %v3036 = vsel %vm3032, %v3017, %v2646
      %v3037 = vsel %vm3032, %v3018, %v2648
      %v3038 = vsel %vm3032, %v3019, %v2650
      %v3039 = vsel %vm3032, %v3020, %v2652
      %v3040 = vsel %vm3032, %v3021, %v2654
      %v3041 = vsel %vm3032, %v3022, %v2656
      %v3042 = vsel %vm3032, %v3023, %v2658
      %v3043 = vsel %vm3032, %v3024, %v2660
      %v3044 = vsel %vm3032, %v3025, %v2662
      %v3045 = vsel %vm3032, %v3026, %v2664
      %v3046 = vsel %vm3032, %v3027, %v2666
      %v3047 = vsel %vm3032, %v3028, %v2668
      %v3048 = vsel %vm3032, %v3029, %v2670
      %v3049 = vsel %vm3032, %v3030, %v2672
      %v3050 = vsel %vm3032, %v3031, %v2674
      %vm3051 = vcmask 916480
      %v3052 = vsel %vm3051, %v3033, %v2696
      %v3053 = vsel %vm3051, %v3034, %v2698
      %v3054 = vsel %vm3051, %v3035, %v2700
      %v3055 = vsel %vm3051, %v3036, %v2702
      %v3056 = vsel %vm3051, %v3037, %v2704
      %v3057 = vsel %vm3051, %v3038, %v2706
      %v3058 = vsel %vm3051, %v3039, %v2708
      %v3059 = vsel %vm3051, %v3040, %v2710
      %v3060 = vsel %vm3051, %v3041, %v2712
      %v3061 = vsel %vm3051, %v3042, %v2714
      %v3062 = vsel %vm3051, %v3043, %v2716
      %v3063 = vsel %vm3051, %v3044, %v2718
      %v3064 = vsel %vm3051, %v3045, %v2720
      %v3065 = vsel %vm3051, %v3046, %v2722
      %v3066 = vsel %vm3051, %v3047, %v2724
      %v3067 = vsel %vm3051, %v3048, %v2726
      %v3068 = vsel %vm3051, %v3049, %v2728
      %v3069 = vsel %vm3051, %v3050, %v2730
      %vm3070 = vcmask 982016
      %v3071 = vsel %vm3070, %v3052, %v2753
      %v3072 = vsel %vm3070, %v3053, %v2755
      %v3073 = vsel %vm3070, %v3054, %v2757
      %v3074 = vsel %vm3070, %v3055, %v2759
      %v3075 = vsel %vm3070, %v3056, %v2761
      %v3076 = vsel %vm3070, %v3057, %v2763
      %v3077 = vsel %vm3070, %v3058, %v2765
      %v3078 = vsel %vm3070, %v3059, %v2767
      %v3079 = vsel %vm3070, %v3060, %v2769
      %v3080 = vsel %vm3070, %v3061, %v2771
      %v3081 = vsel %vm3070, %v3062, %v2773
      %v3082 = vsel %vm3070, %v3063, %v2775
      %v3083 = vsel %vm3070, %v3064, %v2777
      %v3084 = vsel %vm3070, %v3065, %v2779
      %v3085 = vsel %vm3070, %v3066, %v2781
      %v3086 = vsel %vm3070, %v3067, %v2783
      %v3087 = vsel %vm3070, %v3068, %v2785
      %v3088 = vsel %vm3070, %v3069, %v2787
      %3091 = vrot.lane.b32.xlu0 %v1726, 8
      %v3092 = vpop.permute.xlu0 %3091
      %3093 = vrot.lane.b32.xlu0 %v1727, 8
      %v3094 = vpop.permute.xlu0 %3093
      %3095 = vrot.lane.b32.xlu0 %v1728, 8
      %v3096 = vpop.permute.xlu0 %3095
      %3097 = vrot.lane.b32.xlu0 %v1729, 8
      %v3098 = vpop.permute.xlu0 %3097
      %3099 = vrot.lane.b32.xlu0 %v1730, 8
      %v3100 = vpop.permute.xlu0 %3099
      %3101 = vrot.lane.b32.xlu0 %v1731, 8
      %v3102 = vpop.permute.xlu0 %3101
      %3103 = vrot.lane.b32.xlu0 %v1732, 8
      %v3104 = vpop.permute.xlu0 %3103
      %3105 = vrot.lane.b32.xlu0 %v1733, 8
      %v3106 = vpop.permute.xlu0 %3105
      %3107 = vrot.lane.b32.xlu0 %v1734, 8
      %v3108 = vpop.permute.xlu0 %3107
      %3109 = vrot.lane.b32.xlu0 %v1735, 8
      %v3110 = vpop.permute.xlu0 %3109
      %3111 = vrot.lane.b32.xlu0 %v1736, 8
      %v3112 = vpop.permute.xlu0 %3111
      %3113 = vrot.lane.b32.xlu0 %v1737, 8
      %v3114 = vpop.permute.xlu0 %3113
      %3115 = vrot.lane.b32.xlu0 %v1738, 8
      %v3116 = vpop.permute.xlu0 %3115
      %3117 = vrot.lane.b32.xlu0 %v1781, 8
      %v3118 = vpop.permute.xlu0 %3117
      %3119 = vrot.lane.b32.xlu0 %v1782, 8
      %v3120 = vpop.permute.xlu0 %3119
      %3121 = vrot.lane.b32.xlu0 %v1783, 8
      %v3122 = vpop.permute.xlu0 %3121
      %3123 = vrot.lane.b32.xlu0 %v1816, 8
      %v3124 = vpop.permute.xlu0 %3123
      %3125 = vrot.lane.b32.xlu0 %v1817, 8
      %v3126 = vpop.permute.xlu0 %3125
      %3147 = vrot.lane.b32.xlu0 %v1786, 16
      %v3148 = vpop.permute.xlu0 %3147
      %3149 = vrot.lane.b32.xlu0 %v1787, 16
      %v3150 = vpop.permute.xlu0 %3149
      %3151 = vrot.lane.b32.xlu0 %v1788, 16
      %v3152 = vpop.permute.xlu0 %3151
      %3153 = vrot.lane.b32.xlu0 %v1789, 16
      %v3154 = vpop.permute.xlu0 %3153
      %3155 = vrot.lane.b32.xlu0 %v1790, 16
      %v3156 = vpop.permute.xlu0 %3155
      %3157 = vrot.lane.b32.xlu0 %v1791, 16
      %v3158 = vpop.permute.xlu0 %3157
      %3159 = vrot.lane.b32.xlu0 %v1792, 16
      %v3160 = vpop.permute.xlu0 %3159
      %3161 = vrot.lane.b32.xlu0 %v1793, 16
      %v3162 = vpop.permute.xlu0 %3161
      %3163 = vrot.lane.b32.xlu0 %v1794, 16
      %v3164 = vpop.permute.xlu0 %3163
      %3165 = vrot.lane.b32.xlu0 %v1795, 16
      %v3166 = vpop.permute.xlu0 %3165
      %3167 = vrot.lane.b32.xlu0 %v1796, 16
      %v3168 = vpop.permute.xlu0 %3167
      %3169 = vrot.lane.b32.xlu0 %v1797, 16
      %v3170 = vpop.permute.xlu0 %3169
      %3171 = vrot.lane.b32.xlu0 %v1798, 16
      %v3172 = vpop.permute.xlu0 %3171
      %3173 = vrot.lane.b32.xlu0 %v1799, 16
      %v3174 = vpop.permute.xlu0 %3173
      %3175 = vrot.lane.b32.xlu0 %v1800, 16
      %v3176 = vpop.permute.xlu0 %3175
      %3177 = vrot.lane.b32.xlu0 %v1801, 16
      %v3178 = vpop.permute.xlu0 %3177
      %3179 = vrot.lane.b32.xlu0 %v1818, 16
      %v3180 = vpop.permute.xlu0 %3179
      %3181 = vrot.lane.b32.xlu0 %v1819, 16
      %v3182 = vpop.permute.xlu0 %3181
      %3203 = vrot.lane.b32.xlu0 %v1743, 24
      %v3204 = vpop.permute.xlu0 %3203
      %3205 = vrot.lane.b32.xlu0 %v1744, 24
      %v3206 = vpop.permute.xlu0 %3205
      %3207 = vrot.lane.b32.xlu0 %v1745, 24
      %v3208 = vpop.permute.xlu0 %3207
      %3209 = vrot.lane.b32.xlu0 %v1746, 24
      %v3210 = vpop.permute.xlu0 %3209
      %3211 = vrot.lane.b32.xlu0 %v1747, 24
      %v3212 = vpop.permute.xlu0 %3211
      %3213 = vrot.lane.b32.xlu0 %v1748, 24
      %v3214 = vpop.permute.xlu0 %3213
      %3215 = vrot.lane.b32.xlu0 %v1749, 24
      %v3216 = vpop.permute.xlu0 %3215
      %3217 = vrot.lane.b32.xlu0 %v1750, 24
      %v3218 = vpop.permute.xlu0 %3217
      %3219 = vrot.lane.b32.xlu0 %v1751, 24
      %v3220 = vpop.permute.xlu0 %3219
      %3221 = vrot.lane.b32.xlu0 %v1752, 24
      %v3222 = vpop.permute.xlu0 %3221
      %3223 = vrot.lane.b32.xlu0 %v1753, 24
      %v3224 = vpop.permute.xlu0 %3223
      %3225 = vrot.lane.b32.xlu0 %v1754, 24
      %v3226 = vpop.permute.xlu0 %3225
      %3227 = vrot.lane.b32.xlu0 %v1755, 24
      %v3228 = vpop.permute.xlu0 %3227
      %3229 = vrot.lane.b32.xlu0 %v1756, 24
      %v3230 = vpop.permute.xlu0 %3229
      %3231 = vrot.lane.b32.xlu0 %v1802, 24
      %v3232 = vpop.permute.xlu0 %3231
      %3233 = vrot.lane.b32.xlu0 %v1803, 24
      %v3234 = vpop.permute.xlu0 %3233
      %3235 = vrot.lane.b32.xlu0 %v1820, 24
      %v3236 = vpop.permute.xlu0 %3235
      %3237 = vrot.lane.b32.xlu0 %v1821, 24
      %v3238 = vpop.permute.xlu0 %3237
      %3260 = vrot.lane.b32.xlu0 %v1656, 32
      %v3261 = vpop.permute.xlu0 %3260
      %3262 = vrot.lane.b32.xlu0 %v1657, 32
      %v3263 = vpop.permute.xlu0 %3262
      %3264 = vrot.lane.b32.xlu0 %v1658, 32
      %v3265 = vpop.permute.xlu0 %3264
      %3266 = vrot.lane.b32.xlu0 %v1659, 32
      %v3267 = vpop.permute.xlu0 %3266
      %3268 = vrot.lane.b32.xlu0 %v1660, 32
      %v3269 = vpop.permute.xlu0 %3268
      %3270 = vrot.lane.b32.xlu0 %v1661, 32
      %v3271 = vpop.permute.xlu0 %3270
      %3272 = vrot.lane.b32.xlu0 %v1662, 32
      %v3273 = vpop.permute.xlu0 %3272
      %3274 = vrot.lane.b32.xlu0 %v1663, 32
      %v3275 = vpop.permute.xlu0 %3274
      %3276 = vrot.lane.b32.xlu0 %v1664, 32
      %v3277 = vpop.permute.xlu0 %3276
      %3278 = vrot.lane.b32.xlu0 %v1665, 32
      %v3279 = vpop.permute.xlu0 %3278
      %3280 = vrot.lane.b32.xlu0 %v1666, 32
      %v3281 = vpop.permute.xlu0 %3280
      %3282 = vrot.lane.b32.xlu0 %v1775, 32
      %v3283 = vpop.permute.xlu0 %3282
      %3284 = vrot.lane.b32.xlu0 %v1776, 32
      %v3285 = vpop.permute.xlu0 %3284
      %3286 = vrot.lane.b32.xlu0 %v1806, 32
      %v3287 = vpop.permute.xlu0 %3286
      %3288 = vrot.lane.b32.xlu0 %v1807, 32
      %v3289 = vpop.permute.xlu0 %3288
      %3290 = vrot.lane.b32.xlu0 %v1822, 32
      %v3291 = vpop.permute.xlu0 %3290
      %3292 = vrot.lane.b32.xlu0 %v1823, 32
      %v3293 = vpop.permute.xlu0 %3292
      %3294 = vrot.lane.b32.xlu0 %v1824, 32
      %v3295 = vpop.permute.xlu0 %3294
      %3319 = vrot.lane.b32.xlu0 %v1674, 40
      %v3320 = vpop.permute.xlu0 %3319
      %3321 = vrot.lane.b32.xlu0 %v1675, 40
      %v3322 = vpop.permute.xlu0 %3321
      %3323 = vrot.lane.b32.xlu0 %v1676, 40
      %v3324 = vpop.permute.xlu0 %3323
      %3325 = vrot.lane.b32.xlu0 %v1677, 40
      %v3326 = vpop.permute.xlu0 %3325
      %3327 = vrot.lane.b32.xlu0 %v1678, 40
      %v3328 = vpop.permute.xlu0 %3327
      %3329 = vrot.lane.b32.xlu0 %v1679, 40
      %v3330 = vpop.permute.xlu0 %3329
      %3331 = vrot.lane.b32.xlu0 %v1680, 40
      %v3332 = vpop.permute.xlu0 %3331
      %3333 = vrot.lane.b32.xlu0 %v1681, 40
      %v3334 = vpop.permute.xlu0 %3333
      %3335 = vrot.lane.b32.xlu0 %v1682, 40
      %v3336 = vpop.permute.xlu0 %3335
      %3337 = vrot.lane.b32.xlu0 %v1683, 40
      %v3338 = vpop.permute.xlu0 %3337
      %3339 = vrot.lane.b32.xlu0 %v1684, 40
      %v3340 = vpop.permute.xlu0 %3339
      %3341 = vrot.lane.b32.xlu0 %v1777, 40
      %v3342 = vpop.permute.xlu0 %3341
      %3343 = vrot.lane.b32.xlu0 %v1778, 40
      %v3344 = vpop.permute.xlu0 %3343
      %3345 = vrot.lane.b32.xlu0 %v1825, 40
      %v3346 = vpop.permute.xlu0 %3345
      %3347 = vrot.lane.b32.xlu0 %v1826, 40
      %v3348 = vpop.permute.xlu0 %3347
      %3349 = vrot.lane.b32.xlu0 %v1827, 40
      %v3350 = vpop.permute.xlu0 %3349
      %3351 = vrot.lane.b32.xlu0 %v1828, 40
      %v3352 = vpop.permute.xlu0 %3351
      %3353 = vrot.lane.b32.xlu0 %v1829, 40
      %v3354 = vpop.permute.xlu0 %3353
      %3375 = vrot.lane.b32.xlu0 %v1692, 48
      %v3376 = vpop.permute.xlu0 %3375
      %3377 = vrot.lane.b32.xlu0 %v1693, 48
      %v3378 = vpop.permute.xlu0 %3377
      %3379 = vrot.lane.b32.xlu0 %v1694, 48
      %v3380 = vpop.permute.xlu0 %3379
      %3381 = vrot.lane.b32.xlu0 %v1695, 48
      %v3382 = vpop.permute.xlu0 %3381
      %3383 = vrot.lane.b32.xlu0 %v1696, 48
      %v3384 = vpop.permute.xlu0 %3383
      %3385 = vrot.lane.b32.xlu0 %v1697, 48
      %v3386 = vpop.permute.xlu0 %3385
      %3387 = vrot.lane.b32.xlu0 %v1698, 48
      %v3388 = vpop.permute.xlu0 %3387
      %3389 = vrot.lane.b32.xlu0 %v1699, 48
      %v3390 = vpop.permute.xlu0 %3389
      %3391 = vrot.lane.b32.xlu0 %v1700, 48
      %v3392 = vpop.permute.xlu0 %3391
      %3393 = vrot.lane.b32.xlu0 %v1701, 48
      %v3394 = vpop.permute.xlu0 %3393
      %3395 = vrot.lane.b32.xlu0 %v1702, 48
      %v3396 = vpop.permute.xlu0 %3395
      %3397 = vrot.lane.b32.xlu0 %v1779, 48
      %v3398 = vpop.permute.xlu0 %3397
      %3399 = vrot.lane.b32.xlu0 %v1780, 48
      %v3400 = vpop.permute.xlu0 %3399
      %3401 = vrot.lane.b32.xlu0 %v1808, 48
      %v3402 = vpop.permute.xlu0 %3401
      %3403 = vrot.lane.b32.xlu0 %v1809, 48
      %v3404 = vpop.permute.xlu0 %3403
      %3405 = vrot.lane.b32.xlu0 %v1810, 48
      %v3406 = vpop.permute.xlu0 %3405
      %3407 = vrot.lane.b32.xlu0 %v1830, 48
      %v3408 = vpop.permute.xlu0 %3407
      %3409 = vrot.lane.b32.xlu0 %v1831, 48
      %v3410 = vpop.permute.xlu0 %3409
      %3436 = vrot.lane.b32.xlu0 %v1710, 56
      %v3437 = vpop.permute.xlu0 %3436
      %3438 = vrot.lane.b32.xlu0 %v1711, 56
      %v3439 = vpop.permute.xlu0 %3438
      %3440 = vrot.lane.b32.xlu0 %v1712, 56
      %v3441 = vpop.permute.xlu0 %3440
      %3442 = vrot.lane.b32.xlu0 %v1713, 56
      %v3443 = vpop.permute.xlu0 %3442
      %3444 = vrot.lane.b32.xlu0 %v1714, 56
      %v3445 = vpop.permute.xlu0 %3444
      %3446 = vrot.lane.b32.xlu0 %v1715, 56
      %v3447 = vpop.permute.xlu0 %3446
      %3448 = vrot.lane.b32.xlu0 %v1716, 56
      %v3449 = vpop.permute.xlu0 %3448
      %3450 = vrot.lane.b32.xlu0 %v1717, 56
      %v3451 = vpop.permute.xlu0 %3450
      %3452 = vrot.lane.b32.xlu0 %v1718, 56
      %v3453 = vpop.permute.xlu0 %3452
      %3454 = vrot.lane.b32.xlu0 %v1719, 56
      %v3455 = vpop.permute.xlu0 %3454
      %3456 = vrot.lane.b32.xlu0 %v1720, 56
      %v3457 = vpop.permute.xlu0 %3456
      %3458 = vrot.lane.b32.xlu0 %v1811, 56
      %v3459 = vpop.permute.xlu0 %3458
      %3460 = vrot.lane.b32.xlu0 %v1812, 56
      %v3461 = vpop.permute.xlu0 %3460
      %3462 = vrot.lane.b32.xlu0 %v1813, 56
      %v3463 = vpop.permute.xlu0 %3462
      %3464 = vrot.lane.b32.xlu0 %v1814, 56
      %v3465 = vpop.permute.xlu0 %3464
      %3466 = vrot.lane.b32.xlu0 %v1815, 56
      %v3467 = vpop.permute.xlu0 %3466
      %3468 = vrot.lane.b32.xlu0 %v1832, 56
      %v3469 = vpop.permute.xlu0 %3468
      %3470 = vrot.lane.b32.xlu0 %v1833, 56
      %v3471 = vpop.permute.xlu0 %3470
      %3492 = vrot.lane.b32.xlu0 %v1728, 64
      %v3493 = vpop.permute.xlu0 %3492
      %3494 = vrot.lane.b32.xlu0 %v1729, 64
      %v3495 = vpop.permute.xlu0 %3494
      %3496 = vrot.lane.b32.xlu0 %v1730, 64
      %v3497 = vpop.permute.xlu0 %3496
      %3498 = vrot.lane.b32.xlu0 %v1731, 64
      %v3499 = vpop.permute.xlu0 %3498
      %3500 = vrot.lane.b32.xlu0 %v1732, 64
      %v3501 = vpop.permute.xlu0 %3500
      %3502 = vrot.lane.b32.xlu0 %v1733, 64
      %v3503 = vpop.permute.xlu0 %3502
      %3504 = vrot.lane.b32.xlu0 %v1734, 64
      %v3505 = vpop.permute.xlu0 %3504
      %3506 = vrot.lane.b32.xlu0 %v1735, 64
      %v3507 = vpop.permute.xlu0 %3506
      %3508 = vrot.lane.b32.xlu0 %v1736, 64
      %v3509 = vpop.permute.xlu0 %3508
      %3510 = vrot.lane.b32.xlu0 %v1737, 64
      %v3511 = vpop.permute.xlu0 %3510
      %3512 = vrot.lane.b32.xlu0 %v1738, 64
      %v3513 = vpop.permute.xlu0 %3512
      %3514 = vrot.lane.b32.xlu0 %v1781, 64
      %v3515 = vpop.permute.xlu0 %3514
      %3516 = vrot.lane.b32.xlu0 %v1782, 64
      %v3517 = vpop.permute.xlu0 %3516
      %3518 = vrot.lane.b32.xlu0 %v1783, 64
      %v3519 = vpop.permute.xlu0 %3518
      %3520 = vrot.lane.b32.xlu0 %v1816, 64
      %v3521 = vpop.permute.xlu0 %3520
      %3522 = vrot.lane.b32.xlu0 %v1817, 64
      %v3523 = vpop.permute.xlu0 %3522
      %3524 = vrot.lane.b32.xlu0 %v1834, 64
      %v3525 = vpop.permute.xlu0 %3524
      %3526 = vrot.lane.b32.xlu0 %v1835, 64
      %v3527 = vpop.permute.xlu0 %3526
      %v3546 = vsel %vm1616, %v1708, %v3092
      %v3547 = vsel %vm1616, %v1709, %v3094
      %v3548 = vsel %vm1616, %v1710, %v3096
      %v3549 = vsel %vm1616, %v1711, %v3098
      %v3550 = vsel %vm1616, %v1712, %v3100
      %v3551 = vsel %vm1616, %v1713, %v3102
      %v3552 = vsel %vm1616, %v1714, %v3104
      %v3553 = vsel %vm1616, %v1715, %v3106
      %v3554 = vsel %vm1616, %v1716, %v3108
      %v3555 = vsel %vm1616, %v1717, %v3110
      %v3556 = vsel %vm1616, %v1718, %v3112
      %v3557 = vsel %vm1616, %v1719, %v3114
      %v3558 = vsel %vm1616, %v1720, %v3116
      %v3559 = vsel %vm1616, %v1811, %v3118
      %v3560 = vsel %vm1616, %v1812, %v3120
      %v3561 = vsel %vm1616, %v1813, %v3122
      %v3562 = vsel %vm1616, %v1814, %v3124
      %v3563 = vsel %vm1616, %v1815, %v3126
      %v3564 = vsel %vm2824, %v3546, %v3148
      %v3565 = vsel %vm2824, %v3547, %v3150
      %v3566 = vsel %vm2824, %v3548, %v3152
      %v3567 = vsel %vm2824, %v3549, %v3154
      %v3568 = vsel %vm2824, %v3550, %v3156
      %v3569 = vsel %vm2824, %v3551, %v3158
      %v3570 = vsel %vm2824, %v3552, %v3160
      %v3571 = vsel %vm2824, %v3553, %v3162
      %v3572 = vsel %vm2824, %v3554, %v3164
      %v3573 = vsel %vm2824, %v3555, %v3166
      %v3574 = vsel %vm2824, %v3556, %v3168
      %v3575 = vsel %vm2824, %v3557, %v3170
      %v3576 = vsel %vm2824, %v3558, %v3172
      %v3577 = vsel %vm2824, %v3559, %v3174
      %v3578 = vsel %vm2824, %v3560, %v3176
      %v3579 = vsel %vm2824, %v3561, %v3178
      %v3580 = vsel %vm2824, %v3562, %v3180
      %v3581 = vsel %vm2824, %v3563, %v3182
      %v3582 = vsel %vm2843, %v3564, %v3204
      %v3583 = vsel %vm2843, %v3565, %v3206
      %v3584 = vsel %vm2843, %v3566, %v3208
      %v3585 = vsel %vm2843, %v3567, %v3210
      %v3586 = vsel %vm2843, %v3568, %v3212
      %v3587 = vsel %vm2843, %v3569, %v3214
      %v3588 = vsel %vm2843, %v3570, %v3216
      %v3589 = vsel %vm2843, %v3571, %v3218
      %v3590 = vsel %vm2843, %v3572, %v3220
      %v3591 = vsel %vm2843, %v3573, %v3222
      %v3592 = vsel %vm2843, %v3574, %v3224
      %v3593 = vsel %vm2843, %v3575, %v3226
      %v3594 = vsel %vm2843, %v3576, %v3228
      %v3595 = vsel %vm2843, %v3577, %v3230
      %v3596 = vsel %vm2843, %v3578, %v3232
      %v3597 = vsel %vm2843, %v3579, %v3234
      %v3598 = vsel %vm2843, %v3580, %v3236
      %v3599 = vsel %vm2843, %v3581, %v3238
      %v3600 = vsel %vm359, %v3582, %v3261
      %v3601 = vsel %vm359, %v3583, %v3263
      %v3602 = vsel %vm359, %v3584, %v3265
      %v3603 = vsel %vm359, %v3585, %v3267
      %v3604 = vsel %vm359, %v3586, %v3269
      %v3605 = vsel %vm359, %v3587, %v3271
      %v3606 = vsel %vm359, %v3588, %v3273
      %v3607 = vsel %vm359, %v3589, %v3275
      %v3608 = vsel %vm359, %v3590, %v3277
      %v3609 = vsel %vm359, %v3591, %v3279
      %v3610 = vsel %vm359, %v3592, %v3281
      %v3611 = vsel %vm359, %v3593, %v3283
      %v3612 = vsel %vm359, %v3594, %v3285
      %v3613 = vsel %vm359, %v3595, %v3287
      %v3614 = vsel %vm359, %v3596, %v3289
      %v3615 = vsel %vm359, %v3597, %v3291
      %v3616 = vsel %vm359, %v3598, %v3293
      %v3617 = vsel %vm359, %v3599, %v3295
      %v3618 = vsel %vm2880, %v3600, %v3320
      %v3619 = vsel %vm2880, %v3601, %v3322
      %v3620 = vsel %vm2880, %v3602, %v3324
      %v3621 = vsel %vm2880, %v3603, %v3326
      %v3622 = vsel %vm2880, %v3604, %v3328
      %v3623 = vsel %vm2880, %v3605, %v3330
      %v3624 = vsel %vm2880, %v3606, %v3332
      %v3625 = vsel %vm2880, %v3607, %v3334
      %v3626 = vsel %vm2880, %v3608, %v3336
      %v3627 = vsel %vm2880, %v3609, %v3338
      %v3628 = vsel %vm2880, %v3610, %v3340
      %v3629 = vsel %vm2880, %v3611, %v3342
      %v3630 = vsel %vm2880, %v3612, %v3344
      %v3631 = vsel %vm2880, %v3613, %v3346
      %v3632 = vsel %vm2880, %v3614, %v3348
      %v3633 = vsel %vm2880, %v3615, %v3350
      %v3634 = vsel %vm2880, %v3616, %v3352
      %v3635 = vsel %vm2880, %v3617, %v3354
      %v3636 = vsel %vm2899, %v3618, %v3376
      %v3637 = vsel %vm2899, %v3619, %v3378
      %v3638 = vsel %vm2899, %v3620, %v3380
      %v3639 = vsel %vm2899, %v3621, %v3382
      %v3640 = vsel %vm2899, %v3622, %v3384
      %v3641 = vsel %vm2899, %v3623, %v3386
      %v3642 = vsel %vm2899, %v3624, %v3388
      %v3643 = vsel %vm2899, %v3625, %v3390
      %v3644 = vsel %vm2899, %v3626, %v3392
      %v3645 = vsel %vm2899, %v3627, %v3394
      %v3646 = vsel %vm2899, %v3628, %v3396
      %v3647 = vsel %vm2899, %v3629, %v3398
      %v3648 = vsel %vm2899, %v3630, %v3400
      %v3649 = vsel %vm2899, %v3631, %v3402
      %v3650 = vsel %vm2899, %v3632, %v3404
      %v3651 = vsel %vm2899, %v3633, %v3406
      %v3652 = vsel %vm2899, %v3634, %v3408
      %v3653 = vsel %vm2899, %v3635, %v3410
      %v3654 = vsel %vm2918, %v3636, %v3437
      %v3655 = vsel %vm2918, %v3637, %v3439
      %v3656 = vsel %vm2918, %v3638, %v3441
      %v3657 = vsel %vm2918, %v3639, %v3443
      %v3658 = vsel %vm2918, %v3640, %v3445
      %v3659 = vsel %vm2918, %v3641, %v3447
      %v3660 = vsel %vm2918, %v3642, %v3449
      %v3661 = vsel %vm2918, %v3643, %v3451
      %v3662 = vsel %vm2918, %v3644, %v3453
      %v3663 = vsel %vm2918, %v3645, %v3455
      %v3664 = vsel %vm2918, %v3646, %v3457
      %v3665 = vsel %vm2918, %v3647, %v3459
      %v3666 = vsel %vm2918, %v3648, %v3461
      %v3667 = vsel %vm2918, %v3649, %v3463
      %v3668 = vsel %vm2918, %v3650, %v3465
      %v3669 = vsel %vm2918, %v3651, %v3467
      %v3670 = vsel %vm2918, %v3652, %v3469
      %v3671 = vsel %vm2918, %v3653, %v3471
      %v3672 = vsel %vm2937, %v3654, %v3493
      %v3673 = vsel %vm2937, %v3655, %v3495
      %v3674 = vsel %vm2937, %v3656, %v3497
      %v3675 = vsel %vm2937, %v3657, %v3499
      %v3676 = vsel %vm2937, %v3658, %v3501
      %v3677 = vsel %vm2937, %v3659, %v3503
      %v3678 = vsel %vm2937, %v3660, %v3505
      %v3679 = vsel %vm2937, %v3661, %v3507
      %v3680 = vsel %vm2937, %v3662, %v3509
      %v3681 = vsel %vm2937, %v3663, %v3511
      %v3682 = vsel %vm2937, %v3664, %v3513
      %v3683 = vsel %vm2937, %v3665, %v3515
      %v3684 = vsel %vm2937, %v3666, %v3517
      %v3685 = vsel %vm2937, %v3667, %v3519
      %v3686 = vsel %vm2937, %v3668, %v3521
      %v3687 = vsel %vm2937, %v3669, %v3523
      %v3688 = vsel %vm2937, %v3670, %v3525
      %v3689 = vsel %vm2937, %v3671, %v3527
      %v3690 = vld [vmem:[%s3] sm:$0xff]
      %v3691 = vld [vmem:[%s3 + $0x8] sm:$0xff]
      %v3692 = vld [vmem:[%s3 + $0x10] sm:$0xff]
      %v3693 = vld [vmem:[%s3 + $0x18] sm:$0xff]
      %v3694 = vld [vmem:[%s3 + $0x20] sm:$0xff]
      %v3695 = vld [vmem:[%s3 + $0x28] sm:$0xff]
      %v3696 = vld [vmem:[%s3 + $0x30] sm:$0xff]
      %v3697 = vld [vmem:[%s3 + $0x38] sm:$0xff]
      %v3698 = vld [vmem:[%s3 + $0x40] sm:$0xff]
      %v3699 = vld [vmem:[%s3 + $0x48] sm:$0xff]
      %v3700 = vld [vmem:[%s3 + $0x50] sm:$0xff]
      %v3701 = vld [vmem:[%s3 + $0x58] sm:$0xff]
      %v3702 = vld [vmem:[%s3 + $0x60] sm:$0xff]
      %v3703 = vld [vmem:[%s3 + $0x68] sm:$0xff]
      %v3704 = vld [vmem:[%s3 + $0x70] sm:$0xff]
      %v3705 = vld [vmem:[%s3 + $0x78] sm:$0xff]
      %v3706 = vld [vmem:[%s3 + $0x80] sm:$0xff]
      %v3707 = vld [vmem:[%s3 + $0x88] sm:$0xff]
      %v3708 = vld [vmem:[%s3 + $0x90] sm:$0xff]
      %v3709 = vld [vmem:[%s3 + $0x98] sm:$0xff]
      %v3710 = vld [vmem:[%s3 + $0xa0] sm:$0xff]
      %v3711 = vld [vmem:[%s3 + $0xa8] sm:$0xff]
      %v3712 = vld [vmem:[%s3 + $0xb0] sm:$0xff]
      %v3713 = vld [vmem:[%s3 + $0xb8] sm:$0xff]
      %v3714 = vld [vmem:[%s3 + $0xc0] sm:$0xff]
      %v3715 = vld [vmem:[%s4] sm:$0x1]
      %v3717 = vlaneseq
      %v3718 = vshrl.u32 %v3717, 7
      %v3719 = vsub.s32 0, %v3718
      %v3720 = vrot.slane %v3715, %v3719
      %v3723 = vsel %vm2956, %v3672, 0
      %v3726 = vsel %vm2956, %v3673, 0
      %v3729 = vsel %vm2956, %v3674, 0
      %v3732 = vsel %vm2956, %v3675, 0
      %v3735 = vsel %vm2956, %v3676, 0
      %v3738 = vsel %vm2956, %v3677, 0
      %v3741 = vsel %vm2956, %v3678, 0
      %v3744 = vsel %vm2956, %v3679, 0
      %v3747 = vsel %vm2956, %v3680, 0
      %v3750 = vsel %vm2956, %v3681, 0
      %v3753 = vsel %vm2956, %v3682, 0
      %v3756 = vsel %vm2956, %v3683, 0
      %v3759 = vsel %vm2956, %v3684, 0
      %v3762 = vsel %vm2956, %v3685, 0
      %v3765 = vsel %vm2956, %v3686, 0
      %v3768 = vsel %vm2956, %v3687, 0
      %v3771 = vsel %vm2956, %v3688, 0
      %v3774 = vsel %vm2956, %v3689, 0
      %3776 = vmatprep.subr.mxu0 0.0
      %3777 = vmatpush1.msra.mxu0 %v3690
      %3778 = vmatprep.subr.mxu0 0.0
      %3779 = vmatpush1.msra.mxu0 %v3691
      %3780 = vmatprep.subr.mxu0 0.0
      %3781 = vmatpush1.msra.mxu0 %v3692
      %3782 = vmatprep.subr.mxu0 0.0
      %3783 = vmatpush1.msra.mxu0 %v3693
      %3784 = vmatprep.subr.mxu0 0.0
      %3785 = vmatpush1.msra.mxu0 %v3694
      %3786 = vmatprep.subr.mxu0 0.0
      %3787 = vmatpush1.msra.mxu0 %v3695
      %3788 = vmatprep.subr.mxu0 0.0
      %3789 = vmatpush1.msra.mxu0 %v3696
      %3790 = vmatprep.subr.mxu0 0.0
      %3791 = vmatpush1.msra.mxu0 %v3697
      %3792 = vmatprep.subr.mxu0 0.0
      %3793 = vmatpush1.msra.mxu0 %v3698
      %3794 = vmatprep.subr.mxu0 0.0
      %3795 = vmatpush1.msra.mxu0 %v3699
      %3796 = vmatprep.subr.mxu0 0.0
      %3797 = vmatpush1.msra.mxu0 %v3700
      %3798 = vmatprep.subr.mxu0 0.0
      %3799 = vmatpush1.msra.mxu0 %v3701
      %3800 = vmatprep.subr.mxu0 0.0
      %3801 = vmatpush1.msra.mxu0 %v3702
      %3802 = vmatprep.subr.mxu0 0.0
      %3803 = vmatpush1.msra.mxu0 %v3703
      %3804 = vmatprep.subr.mxu0 0.0
      %3805 = vmatpush1.msra.mxu0 %v3704
      %3806 = vmatprep.subr.mxu0 0.0
      %3807 = vmatpush1.msra.mxu0 %v3705
      %3808 = vmatprep.subr.mxu0 0.0
      %3809 = vmatpush1.msra.mxu0 %v3706
      %3810 = vmatprep.subr.mxu0 0.0
      %3811 = vmatpush1.msra.mxu0 %v3707
      %3812 = vmatprep.subr.mxu0 0.0
      %3813 = vmatpush1.msra.mxu0 %v3708
      %3814 = vmatprep.subr.mxu0 0.0
      %3815 = vmatpush1.msra.mxu0 %v3709
      %3816 = vmatprep.subr.mxu0 0.0
      %3817 = vmatpush1.msra.mxu0 %v3710
      %3818 = vmatprep.subr.mxu0 0.0
      %3819 = vmatpush1.msra.mxu0 %v3711
      %3820 = vmatprep.subr.mxu0 0.0
      %3821 = vmatpush1.msra.mxu0 %v3712
      %3822 = vmatprep.subr.mxu0 0.0
      %3823 = vmatpush1.msra.mxu0 %v3713
      %3824 = vmatprep.subr.mxu0 0.0
      %3825 = vmatpush1.msra.mxu0 %v3714
      %3826 = vmatprep.subr.mxu0 0.0
      %3827 = vmatpush1.msra.mxu0 0.0
      %3828 = vmatprep.subr.mxu0 0.0
      %3829 = vmatpush1.msra.mxu0 0.0
      %3830 = vmatprep.subr.mxu0 0.0
      %3831 = vmatpush1.msra.mxu0 0.0
      %3832 = vmatprep.subr.mxu0 0.0
      %3833 = vmatpush1.msra.mxu0 0.0
      %3834 = vmatprep.subr.mxu0 0.0
      %3835 = vmatpush1.msra.mxu0 0.0
      %3836 = vmatprep.subr.mxu0 0.0
      %3837 = vmatpush1.msra.mxu0 0.0
      %3838 = vmatprep.subr.mxu0 0.0
      %3839 = vmatpush1.msra.mxu0 0.0
      %3840 = vmatprep.mubr.f32.mxu0 %v3723
      %3841 = vmatmul.mubr.f32.gmra.mrb[0].mxu0 %v3071
      %v3842 = vpop.f32.mrb[0].mxu0
      %v3843 = vadd.f32 %v3720, %v3842
      %v3844 = vpop.f32.mrb[0].mxu0
      %3845 = vmatprep.mubr.f32.mxu0 %v3726
      %3846 = vmatmul.mubr.f32.gmra.mrb[0].mxu0 %v3072
      %v3847 = vpop.f32.mrb[0].mxu0
      %v3848 = vadd.f32 %v3720, %v3847
      %v3849 = vpop.f32.mrb[0].mxu0
      %3850 = vmatprep.mubr.f32.mxu0 %v3729
      %3851 = vmatmul.mubr.f32.gmra.mrb[0].mxu0 %v3073
      %v3852 = vpop.f32.mrb[0].mxu0
      %v3853 = vadd.f32 %v3720, %v3852
      %v3854 = vpop.f32.mrb[0].mxu0
      %3855 = vmatprep.mubr.f32.mxu0 %v3732
      %3856 = vmatmul.mubr.f32.gmra.mrb[0].mxu0 %v3074
      %v3857 = vpop.f32.mrb[0].mxu0
      %v3858 = vadd.f32 %v3720, %v3857
      %v3859 = vpop.f32.mrb[0].mxu0
      %3860 = vmatprep.mubr.f32.mxu0 %v3735
      %3861 = vmatmul.mubr.f32.gmra.mrb[0].mxu0 %v3075
      %v3862 = vpop.f32.mrb[0].mxu0
      %v3863 = vadd.f32 %v3720, %v3862
      %v3864 = vpop.f32.mrb[0].mxu0
      %3865 = vmatprep.mubr.f32.mxu0 %v3738
      %3866 = vmatmul.mubr.f32.gmra.mrb[0].mxu0 %v3076
      %v3867 = vpop.f32.mrb[0].mxu0
      %v3868 = vadd.f32 %v3720, %v3867
      %v3869 = vpop.f32.mrb[0].mxu0
      %3870 = vmatprep.mubr.f32.mxu0 %v3741
      %3871 = vmatmul.mubr.f32.gmra.mrb[0].mxu0 %v3077
      %v3872 = vpop.f32.mrb[0].mxu0
      %v3873 = vadd.f32 %v3720, %v3872
      %v3874 = vpop.f32.mrb[0].mxu0
      %3875 = vmatprep.mubr.f32.mxu0 %v3744
      %3876 = vmatmul.mubr.f32.gmra.mrb[0].mxu0 %v3078
      %v3877 = vpop.f32.mrb[0].mxu0
      %v3878 = vadd.f32 %v3720, %v3877
      %v3879 = vpop.f32.mrb[0].mxu0
      %3880 = vmatprep.mubr.f32.mxu0 %v3747
      %3881 = vmatmul.mubr.f32.gmra.mrb[0].mxu0 %v3079
      %v3882 = vpop.f32.mrb[0].mxu0
      %v3883 = vadd.f32 %v3720, %v3882
      %v3884 = vpop.f32.mrb[0].mxu0
      %3885 = vmatprep.mubr.f32.mxu0 %v3750
      %3886 = vmatmul.mubr.f32.gmra.mrb[0].mxu0 %v3080
      %v3887 = vpop.f32.mrb[0].mxu0
      %v3888 = vadd.f32 %v3720, %v3887
      %v3889 = vpop.f32.mrb[0].mxu0
      %3890 = vmatprep.mubr.f32.mxu0 %v3753
      %3891 = vmatmul.mubr.f32.gmra.mrb[0].mxu0 %v3081
      %v3892 = vpop.f32.mrb[0].mxu0
      %v3893 = vadd.f32 %v3720, %v3892
      %v3894 = vpop.f32.mrb[0].mxu0
      %3895 = vmatprep.mubr.f32.mxu0 %v3756
      %3896 = vmatmul.mubr.f32.gmra.mrb[0].mxu0 %v3082
      %v3897 = vpop.f32.mrb[0].mxu0
      %v3898 = vadd.f32 %v3720, %v3897
      %v3899 = vpop.f32.mrb[0].mxu0
      %3900 = vmatprep.mubr.f32.mxu0 %v3759
      %3901 = vmatmul.mubr.f32.gmra.mrb[0].mxu0 %v3083
      %v3902 = vpop.f32.mrb[0].mxu0
      %v3903 = vadd.f32 %v3720, %v3902
      %v3904 = vpop.f32.mrb[0].mxu0
      %3905 = vmatprep.mubr.f32.mxu0 %v3762
      %3906 = vmatmul.mubr.f32.gmra.mrb[0].mxu0 %v3084
      %v3907 = vpop.f32.mrb[0].mxu0
      %v3908 = vadd.f32 %v3720, %v3907
      %v3909 = vpop.f32.mrb[0].mxu0
      %3910 = vmatprep.mubr.f32.mxu0 %v3765
      %3911 = vmatmul.mubr.f32.gmra.mrb[0].mxu0 %v3085
      %v3912 = vpop.f32.mrb[0].mxu0
      %v3913 = vadd.f32 %v3720, %v3912
      %v3914 = vpop.f32.mrb[0].mxu0
      %3915 = vmatprep.mubr.f32.mxu0 %v3768
      %3916 = vmatmul.mubr.f32.gmra.mrb[0].mxu0 %v3086
      %v3917 = vpop.f32.mrb[0].mxu0
      %v3918 = vadd.f32 %v3720, %v3917
      %v3919 = vpop.f32.mrb[0].mxu0
      %3920 = vmatprep.mubr.f32.mxu0 %v3771
      %3921 = vmatmul.mubr.f32.gmra.mrb[0].mxu0 %v3087
      %v3922 = vpop.f32.mrb[0].mxu0
      %v3923 = vadd.f32 %v3720, %v3922
      %v3924 = vpop.f32.mrb[0].mxu0
      %3925 = vmatprep.mubr.f32.mxu0 %v3774
      %3926 = vmatmul.mubr.f32.gmra.mrb[0].mxu0 %v3088
      %v3927 = vpop.f32.mrb[0].mxu0
      %v3928 = vadd.f32 %v3720, %v3927
      %v3929 = vpop.f32.mrb[0].mxu0
      %3930 = vdwg.mxu0
      %v3931 = vmax.f32 %v3843, 0.0
      %v3932 = vmax.f32 %v3848, 0.0
      %v3933 = vmax.f32 %v3853, 0.0
      %v3934 = vmax.f32 %v3858, 0.0
      %v3935 = vmax.f32 %v3863, 0.0
      %v3936 = vmax.f32 %v3868, 0.0
      %v3937 = vmax.f32 %v3873, 0.0
      %v3938 = vmax.f32 %v3878, 0.0
      %v3939 = vmax.f32 %v3883, 0.0
      %v3940 = vmax.f32 %v3888, 0.0
      %v3941 = vmax.f32 %v3893, 0.0
      %v3942 = vmax.f32 %v3898, 0.0
      %v3943 = vmax.f32 %v3903, 0.0
      %v3944 = vmax.f32 %v3908, 0.0
      %v3945 = vmax.f32 %v3913, 0.0
      %v3946 = vmax.f32 %v3918, 0.0
      %v3947 = vmax.f32 %v3923, 0.0
      %v3948 = vmax.f32 %v3928, 0.0
      %3949 = vst [vmem:[#allocation3] sm:$0xff] %v3931
      %3950 = vst [vmem:[#allocation3 + $0x8] sm:$0xff] %v3932
      %3951 = vst [vmem:[#allocation3 + $0x10] sm:$0xff] %v3933
      %3952 = vst [vmem:[#allocation3 + $0x18] sm:$0xff] %v3934
      %3953 = vst [vmem:[#allocation3 + $0x20] sm:$0xff] %v3935
      %3954 = vst [vmem:[#allocation3 + $0x28] sm:$0xff] %v3936
      %3955 = vst [vmem:[#allocation3 + $0x30] sm:$0xff] %v3937
      %3956 = vst [vmem:[#allocation3 + $0x38] sm:$0xff] %v3938
      %3957 = vst [vmem:[#allocation3 + $0x40] sm:$0xff] %v3939
      %3958 = vst [vmem:[#allocation3 + $0x48] sm:$0xff] %v3940
      %3959 = vst [vmem:[#allocation3 + $0x50] sm:$0xff] %v3941
      %3960 = vst [vmem:[#allocation3 + $0x58] sm:$0xff] %v3942
      %3961 = vst [vmem:[#allocation3 + $0x60] sm:$0xff] %v3943
      %3962 = vst [vmem:[#allocation3 + $0x68] sm:$0xff] %v3944
      %3963 = vst [vmem:[#allocation3 + $0x70] sm:$0xff] %v3945
      %3964 = vst [vmem:[#allocation3 + $0x78] sm:$0xff] %v3946
      %3965 = vst [vmem:[#allocation3 + $0x80] sm:$0xff] %v3947
      %3966 = vst [vmem:[#allocation3 + $0x88] sm:$0xff] %v3948
      %v3967 = vld [vmem:[#allocation3] ss:$2 sm:$0x1f]
      %s3968 = scalar_lea.vmem [#allocation3], 1
      %v3969 = vld [vmem:[%s3968] ss:$2 sm:$0x1f]
      %s3970 = scalar_lea.vmem [#allocation3], 14
      %v3971 = vld [vmem:[%s3970] ss:$2 sm:$0x1f]
      %s3972 = scalar_lea.vmem [#allocation3], 15
      %v3973 = vld [vmem:[%s3972] ss:$2 sm:$0x1f]
      %v3974 = vmax.f32 %v3967, %v3969
      %v3975 = vmax.f32 %v3971, %v3973
      %v3976 = vmax.f32 %v3974, %v3975
      %vm3977 = vcmask 126976
      %3978 = vst.msk [vmem:[%s226] sm:$0x1f] %vm3977, %v3976
      %s3979 = scalar_lea.vmem [#allocation3], 28
      %v3980 = vld [vmem:[%s3979] ss:$2 sm:$0x1f]
      %s3981 = scalar_lea.vmem [#allocation3], 29
      %v3982 = vld [vmem:[%s3981] ss:$2 sm:$0x1f]
      %s3983 = scalar_lea.vmem [#allocation3], 42
      %v3984 = vld [vmem:[%s3983] ss:$2 sm:$0x1f]
      %s3985 = scalar_lea.vmem [#allocation3], 43
      %v3986 = vld [vmem:[%s3985] ss:$2 sm:$0x1f]
      %v3987 = vmax.f32 %v3980, %v3982
      %v3988 = vmax.f32 %v3984, %v3986
      %v3989 = vmax.f32 %v3987, %v3988
      %3990 = vst.msk [vmem:[%s226 + $0x5] sm:$0x1f] %vm3977, %v3989
      %s3991 = scalar_lea.vmem [#allocation3], 56
      %v3992 = vld [vmem:[%s3991] ss:$2 sm:$0x1f]
      %s3993 = scalar_lea.vmem [#allocation3], 57
      %v3994 = vld [vmem:[%s3993] ss:$2 sm:$0x1f]
      %s3995 = scalar_lea.vmem [#allocation3], 70
      %v3996 = vld [vmem:[%s3995] ss:$2 sm:$0x1f]
      %s3997 = scalar_lea.vmem [#allocation3], 71
      %v3998 = vld [vmem:[%s3997] ss:$2 sm:$0x1f]
      %v3999 = vmax.f32 %v3992, %v3994
      %v4000 = vmax.f32 %v3996, %v3998
      %v4001 = vmax.f32 %v3999, %v4000
      %4002 = vst.msk [vmem:[%s226 + $0xa] sm:$0x1f] %vm3977, %v4001
      %s4003 = scalar_lea.vmem [#allocation3], 84
      %v4004 = vld [vmem:[%s4003] ss:$2 sm:$0x1f]
      %s4005 = scalar_lea.vmem [#allocation3], 85
      %v4006 = vld [vmem:[%s4005] ss:$2 sm:$0x1f]
      %s4007 = scalar_lea.vmem [#allocation3], 98
      %v4008 = vld [vmem:[%s4007] ss:$2 sm:$0x1f]
      %s4009 = scalar_lea.vmem [#allocation3], 99
      %v4010 = vld [vmem:[%s4009] ss:$2 sm:$0x1f]
      %v4011 = vmax.f32 %v4004, %v4006
      %v4012 = vmax.f32 %v4008, %v4010
      %v4013 = vmax.f32 %v4011, %v4012
      %4014 = vst.msk [vmem:[%s226 + $0xf] sm:$0x1f] %vm3977, %v4013
      %s4015 = scalar_lea.vmem [#allocation3], 112
      %v4016 = vld [vmem:[%s4015] ss:$2 sm:$0x1f]
      %s4017 = scalar_lea.vmem [#allocation3], 113
      %v4018 = vld [vmem:[%s4017] ss:$2 sm:$0x1f]
      %s4019 = scalar_lea.vmem [#allocation3], 126
      %v4020 = vld [vmem:[%s4019] ss:$2 sm:$0x1f]
      %s4021 = scalar_lea.vmem [#allocation3], 127
      %v4022 = vld [vmem:[%s4021] ss:$2 sm:$0x1f]
      %v4023 = vmax.f32 %v4016, %v4018
      %v4024 = vmax.f32 %v4020, %v4022
      %v4025 = vmax.f32 %v4023, %v4024
      %4026 = vst.msk [vmem:[%s226 + $0x14] sm:$0x1f] %vm3977, %v4025
      %p4027 = scmp.lt.s32.totalorder %s16, 1
      %s4028 = scalar_select %p4027, %s16, 1
      %s4029 = smul.addr %s4028, 4
      %s4030 = smul.addr %s4029, 8
      %s4031 = scalar_lea.vmem %s5, %s4030
      // Predicated region
      $region41: #{cnn_forward.2} parent=39 // pred_check
        %p4032 = pneg %p144
      $region42: #{cnn_forward.2} parent=39 // pred_check_branch
        %4034 = sbr.rel (%p4032) target = $region44
      $region43: #{cnn_forward.2} parent=39 // pred_region
        _
      $region44: #{cnn_forward.2} parent=39 // pred_fallthru
        _
    $region40: #{cnn_forward.2} parent=5 // pred_fallthru
      _
    %p4035 = scmp.le.s32.totalorder 2, %s11
    // Predicated region
    $region45: #{cnn_forward.2} parent=5 // pred_check
      %p4036 = pneg %p4035
    $region46: #{cnn_forward.2} parent=5 // pred_check_branch
      %4038 = sbr.rel (%p4036) target = $region48
    $region47: #{cnn_forward.2} parent=5 // pred_region
      %s4039 = ssub.s32 %s11, 2
      // Predicated region
      $region49: #{cnn_forward.2} parent=47 // pred_check
        %p4040 = pneg %p150
      $region50: #{cnn_forward.2} parent=47 // pred_check_branch
        %4042 = sbr.rel (%p4040) target = $region52
      $region51: #{cnn_forward.2} parent=47 // pred_region
        %p4043 = scmp.lt.s32.totalorder %s17, 1
        %s4044 = scalar_select %p4043, %s17, 1
        %s4045 = smul.addr %s4044, 4
        %s4046 = smul.addr %s4045, 8
        %s4047 = scalar_lea.vmem %s5, %s4046
      $region52: #{cnn_forward.2} parent=47 // pred_fallthru
        _
    $region48: #{cnn_forward.2} parent=5 // pred_fallthru
      _
  $region6: #{cnn_forward.2} parent=0 // loop_footer
    %s15 = sadd.s32 1, %s11
  $region7: #{cnn_forward.2} parent=0 // loop_footer_branch
    %10 = sbr.rel target = $region3
  $region8: #{cnn_forward.2} parent=0 // loop_exit
    _

</llo_original>
